<compile_context>
chip_gen: v5e
topology: v5e:2x2
jax: 0.10.0
libtpu: 0.0.40
codegen_flags: <defaults>
</compile_context>

<pallas_src>
import jax
import jax.numpy as jnp
from jax.experimental import pallas as pl
from jax.experimental.pallas import tpu as pltpu

# ----------------------------- configuration ------------------------------
IMG_SIZE = 16
PATCH = 4
IN_CHANS = 3
EMBED_DIM = 32
NUM_HEADS = 4
HEAD_DIM = EMBED_DIM // NUM_HEADS          # 8
MLP_RATIO = 4.0
HIDDEN = int(EMBED_DIM * MLP_RATIO)        # 128
DEPTH = 2
NUM_CLASSES = 10
LN_EPS = 1e-5

NUM_PATCHES = (IMG_SIZE // PATCH) ** 2     # 16
N_TOKENS = NUM_PATCHES + 1                 # 17 (cls + patches)
N_PAD = 24                                 # tokens padded to a sublane multiple of 8
PATCH_VEC = IN_CHANS * PATCH * PATCH       # 48


# ------------------------------ fused kernel ------------------------------
def _deepvit_kernel(patches_ref, add_ref, pw_ref,
                    ln1g_ref, ln1b_ref, qkvw_ref, projw_ref, projb_ref,
                    ln2g_ref, ln2b_ref, fc1w_ref, fc1b_ref, fc2w_ref, fc2b_ref,
                    ng_ref, nb_ref, hw_ref, hb_ref, out_ref):
    f32 = jnp.float32

    def layernorm(v, g, b):
        mean = jnp.mean(v, axis=-1, keepdims=True)
        c = v - mean
        var = jnp.mean(c * c, axis=-1, keepdims=True)
        return c * jax.lax.rsqrt(var + LN_EPS) * g + b

    def gelu(v):
        # TODO(synk): PyTorch nn.GELU() default is exact erf; tanh approximation used here
        # for robust TPU lowering (tiny numerical deviation).
        c = 0.7978845608028654  # sqrt(2/pi)
        return 0.5 * v * (1.0 + jnp.tanh(c * (v + 0.044715 * v * v * v)))

    # Patch embedding.  `patches` has zero rows at the cls slot and at padded token
    # slots; `add` carries (cls_token + pos[0]) at row 0, (pos + patch_bias) at the
    # real patch rows and zeros at the padded rows, so x is the full token sequence.
    patches = patches_ref[0]                                               # [N_PAD, PATCH_VEC]
    x = jnp.dot(patches, pw_ref[...], preferred_element_type=f32) + add_ref[...]   # [N_PAD, E]

    # Additive softmax mask: padded key tokens get -1e30 (exp underflows to exactly 0).
    key_ids = jax.lax.broadcasted_iota(jnp.int32, (1, N_PAD), 1)
    key_mask = jnp.where(key_ids < N_TOKENS, 0.0, -1e30).astype(f32)       # [1, N_PAD]

    for d in range(DEPTH):                    # static unroll over transformer blocks
        # --- attention branch (re_atten=False, apply_transform=False) ---
        ln1 = layernorm(x, ln1g_ref[d], ln1b_ref[d])
        qkv = jnp.dot(ln1, qkvw_ref[d], preferred_element_type=f32)        # [N_PAD, 3E]; q cols pre-scaled
        projw = projw_ref[d]                                               # [E, E]
        attn_proj = jnp.zeros((N_PAD, EMBED_DIM), f32)
        for h in range(NUM_HEADS):            # static unroll over heads
            lo = h * HEAD_DIM
            qh = qkv[:, lo:lo + HEAD_DIM]                                  # [N_PAD, Dh]
            kh = qkv[:, EMBED_DIM + lo:EMBED_DIM + lo + HEAD_DIM]
            vh = qkv[:, 2 * EMBED_DIM + lo:2 * EMBED_DIM + lo + HEAD_DIM]
            s = jax.lax.dot_general(qh, kh, (((1,), (1,)), ((), ())),
                                    preferred_element_type=f32)            # [N_PAD, N_PAD]
            s = s + key_mask
            m = jnp.max(s, axis=-1, keepdims=True)
            p = jnp.exp(s - m)
            inv = pl.reciprocal(jnp.sum(p, axis=-1, keepdims=True), approx=True)
            p = p * inv
            oh = jnp.dot(p, vh, preferred_element_type=f32)                # [N_PAD, Dh]
            # Fold this head's slice of the output projection in directly
            # (== concat(heads) @ proj_w, without any lane concat / relayout).
            attn_proj = attn_proj + jnp.dot(oh, projw[lo:lo + HEAD_DIM, :],
                                            preferred_element_type=f32)
        x = x + attn_proj + projb_ref[d]                                   # drop_path = 0

        # --- MLP branch ---
        ln2 = layernorm(x, ln2g_ref[d], ln2b_ref[d])
        hdn = gelu(jnp.dot(ln2, fc1w_ref[d], preferred_element_type=f32) + fc1b_ref[d])
        x = x + jnp.dot(hdn, fc2w_ref[d], preferred_element_type=f32) + fc2b_ref[d]

    # Final norm + head applied to the cls token only (LayerNorm is row-wise,
    # so this equals norm(full sequence)[:, 0]).
    cls = layernorm(x[0:1, :], ng_ref[...], nb_ref[...])                   # [1, E]
    logits = jnp.dot(cls, hw_ref[...], preferred_element_type=f32) + hb_ref[...]
    out_ref[0] = logits.astype(out_ref.dtype)


def _full_spec(a):
    nd = a.ndim
    return pl.BlockSpec(a.shape, lambda i, nd=nd: (0,) * nd)


# ------------------------------ model pieces ------------------------------
def pack_params(params):
    """Stack per-block weights, fold the attention scale into q, build the
    additive token tensor (cls + pos_embed + patch bias, zeros at pad rows)."""
    E = EMBED_DIM
    scale = HEAD_DIM ** -0.5
    blocks = params["blocks"]

    def stack(name):
        return jnp.stack([b[name] for b in blocks], axis=0)

    qkv_w = stack("qkv_w")                                   # [D, E, 3E]
    qkv_w = qkv_w.at[:, :, :E].multiply(scale)               # fold softmax scale into q

    pos = params["pos_embed"][0]                             # [N_TOKENS, E]
    cls = params["cls_token"][0, 0]                          # [E]
    add = jnp.zeros((N_PAD, E), jnp.float32)
    add = add.at[0].set(cls + pos[0])
    add = add.at[1:N_TOKENS].set(pos[1:] + params["patch_b"][None, :])

    return dict(
        add_tok=add,
        patch_w=params["patch_w"],
        ln1_g=stack("ln1_g").reshape(DEPTH, 1, E),
        ln1_b=stack("ln1_b").reshape(DEPTH, 1, E),
        qkv_w=qkv_w,
        proj_w=stack("proj_w"),
        proj_b=stack("proj_b").reshape(DEPTH, 1, E),
        ln2_g=stack("ln2_g").reshape(DEPTH, 1, E),
        ln2_b=stack("ln2_b").reshape(DEPTH, 1, E),
        fc1_w=stack("fc1_w"),
        fc1_b=stack("fc1_b").reshape(DEPTH, 1, HIDDEN),
        fc2_w=stack("fc2_w"),
        fc2_b=stack("fc2_b").reshape(DEPTH, 1, E),
        norm_g=params["norm_g"].reshape(1, E),
        norm_b=params["norm_b"].reshape(1, E),
        head_w=params["head_w"],
        head_b=params["head_b"].reshape(1, NUM_CLASSES),
    )


def deep_vit_forward(x, params):
    """x: [B, C, H, W] (NCHW, like PyTorch) -> logits [B, num_classes]."""
    B, C, H, W = x.shape
    p = PATCH
    Hp, Wp = H // p, W // p
    packed = pack_params(params)

    # Patch extraction: Conv2d(k=p, stride=p) == patch-flatten + matmul.
    # Patch vector order (C, ph, pw) matches the Conv2d weight layout.
    patches = (
        x.reshape(B, C, Hp, p, Wp, p)
        .transpose(0, 2, 4, 1, 3, 5)
        .reshape(B, Hp * Wp, C * p * p)
    )
    # Row 0 = cls slot (zeros), rows 1..16 = patches, rows 17..23 = pad (zeros).
    patches = jnp.pad(patches, ((0, 0), (1, N_PAD - 1 - Hp * Wp), (0, 0)))

    args = [patches, packed["add_tok"], packed["patch_w"],
            packed["ln1_g"], packed["ln1_b"], packed["qkv_w"],
            packed["proj_w"], packed["proj_b"],
            packed["ln2_g"], packed["ln2_b"], packed["fc1_w"], packed["fc1_b"],
            packed["fc2_w"], packed["fc2_b"],
            packed["norm_g"], packed["norm_b"], packed["head_w"], packed["head_b"]]

    in_specs = [pl.BlockSpec((1, N_PAD, PATCH_VEC), lambda i: (i, 0, 0))]
    in_specs += [_full_spec(a) for a in args[1:]]

    out = pl.pallas_call(
        _deepvit_kernel,
        out_shape=jax.ShapeDtypeStruct((B, 1, NUM_CLASSES), jnp.float32),
        grid=(B,),
        in_specs=in_specs,
        out_specs=pl.BlockSpec((1, 1, NUM_CLASSES), lambda i: (i, 0, 0)),
        compiler_params=pltpu.CompilerParams(
            dimension_semantics=("parallel",)),   # v7x: split batch across TensorCores
    )(*args)
    return out.reshape(B, NUM_CLASSES)


# ------------------------------ parameter init ----------------------------
def trunc_normal(key, shape, std=0.02):
    return std * jax.random.truncated_normal(key, -2.0, 2.0, shape, jnp.float32)


def init_params(key):
    E = EMBED_DIM
    N = N_TOKENS
    keys = iter(jax.random.split(key, 64))

    params = {
        # patch-embed conv as matmul: [C*p*p, E] (+ bias)
        "patch_w": trunc_normal(next(keys), (PATCH_VEC, E)),
        "patch_b": jnp.zeros((E,), jnp.float32),
        "cls_token": trunc_normal(next(keys), (1, 1, E)),
        "pos_embed": trunc_normal(next(keys), (1, N, E)),
        "norm_g": jnp.ones((E,), jnp.float32),
        "norm_b": jnp.zeros((E,), jnp.float32),
        "head_w": trunc_normal(next(keys), (E, NUM_CLASSES)),
        "head_b": jnp.zeros((NUM_CLASSES,), jnp.float32),
        "blocks": [],
    }
    for _ in range(DEPTH):
        blk = {
            "ln1_g": jnp.ones((E,), jnp.float32),
            "ln1_b": jnp.zeros((E,), jnp.float32),
            "qkv_w": trunc_normal(next(keys), (E, 3 * E)),      # qkv_bias=False
            "proj_w": trunc_normal(next(keys), (E, E)),
            "proj_b": jnp.zeros((E,), jnp.float32),
            "ln2_g": jnp.ones((E,), jnp.float32),
            "ln2_b": jnp.zeros((E,), jnp.float32),
            "fc1_w": trunc_normal(next(keys), (E, HIDDEN)),
            "fc1_b": jnp.zeros((HIDDEN,), jnp.float32),
            "fc2_w": trunc_normal(next(keys), (HIDDEN, E)),
            "fc2_b": jnp.zeros((E,), jnp.float32),
        }
        params["blocks"].append(blk)
    return params


# ---------------------------------- main -----------------------------------
if __name__ == "__main__":
    key = jax.random.PRNGKey(0)
    pkey, xkey = jax.random.split(key)
    params = init_params(pkey)

    # Input image batch, NCHW like PyTorch.
    x = jax.random.normal(xkey, (2, IN_CHANS, IMG_SIZE, IMG_SIZE), jnp.float32)

    fwd = jax.jit(deep_vit_forward)
    logits = fwd(x, params)
    logits = jax.block_until_ready(logits)
    assert logits.shape == (2, NUM_CLASSES)
    assert bool(jnp.all(jnp.isfinite(logits)))
    print("KERNEL_OK")
</pallas_src>

<mosaic_0001>
module attributes {stable_mosaic.version = 11 : i64} {
  func.func @_deepvit_kernel(%arg0: i32, %arg1: memref<1x24x48xf32, #tpu.memory_space<vmem>>, %arg2: memref<24x32xf32, #tpu.memory_space<vmem>>, %arg3: memref<48x32xf32, #tpu.memory_space<vmem>>, %arg4: memref<2x1x32xf32, #tpu.memory_space<vmem>>, %arg5: memref<2x1x32xf32, #tpu.memory_space<vmem>>, %arg6: memref<2x32x96xf32, #tpu.memory_space<vmem>>, %arg7: memref<2x32x32xf32, #tpu.memory_space<vmem>>, %arg8: memref<2x1x32xf32, #tpu.memory_space<vmem>>, %arg9: memref<2x1x32xf32, #tpu.memory_space<vmem>>, %arg10: memref<2x1x32xf32, #tpu.memory_space<vmem>>, %arg11: memref<2x32x128xf32, #tpu.memory_space<vmem>>, %arg12: memref<2x1x128xf32, #tpu.memory_space<vmem>>, %arg13: memref<2x128x32xf32, #tpu.memory_space<vmem>>, %arg14: memref<2x1x32xf32, #tpu.memory_space<vmem>>, %arg15: memref<1x32xf32, #tpu.memory_space<vmem>>, %arg16: memref<1x32xf32, #tpu.memory_space<vmem>>, %arg17: memref<32x10xf32, #tpu.memory_space<vmem>>, %arg18: memref<1x10xf32, #tpu.memory_space<vmem>>, %arg19: memref<1x1x10xf32, #tpu.memory_space<vmem>>) attributes {dimension_semantics = [#tpu.dimension_semantics<parallel>], iteration_bounds = array<i64: 2>, scalar_prefetch = 0 : i64, scratch_operands = 0 : i64, tpu.core_type = #tpu.core_type<tc>, window_params = [{transform_indices = @transform_0, window_bounds = array<i64: 1, 24, 48>}, {pipeline_mode = #tpu.pipeline_mode<synchronous>, transform_indices = @transform_1, window_bounds = array<i64: 24, 32>}, {pipeline_mode = #tpu.pipeline_mode<synchronous>, transform_indices = @transform_2, window_bounds = array<i64: 48, 32>}, {pipeline_mode = #tpu.pipeline_mode<synchronous>, transform_indices = @transform_3, window_bounds = array<i64: 2, 1, 32>}, {pipeline_mode = #tpu.pipeline_mode<synchronous>, transform_indices = @transform_4, window_bounds = array<i64: 2, 1, 32>}, {pipeline_mode = #tpu.pipeline_mode<synchronous>, transform_indices = @transform_5, window_bounds = array<i64: 2, 32, 96>}, {pipeline_mode = #tpu.pipeline_mode<synchronous>, transform_indices = @transform_6, window_bounds = array<i64: 2, 32, 32>}, {pipeline_mode = #tpu.pipeline_mode<synchronous>, transform_indices = @transform_7, window_bounds = array<i64: 2, 1, 32>}, {pipeline_mode = #tpu.pipeline_mode<synchronous>, transform_indices = @transform_8, window_bounds = array<i64: 2, 1, 32>}, {pipeline_mode = #tpu.pipeline_mode<synchronous>, transform_indices = @transform_9, window_bounds = array<i64: 2, 1, 32>}, {pipeline_mode = #tpu.pipeline_mode<synchronous>, transform_indices = @transform_10, window_bounds = array<i64: 2, 32, 128>}, {pipeline_mode = #tpu.pipeline_mode<synchronous>, transform_indices = @transform_11, window_bounds = array<i64: 2, 1, 128>}, {pipeline_mode = #tpu.pipeline_mode<synchronous>, transform_indices = @transform_12, window_bounds = array<i64: 2, 128, 32>}, {pipeline_mode = #tpu.pipeline_mode<synchronous>, transform_indices = @transform_13, window_bounds = array<i64: 2, 1, 32>}, {pipeline_mode = #tpu.pipeline_mode<synchronous>, transform_indices = @transform_14, window_bounds = array<i64: 1, 32>}, {pipeline_mode = #tpu.pipeline_mode<synchronous>, transform_indices = @transform_15, window_bounds = array<i64: 1, 32>}, {pipeline_mode = #tpu.pipeline_mode<synchronous>, transform_indices = @transform_16, window_bounds = array<i64: 32, 10>}, {pipeline_mode = #tpu.pipeline_mode<synchronous>, transform_indices = @transform_17, window_bounds = array<i64: 1, 10>}, {transform_indices = @transform_18, window_bounds = array<i64: 1, 1, 10>}]} {
    %c0 = arith.constant 0 : index
    %c0_0 = arith.constant 0 : index
    %c0_1 = arith.constant 0 : index
    %0 = vector.load %arg1[%c0, %c0_0, %c0_1] : memref<1x24x48xf32, #tpu.memory_space<vmem>>, vector<1x24x48xf32>
    %1 = vector.shape_cast %0 : vector<1x24x48xf32> to vector<24x48xf32>
    %c0_2 = arith.constant 0 : index
    %c0_3 = arith.constant 0 : index
    %2 = vector.load %arg3[%c0_2, %c0_3] : memref<48x32xf32, #tpu.memory_space<vmem>>, vector<48x32xf32>
    %cst = arith.constant dense<0.000000e+00> : vector<24x32xf32>
    %3 = tpu.matmul %1, %2, %cst {dimension_numbers = #tpu.dot_dimension_numbers<[1], [0], [0], [1], [0, 0, 1, 1], [], []>} : vector<24x48xf32>, vector<48x32xf32>, vector<24x32xf32> -> vector<24x32xf32>
    %c0_4 = arith.constant 0 : index
    %c0_5 = arith.constant 0 : index
    %4 = vector.load %arg2[%c0_4, %c0_5] : memref<24x32xf32, #tpu.memory_space<vmem>>, vector<24x32xf32>
    %5 = arith.addf %3, %4 : vector<24x32xf32>
    %6 = tpu.iota {dimensions = array<i32: 1>} : vector<1x24xi32>
    %c17_i32 = arith.constant 17 : i32
    %7 = vector.broadcast %c17_i32 : i32 to vector<1x24xi32>
    %8 = arith.cmpi slt, %6, %7 : vector<1x24xi32>
    %cst_6 = arith.constant 0.000000e+00 : f32
    %cst_7 = arith.constant -1.000000e+30 : f32
    %9 = vector.broadcast %cst_6 : f32 to vector<1x24xf32>
    %10 = vector.broadcast %cst_7 : f32 to vector<1x24xf32>
    %11 = arith.select %8, %9, %10 : vector<1x24xi1>, vector<1x24xf32>
    %c0_8 = arith.constant 0 : index
    %c0_9 = arith.constant 0 : index
    %c0_10 = arith.constant 0 : index
    %12 = vector.load %arg4[%c0_8, %c0_9, %c0_10] : memref<2x1x32xf32, #tpu.memory_space<vmem>>, vector<1x1x32xf32>
    %13 = vector.shape_cast %12 : vector<1x1x32xf32> to vector<1x32xf32>
    %c0_11 = arith.constant 0 : index
    %c0_12 = arith.constant 0 : index
    %c0_13 = arith.constant 0 : index
    %14 = vector.load %arg5[%c0_11, %c0_12, %c0_13] : memref<2x1x32xf32, #tpu.memory_space<vmem>>, vector<1x1x32xf32>
    %15 = vector.shape_cast %14 : vector<1x1x32xf32> to vector<1x32xf32>
    %cst_14 = arith.constant dense<0.000000e+00> : vector<24xf32>
    %16 = vector.multi_reduction <add>, %5, %cst_14 [1] : vector<24x32xf32> to vector<24xf32>
    %17 = vector.shape_cast %16 : vector<24xf32> to vector<24x1xf32>
    %cst_15 = arith.constant 3.200000e+01 : f32
    %18 = vector.broadcast %cst_15 : f32 to vector<24x1xf32>
    %19 = arith.divf %17, %18 : vector<24x1xf32>
    %20 = vector.broadcast %19 : vector<24x1xf32> to vector<24x32xf32>
    %21 = arith.subf %5, %20 : vector<24x32xf32>
    %22 = arith.mulf %21, %21 : vector<24x32xf32>
    %cst_16 = arith.constant dense<0.000000e+00> : vector<24xf32>
    %23 = vector.multi_reduction <add>, %22, %cst_16 [1] : vector<24x32xf32> to vector<24xf32>
    %24 = vector.shape_cast %23 : vector<24xf32> to vector<24x1xf32>
    %cst_17 = arith.constant 3.200000e+01 : f32
    %25 = vector.broadcast %cst_17 : f32 to vector<24x1xf32>
    %26 = arith.divf %24, %25 : vector<24x1xf32>
    %cst_18 = arith.constant 9.99999974E-6 : f32
    %27 = vector.broadcast %cst_18 : f32 to vector<24x1xf32>
    %28 = arith.addf %26, %27 : vector<24x1xf32>
    %29 = math.rsqrt %28 : vector<24x1xf32>
    %30 = vector.broadcast %29 : vector<24x1xf32> to vector<24x32xf32>
    %31 = arith.mulf %21, %30 : vector<24x32xf32>
    %32 = vector.broadcast %13 : vector<1x32xf32> to vector<24x32xf32>
    %33 = arith.mulf %31, %32 : vector<24x32xf32>
    %34 = vector.broadcast %15 : vector<1x32xf32> to vector<24x32xf32>
    %35 = arith.addf %33, %34 : vector<24x32xf32>
    %c0_19 = arith.constant 0 : index
    %c0_20 = arith.constant 0 : index
    %c0_21 = arith.constant 0 : index
    %36 = vector.load %arg6[%c0_19, %c0_20, %c0_21] : memref<2x32x96xf32, #tpu.memory_space<vmem>>, vector<1x32x96xf32>
    %37 = vector.shape_cast %36 : vector<1x32x96xf32> to vector<32x96xf32>
    %cst_22 = arith.constant dense<0.000000e+00> : vector<24x96xf32>
    %38 = tpu.matmul %35, %37, %cst_22 {dimension_numbers = #tpu.dot_dimension_numbers<[1], [0], [0], [1], [0, 0, 1, 1], [], []>} : vector<24x32xf32>, vector<32x96xf32>, vector<24x96xf32> -> vector<24x96xf32>
    %c0_23 = arith.constant 0 : index
    %c0_24 = arith.constant 0 : index
    %c0_25 = arith.constant 0 : index
    %39 = vector.load %arg7[%c0_23, %c0_24, %c0_25] : memref<2x32x32xf32, #tpu.memory_space<vmem>>, vector<1x32x32xf32>
    %40 = vector.shape_cast %39 : vector<1x32x32xf32> to vector<32x32xf32>
    %cst_26 = arith.constant 0.000000e+00 : f32
    %41 = vector.broadcast %cst_26 : f32 to vector<24x32xf32>
    %42 = vector.extract_strided_slice %38 {offsets = [0, 0], sizes = [24, 8], strides = [1, 1]} : vector<24x96xf32> to vector<24x8xf32>
    %43 = vector.extract_strided_slice %38 {offsets = [0, 32], sizes = [24, 8], strides = [1, 1]} : vector<24x96xf32> to vector<24x8xf32>
    %44 = vector.extract_strided_slice %38 {offsets = [0, 64], sizes = [24, 8], strides = [1, 1]} : vector<24x96xf32> to vector<24x8xf32>
    %cst_27 = arith.constant dense<0.000000e+00> : vector<24x24xf32>
    %45 = tpu.matmul %42, %43, %cst_27 {dimension_numbers = #tpu.dot_dimension_numbers<[1], [1], [0], [0], [0, 0, 1, 0], [], []>} : vector<24x8xf32>, vector<24x8xf32>, vector<24x24xf32> -> vector<24x24xf32>
    %46 = vector.broadcast %11 : vector<1x24xf32> to vector<24x24xf32>
    %47 = arith.addf %45, %46 : vector<24x24xf32>
    %cst_28 = arith.constant dense<0xFF800000> : vector<24xf32>
    %48 = vector.multi_reduction <maximumf>, %47, %cst_28 [1] : vector<24x24xf32> to vector<24xf32>
    %49 = vector.shape_cast %48 : vector<24xf32> to vector<24x1xf32>
    %50 = vector.broadcast %49 : vector<24x1xf32> to vector<24x24xf32>
    %51 = arith.subf %47, %50 : vector<24x24xf32>
    %52 = math.exp %51 : vector<24x24xf32>
    %cst_29 = arith.constant dense<0.000000e+00> : vector<24xf32>
    %53 = vector.multi_reduction <add>, %52, %cst_29 [1] : vector<24x24xf32> to vector<24xf32>
    %54 = vector.shape_cast %53 : vector<24xf32> to vector<24x1xf32>
    %55 = tpu.reciprocal %54 {approx = true} : vector<24x1xf32> -> vector<24x1xf32>
    %56 = vector.broadcast %55 : vector<24x1xf32> to vector<24x24xf32>
    %57 = arith.mulf %52, %56 : vector<24x24xf32>
    %cst_30 = arith.constant dense<0.000000e+00> : vector<24x8xf32>
    %58 = tpu.matmul %57, %44, %cst_30 {dimension_numbers = #tpu.dot_dimension_numbers<[1], [0], [0], [1], [0, 0, 1, 1], [], []>} : vector<24x24xf32>, vector<24x8xf32>, vector<24x8xf32> -> vector<24x8xf32>
    %59 = vector.extract_strided_slice %40 {offsets = [0, 0], sizes = [8, 32], strides = [1, 1]} : vector<32x32xf32> to vector<8x32xf32>
    %cst_31 = arith.constant dense<0.000000e+00> : vector<24x32xf32>
    %60 = tpu.matmul %58, %59, %cst_31 {dimension_numbers = #tpu.dot_dimension_numbers<[1], [0], [0], [1], [0, 0, 1, 1], [], []>} : vector<24x8xf32>, vector<8x32xf32>, vector<24x32xf32> -> vector<24x32xf32>
    %61 = arith.addf %41, %60 : vector<24x32xf32>
    %62 = vector.extract_strided_slice %38 {offsets = [0, 8], sizes = [24, 8], strides = [1, 1]} : vector<24x96xf32> to vector<24x8xf32>
    %63 = vector.extract_strided_slice %38 {offsets = [0, 40], sizes = [24, 8], strides = [1, 1]} : vector<24x96xf32> to vector<24x8xf32>
    %64 = vector.extract_strided_slice %38 {offsets = [0, 72], sizes = [24, 8], strides = [1, 1]} : vector<24x96xf32> to vector<24x8xf32>
    %cst_32 = arith.constant dense<0.000000e+00> : vector<24x24xf32>
    %65 = tpu.matmul %62, %63, %cst_32 {dimension_numbers = #tpu.dot_dimension_numbers<[1], [1], [0], [0], [0, 0, 1, 0], [], []>} : vector<24x8xf32>, vector<24x8xf32>, vector<24x24xf32> -> vector<24x24xf32>
    %66 = vector.broadcast %11 : vector<1x24xf32> to vector<24x24xf32>
    %67 = arith.addf %65, %66 : vector<24x24xf32>
    %cst_33 = arith.constant dense<0xFF800000> : vector<24xf32>
    %68 = vector.multi_reduction <maximumf>, %67, %cst_33 [1] : vector<24x24xf32> to vector<24xf32>
    %69 = vector.shape_cast %68 : vector<24xf32> to vector<24x1xf32>
    %70 = vector.broadcast %69 : vector<24x1xf32> to vector<24x24xf32>
    %71 = arith.subf %67, %70 : vector<24x24xf32>
    %72 = math.exp %71 : vector<24x24xf32>
    %cst_34 = arith.constant dense<0.000000e+00> : vector<24xf32>
    %73 = vector.multi_reduction <add>, %72, %cst_34 [1] : vector<24x24xf32> to vector<24xf32>
    %74 = vector.shape_cast %73 : vector<24xf32> to vector<24x1xf32>
    %75 = tpu.reciprocal %74 {approx = true} : vector<24x1xf32> -> vector<24x1xf32>
    %76 = vector.broadcast %75 : vector<24x1xf32> to vector<24x24xf32>
    %77 = arith.mulf %72, %76 : vector<24x24xf32>
    %cst_35 = arith.constant dense<0.000000e+00> : vector<24x8xf32>
    %78 = tpu.matmul %77, %64, %cst_35 {dimension_numbers = #tpu.dot_dimension_numbers<[1], [0], [0], [1], [0, 0, 1, 1], [], []>} : vector<24x24xf32>, vector<24x8xf32>, vector<24x8xf32> -> vector<24x8xf32>
    %79 = vector.extract_strided_slice %40 {offsets = [8, 0], sizes = [8, 32], strides = [1, 1]} : vector<32x32xf32> to vector<8x32xf32>
    %cst_36 = arith.constant dense<0.000000e+00> : vector<24x32xf32>
    %80 = tpu.matmul %78, %79, %cst_36 {dimension_numbers = #tpu.dot_dimension_numbers<[1], [0], [0], [1], [0, 0, 1, 1], [], []>} : vector<24x8xf32>, vector<8x32xf32>, vector<24x32xf32> -> vector<24x32xf32>
    %81 = arith.addf %61, %80 : vector<24x32xf32>
    %82 = vector.extract_strided_slice %38 {offsets = [0, 16], sizes = [24, 8], strides = [1, 1]} : vector<24x96xf32> to vector<24x8xf32>
    %83 = vector.extract_strided_slice %38 {offsets = [0, 48], sizes = [24, 8], strides = [1, 1]} : vector<24x96xf32> to vector<24x8xf32>
    %84 = vector.extract_strided_slice %38 {offsets = [0, 80], sizes = [24, 8], strides = [1, 1]} : vector<24x96xf32> to vector<24x8xf32>
    %cst_37 = arith.constant dense<0.000000e+00> : vector<24x24xf32>
    %85 = tpu.matmul %82, %83, %cst_37 {dimension_numbers = #tpu.dot_dimension_numbers<[1], [1], [0], [0], [0, 0, 1, 0], [], []>} : vector<24x8xf32>, vector<24x8xf32>, vector<24x24xf32> -> vector<24x24xf32>
    %86 = vector.broadcast %11 : vector<1x24xf32> to vector<24x24xf32>
    %87 = arith.addf %85, %86 : vector<24x24xf32>
    %cst_38 = arith.constant dense<0xFF800000> : vector<24xf32>
    %88 = vector.multi_reduction <maximumf>, %87, %cst_38 [1] : vector<24x24xf32> to vector<24xf32>
    %89 = vector.shape_cast %88 : vector<24xf32> to vector<24x1xf32>
    %90 = vector.broadcast %89 : vector<24x1xf32> to vector<24x24xf32>
    %91 = arith.subf %87, %90 : vector<24x24xf32>
    %92 = math.exp %91 : vector<24x24xf32>
    %cst_39 = arith.constant dense<0.000000e+00> : vector<24xf32>
    %93 = vector.multi_reduction <add>, %92, %cst_39 [1] : vector<24x24xf32> to vector<24xf32>
    %94 = vector.shape_cast %93 : vector<24xf32> to vector<24x1xf32>
    %95 = tpu.reciprocal %94 {approx = true} : vector<24x1xf32> -> vector<24x1xf32>
    %96 = vector.broadcast %95 : vector<24x1xf32> to vector<24x24xf32>
    %97 = arith.mulf %92, %96 : vector<24x24xf32>
    %cst_40 = arith.constant dense<0.000000e+00> : vector<24x8xf32>
    %98 = tpu.matmul %97, %84, %cst_40 {dimension_numbers = #tpu.dot_dimension_numbers<[1], [0], [0], [1], [0, 0, 1, 1], [], []>} : vector<24x24xf32>, vector<24x8xf32>, vector<24x8xf32> -> vector<24x8xf32>
    %99 = vector.extract_strided_slice %40 {offsets = [16, 0], sizes = [8, 32], strides = [1, 1]} : vector<32x32xf32> to vector<8x32xf32>
    %cst_41 = arith.constant dense<0.000000e+00> : vector<24x32xf32>
    %100 = tpu.matmul %98, %99, %cst_41 {dimension_numbers = #tpu.dot_dimension_numbers<[1], [0], [0], [1], [0, 0, 1, 1], [], []>} : vector<24x8xf32>, vector<8x32xf32>, vector<24x32xf32> -> vector<24x32xf32>
    %101 = arith.addf %81, %100 : vector<24x32xf32>
    %102 = vector.extract_strided_slice %38 {offsets = [0, 24], sizes = [24, 8], strides = [1, 1]} : vector<24x96xf32> to vector<24x8xf32>
    %103 = vector.extract_strided_slice %38 {offsets = [0, 56], sizes = [24, 8], strides = [1, 1]} : vector<24x96xf32> to vector<24x8xf32>
    %104 = vector.extract_strided_slice %38 {offsets = [0, 88], sizes = [24, 8], strides = [1, 1]} : vector<24x96xf32> to vector<24x8xf32>
    %cst_42 = arith.constant dense<0.000000e+00> : vector<24x24xf32>
    %105 = tpu.matmul %102, %103, %cst_42 {dimension_numbers = #tpu.dot_dimension_numbers<[1], [1], [0], [0], [0, 0, 1, 0], [], []>} : vector<24x8xf32>, vector<24x8xf32>, vector<24x24xf32> -> vector<24x24xf32>
    %106 = vector.broadcast %11 : vector<1x24xf32> to vector<24x24xf32>
    %107 = arith.addf %105, %106 : vector<24x24xf32>
    %cst_43 = arith.constant dense<0xFF800000> : vector<24xf32>
    %108 = vector.multi_reduction <maximumf>, %107, %cst_43 [1] : vector<24x24xf32> to vector<24xf32>
    %109 = vector.shape_cast %108 : vector<24xf32> to vector<24x1xf32>
    %110 = vector.broadcast %109 : vector<24x1xf32> to vector<24x24xf32>
    %111 = arith.subf %107, %110 : vector<24x24xf32>
    %112 = math.exp %111 : vector<24x24xf32>
    %cst_44 = arith.constant dense<0.000000e+00> : vector<24xf32>
    %113 = vector.multi_reduction <add>, %112, %cst_44 [1] : vector<24x24xf32> to vector<24xf32>
    %114 = vector.shape_cast %113 : vector<24xf32> to vector<24x1xf32>
    %115 = tpu.reciprocal %114 {approx = true} : vector<24x1xf32> -> vector<24x1xf32>
    %116 = vector.broadcast %115 : vector<24x1xf32> to vector<24x24xf32>
    %117 = arith.mulf %112, %116 : vector<24x24xf32>
    %cst_45 = arith.constant dense<0.000000e+00> : vector<24x8xf32>
    %118 = tpu.matmul %117, %104, %cst_45 {dimension_numbers = #tpu.dot_dimension_numbers<[1], [0], [0], [1], [0, 0, 1, 1], [], []>} : vector<24x24xf32>, vector<24x8xf32>, vector<24x8xf32> -> vector<24x8xf32>
    %119 = vector.extract_strided_slice %40 {offsets = [24, 0], sizes = [8, 32], strides = [1, 1]} : vector<32x32xf32> to vector<8x32xf32>
    %cst_46 = arith.constant dense<0.000000e+00> : vector<24x32xf32>
    %120 = tpu.matmul %118, %119, %cst_46 {dimension_numbers = #tpu.dot_dimension_numbers<[1], [0], [0], [1], [0, 0, 1, 1], [], []>} : vector<24x8xf32>, vector<8x32xf32>, vector<24x32xf32> -> vector<24x32xf32>
    %121 = arith.addf %101, %120 : vector<24x32xf32>
    %122 = arith.addf %5, %121 : vector<24x32xf32>
    %c0_47 = arith.constant 0 : index
    %c0_48 = arith.constant 0 : index
    %c0_49 = arith.constant 0 : index
    %123 = vector.load %arg8[%c0_47, %c0_48, %c0_49] : memref<2x1x32xf32, #tpu.memory_space<vmem>>, vector<1x1x32xf32>
    %124 = vector.shape_cast %123 : vector<1x1x32xf32> to vector<1x32xf32>
    %125 = vector.broadcast %124 : vector<1x32xf32> to vector<24x32xf32>
    %126 = arith.addf %122, %125 : vector<24x32xf32>
    %c0_50 = arith.constant 0 : index
    %c0_51 = arith.constant 0 : index
    %c0_52 = arith.constant 0 : index
    %127 = vector.load %arg9[%c0_50, %c0_51, %c0_52] : memref<2x1x32xf32, #tpu.memory_space<vmem>>, vector<1x1x32xf32>
    %128 = vector.shape_cast %127 : vector<1x1x32xf32> to vector<1x32xf32>
    %c0_53 = arith.constant 0 : index
    %c0_54 = arith.constant 0 : index
    %c0_55 = arith.constant 0 : index
    %129 = vector.load %arg10[%c0_53, %c0_54, %c0_55] : memref<2x1x32xf32, #tpu.memory_space<vmem>>, vector<1x1x32xf32>
    %130 = vector.shape_cast %129 : vector<1x1x32xf32> to vector<1x32xf32>
    %cst_56 = arith.constant dense<0.000000e+00> : vector<24xf32>
    %131 = vector.multi_reduction <add>, %126, %cst_56 [1] : vector<24x32xf32> to vector<24xf32>
    %132 = vector.shape_cast %131 : vector<24xf32> to vector<24x1xf32>
    %cst_57 = arith.constant 3.200000e+01 : f32
    %133 = vector.broadcast %cst_57 : f32 to vector<24x1xf32>
    %134 = arith.divf %132, %133 : vector<24x1xf32>
    %135 = vector.broadcast %134 : vector<24x1xf32> to vector<24x32xf32>
    %136 = arith.subf %126, %135 : vector<24x32xf32>
    %137 = arith.mulf %136, %136 : vector<24x32xf32>
    %cst_58 = arith.constant dense<0.000000e+00> : vector<24xf32>
    %138 = vector.multi_reduction <add>, %137, %cst_58 [1] : vector<24x32xf32> to vector<24xf32>
    %139 = vector.shape_cast %138 : vector<24xf32> to vector<24x1xf32>
    %cst_59 = arith.constant 3.200000e+01 : f32
    %140 = vector.broadcast %cst_59 : f32 to vector<24x1xf32>
    %141 = arith.divf %139, %140 : vector<24x1xf32>
    %cst_60 = arith.constant 9.99999974E-6 : f32
    %142 = vector.broadcast %cst_60 : f32 to vector<24x1xf32>
    %143 = arith.addf %141, %142 : vector<24x1xf32>
    %144 = math.rsqrt %143 : vector<24x1xf32>
    %145 = vector.broadcast %144 : vector<24x1xf32> to vector<24x32xf32>
    %146 = arith.mulf %136, %145 : vector<24x32xf32>
    %147 = vector.broadcast %128 : vector<1x32xf32> to vector<24x32xf32>
    %148 = arith.mulf %146, %147 : vector<24x32xf32>
    %149 = vector.broadcast %130 : vector<1x32xf32> to vector<24x32xf32>
    %150 = arith.addf %148, %149 : vector<24x32xf32>
    %c0_61 = arith.constant 0 : index
    %c0_62 = arith.constant 0 : index
    %c0_63 = arith.constant 0 : index
    %151 = vector.load %arg11[%c0_61, %c0_62, %c0_63] : memref<2x32x128xf32, #tpu.memory_space<vmem>>, vector<1x32x128xf32>
    %152 = vector.shape_cast %151 : vector<1x32x128xf32> to vector<32x128xf32>
    %cst_64 = arith.constant dense<0.000000e+00> : vector<24x128xf32>
    %153 = tpu.matmul %150, %152, %cst_64 {dimension_numbers = #tpu.dot_dimension_numbers<[1], [0], [0], [1], [0, 0, 1, 1], [], []>} : vector<24x32xf32>, vector<32x128xf32>, vector<24x128xf32> -> vector<24x128xf32>
    %c0_65 = arith.constant 0 : index
    %c0_66 = arith.constant 0 : index
    %c0_67 = arith.constant 0 : index
    %154 = vector.load %arg12[%c0_65, %c0_66, %c0_67] : memref<2x1x128xf32, #tpu.memory_space<vmem>>, vector<1x1x128xf32>
    %155 = vector.shape_cast %154 : vector<1x1x128xf32> to vector<1x128xf32>
    %156 = vector.broadcast %155 : vector<1x128xf32> to vector<24x128xf32>
    %157 = arith.addf %153, %156 : vector<24x128xf32>
    %cst_68 = arith.constant 5.000000e-01 : f32
    %158 = vector.broadcast %cst_68 : f32 to vector<24x128xf32>
    %159 = arith.mulf %158, %157 : vector<24x128xf32>
    %cst_69 = arith.constant 4.471500e-02 : f32
    %160 = vector.broadcast %cst_69 : f32 to vector<24x128xf32>
    %161 = arith.mulf %160, %157 : vector<24x128xf32>
    %162 = arith.mulf %161, %157 : vector<24x128xf32>
    %163 = arith.mulf %162, %157 : vector<24x128xf32>
    %164 = arith.addf %157, %163 : vector<24x128xf32>
    %cst_70 = arith.constant 0.797884583 : f32
    %165 = vector.broadcast %cst_70 : f32 to vector<24x128xf32>
    %166 = arith.mulf %165, %164 : vector<24x128xf32>
    %167 = math.tanh %166 : vector<24x128xf32>
    %cst_71 = arith.constant 1.000000e+00 : f32
    %168 = vector.broadcast %cst_71 : f32 to vector<24x128xf32>
    %169 = arith.addf %168, %167 : vector<24x128xf32>
    %170 = arith.mulf %159, %169 : vector<24x128xf32>
    %c0_72 = arith.constant 0 : index
    %c0_73 = arith.constant 0 : index
    %c0_74 = arith.constant 0 : index
    %171 = vector.load %arg13[%c0_72, %c0_73, %c0_74] : memref<2x128x32xf32, #tpu.memory_space<vmem>>, vector<1x128x32xf32>
    %172 = vector.shape_cast %171 : vector<1x128x32xf32> to vector<128x32xf32>
    %cst_75 = arith.constant dense<0.000000e+00> : vector<24x32xf32>
    %173 = tpu.matmul %170, %172, %cst_75 {dimension_numbers = #tpu.dot_dimension_numbers<[1], [0], [0], [1], [0, 0, 1, 1], [], []>} : vector<24x128xf32>, vector<128x32xf32>, vector<24x32xf32> -> vector<24x32xf32>
    %174 = arith.addf %126, %173 : vector<24x32xf32>
    %c0_76 = arith.constant 0 : index
    %c0_77 = arith.constant 0 : index
    %c0_78 = arith.constant 0 : index
    %175 = vector.load %arg14[%c0_76, %c0_77, %c0_78] : memref<2x1x32xf32, #tpu.memory_space<vmem>>, vector<1x1x32xf32>
    %176 = vector.shape_cast %175 : vector<1x1x32xf32> to vector<1x32xf32>
    %177 = vector.broadcast %176 : vector<1x32xf32> to vector<24x32xf32>
    %178 = arith.addf %174, %177 : vector<24x32xf32>
    %c1 = arith.constant 1 : index
    %c0_79 = arith.constant 0 : index
    %c0_80 = arith.constant 0 : index
    %179 = vector.load %arg4[%c1, %c0_79, %c0_80] : memref<2x1x32xf32, #tpu.memory_space<vmem>>, vector<1x1x32xf32>
    %180 = vector.shape_cast %179 : vector<1x1x32xf32> to vector<1x32xf32>
    %c1_81 = arith.constant 1 : index
    %c0_82 = arith.constant 0 : index
    %c0_83 = arith.constant 0 : index
    %181 = vector.load %arg5[%c1_81, %c0_82, %c0_83] : memref<2x1x32xf32, #tpu.memory_space<vmem>>, vector<1x1x32xf32>
    %182 = vector.shape_cast %181 : vector<1x1x32xf32> to vector<1x32xf32>
    %cst_84 = arith.constant dense<0.000000e+00> : vector<24xf32>
    %183 = vector.multi_reduction <add>, %178, %cst_84 [1] : vector<24x32xf32> to vector<24xf32>
    %184 = vector.shape_cast %183 : vector<24xf32> to vector<24x1xf32>
    %cst_85 = arith.constant 3.200000e+01 : f32
    %185 = vector.broadcast %cst_85 : f32 to vector<24x1xf32>
    %186 = arith.divf %184, %185 : vector<24x1xf32>
    %187 = vector.broadcast %186 : vector<24x1xf32> to vector<24x32xf32>
    %188 = arith.subf %178, %187 : vector<24x32xf32>
    %189 = arith.mulf %188, %188 : vector<24x32xf32>
    %cst_86 = arith.constant dense<0.000000e+00> : vector<24xf32>
    %190 = vector.multi_reduction <add>, %189, %cst_86 [1] : vector<24x32xf32> to vector<24xf32>
    %191 = vector.shape_cast %190 : vector<24xf32> to vector<24x1xf32>
    %cst_87 = arith.constant 3.200000e+01 : f32
    %192 = vector.broadcast %cst_87 : f32 to vector<24x1xf32>
    %193 = arith.divf %191, %192 : vector<24x1xf32>
    %cst_88 = arith.constant 9.99999974E-6 : f32
    %194 = vector.broadcast %cst_88 : f32 to vector<24x1xf32>
    %195 = arith.addf %193, %194 : vector<24x1xf32>
    %196 = math.rsqrt %195 : vector<24x1xf32>
    %197 = vector.broadcast %196 : vector<24x1xf32> to vector<24x32xf32>
    %198 = arith.mulf %188, %197 : vector<24x32xf32>
    %199 = vector.broadcast %180 : vector<1x32xf32> to vector<24x32xf32>
    %200 = arith.mulf %198, %199 : vector<24x32xf32>
    %201 = vector.broadcast %182 : vector<1x32xf32> to vector<24x32xf32>
    %202 = arith.addf %200, %201 : vector<24x32xf32>
    %c1_89 = arith.constant 1 : index
    %c0_90 = arith.constant 0 : index
    %c0_91 = arith.constant 0 : index
    %203 = vector.load %arg6[%c1_89, %c0_90, %c0_91] : memref<2x32x96xf32, #tpu.memory_space<vmem>>, vector<1x32x96xf32>
    %204 = vector.shape_cast %203 : vector<1x32x96xf32> to vector<32x96xf32>
    %cst_92 = arith.constant dense<0.000000e+00> : vector<24x96xf32>
    %205 = tpu.matmul %202, %204, %cst_92 {dimension_numbers = #tpu.dot_dimension_numbers<[1], [0], [0], [1], [0, 0, 1, 1], [], []>} : vector<24x32xf32>, vector<32x96xf32>, vector<24x96xf32> -> vector<24x96xf32>
    %c1_93 = arith.constant 1 : index
    %c0_94 = arith.constant 0 : index
    %c0_95 = arith.constant 0 : index
    %206 = vector.load %arg7[%c1_93, %c0_94, %c0_95] : memref<2x32x32xf32, #tpu.memory_space<vmem>>, vector<1x32x32xf32>
    %207 = vector.shape_cast %206 : vector<1x32x32xf32> to vector<32x32xf32>
    %cst_96 = arith.constant 0.000000e+00 : f32
    %208 = vector.broadcast %cst_96 : f32 to vector<24x32xf32>
    %209 = vector.extract_strided_slice %205 {offsets = [0, 0], sizes = [24, 8], strides = [1, 1]} : vector<24x96xf32> to vector<24x8xf32>
    %210 = vector.extract_strided_slice %205 {offsets = [0, 32], sizes = [24, 8], strides = [1, 1]} : vector<24x96xf32> to vector<24x8xf32>
    %211 = vector.extract_strided_slice %205 {offsets = [0, 64], sizes = [24, 8], strides = [1, 1]} : vector<24x96xf32> to vector<24x8xf32>
    %cst_97 = arith.constant dense<0.000000e+00> : vector<24x24xf32>
    %212 = tpu.matmul %209, %210, %cst_97 {dimension_numbers = #tpu.dot_dimension_numbers<[1], [1], [0], [0], [0, 0, 1, 0], [], []>} : vector<24x8xf32>, vector<24x8xf32>, vector<24x24xf32> -> vector<24x24xf32>
    %213 = vector.broadcast %11 : vector<1x24xf32> to vector<24x24xf32>
    %214 = arith.addf %212, %213 : vector<24x24xf32>
    %cst_98 = arith.constant dense<0xFF800000> : vector<24xf32>
    %215 = vector.multi_reduction <maximumf>, %214, %cst_98 [1] : vector<24x24xf32> to vector<24xf32>
    %216 = vector.shape_cast %215 : vector<24xf32> to vector<24x1xf32>
    %217 = vector.broadcast %216 : vector<24x1xf32> to vector<24x24xf32>
    %218 = arith.subf %214, %217 : vector<24x24xf32>
    %219 = math.exp %218 : vector<24x24xf32>
    %cst_99 = arith.constant dense<0.000000e+00> : vector<24xf32>
    %220 = vector.multi_reduction <add>, %219, %cst_99 [1] : vector<24x24xf32> to vector<24xf32>
    %221 = vector.shape_cast %220 : vector<24xf32> to vector<24x1xf32>
    %222 = tpu.reciprocal %221 {approx = true} : vector<24x1xf32> -> vector<24x1xf32>
    %223 = vector.broadcast %222 : vector<24x1xf32> to vector<24x24xf32>
    %224 = arith.mulf %219, %223 : vector<24x24xf32>
    %cst_100 = arith.constant dense<0.000000e+00> : vector<24x8xf32>
    %225 = tpu.matmul %224, %211, %cst_100 {dimension_numbers = #tpu.dot_dimension_numbers<[1], [0], [0], [1], [0, 0, 1, 1], [], []>} : vector<24x24xf32>, vector<24x8xf32>, vector<24x8xf32> -> vector<24x8xf32>
    %226 = vector.extract_strided_slice %207 {offsets = [0, 0], sizes = [8, 32], strides = [1, 1]} : vector<32x32xf32> to vector<8x32xf32>
    %cst_101 = arith.constant dense<0.000000e+00> : vector<24x32xf32>
    %227 = tpu.matmul %225, %226, %cst_101 {dimension_numbers = #tpu.dot_dimension_numbers<[1], [0], [0], [1], [0, 0, 1, 1], [], []>} : vector<24x8xf32>, vector<8x32xf32>, vector<24x32xf32> -> vector<24x32xf32>
    %228 = arith.addf %208, %227 : vector<24x32xf32>
    %229 = vector.extract_strided_slice %205 {offsets = [0, 8], sizes = [24, 8], strides = [1, 1]} : vector<24x96xf32> to vector<24x8xf32>
    %230 = vector.extract_strided_slice %205 {offsets = [0, 40], sizes = [24, 8], strides = [1, 1]} : vector<24x96xf32> to vector<24x8xf32>
    %231 = vector.extract_strided_slice %205 {offsets = [0, 72], sizes = [24, 8], strides = [1, 1]} : vector<24x96xf32> to vector<24x8xf32>
    %cst_102 = arith.constant dense<0.000000e+00> : vector<24x24xf32>
    %232 = tpu.matmul %229, %230, %cst_102 {dimension_numbers = #tpu.dot_dimension_numbers<[1], [1], [0], [0], [0, 0, 1, 0], [], []>} : vector<24x8xf32>, vector<24x8xf32>, vector<24x24xf32> -> vector<24x24xf32>
    %233 = vector.broadcast %11 : vector<1x24xf32> to vector<24x24xf32>
    %234 = arith.addf %232, %233 : vector<24x24xf32>
    %cst_103 = arith.constant dense<0xFF800000> : vector<24xf32>
    %235 = vector.multi_reduction <maximumf>, %234, %cst_103 [1] : vector<24x24xf32> to vector<24xf32>
    %236 = vector.shape_cast %235 : vector<24xf32> to vector<24x1xf32>
    %237 = vector.broadcast %236 : vector<24x1xf32> to vector<24x24xf32>
    %238 = arith.subf %234, %237 : vector<24x24xf32>
    %239 = math.exp %238 : vector<24x24xf32>
    %cst_104 = arith.constant dense<0.000000e+00> : vector<24xf32>
    %240 = vector.multi_reduction <add>, %239, %cst_104 [1] : vector<24x24xf32> to vector<24xf32>
    %241 = vector.shape_cast %240 : vector<24xf32> to vector<24x1xf32>
    %242 = tpu.reciprocal %241 {approx = true} : vector<24x1xf32> -> vector<24x1xf32>
    %243 = vector.broadcast %242 : vector<24x1xf32> to vector<24x24xf32>
    %244 = arith.mulf %239, %243 : vector<24x24xf32>
    %cst_105 = arith.constant dense<0.000000e+00> : vector<24x8xf32>
    %245 = tpu.matmul %244, %231, %cst_105 {dimension_numbers = #tpu.dot_dimension_numbers<[1], [0], [0], [1], [0, 0, 1, 1], [], []>} : vector<24x24xf32>, vector<24x8xf32>, vector<24x8xf32> -> vector<24x8xf32>
    %246 = vector.extract_strided_slice %207 {offsets = [8, 0], sizes = [8, 32], strides = [1, 1]} : vector<32x32xf32> to vector<8x32xf32>
    %cst_106 = arith.constant dense<0.000000e+00> : vector<24x32xf32>
    %247 = tpu.matmul %245, %246, %cst_106 {dimension_numbers = #tpu.dot_dimension_numbers<[1], [0], [0], [1], [0, 0, 1, 1], [], []>} : vector<24x8xf32>, vector<8x32xf32>, vector<24x32xf32> -> vector<24x32xf32>
    %248 = arith.addf %228, %247 : vector<24x32xf32>
    %249 = vector.extract_strided_slice %205 {offsets = [0, 16], sizes = [24, 8], strides = [1, 1]} : vector<24x96xf32> to vector<24x8xf32>
    %250 = vector.extract_strided_slice %205 {offsets = [0, 48], sizes = [24, 8], strides = [1, 1]} : vector<24x96xf32> to vector<24x8xf32>
    %251 = vector.extract_strided_slice %205 {offsets = [0, 80], sizes = [24, 8], strides = [1, 1]} : vector<24x96xf32> to vector<24x8xf32>
    %cst_107 = arith.constant dense<0.000000e+00> : vector<24x24xf32>
    %252 = tpu.matmul %249, %250, %cst_107 {dimension_numbers = #tpu.dot_dimension_numbers<[1], [1], [0], [0], [0, 0, 1, 0], [], []>} : vector<24x8xf32>, vector<24x8xf32>, vector<24x24xf32> -> vector<24x24xf32>
    %253 = vector.broadcast %11 : vector<1x24xf32> to vector<24x24xf32>
    %254 = arith.addf %252, %253 : vector<24x24xf32>
    %cst_108 = arith.constant dense<0xFF800000> : vector<24xf32>
    %255 = vector.multi_reduction <maximumf>, %254, %cst_108 [1] : vector<24x24xf32> to vector<24xf32>
    %256 = vector.shape_cast %255 : vector<24xf32> to vector<24x1xf32>
    %257 = vector.broadcast %256 : vector<24x1xf32> to vector<24x24xf32>
    %258 = arith.subf %254, %257 : vector<24x24xf32>
    %259 = math.exp %258 : vector<24x24xf32>
    %cst_109 = arith.constant dense<0.000000e+00> : vector<24xf32>
    %260 = vector.multi_reduction <add>, %259, %cst_109 [1] : vector<24x24xf32> to vector<24xf32>
    %261 = vector.shape_cast %260 : vector<24xf32> to vector<24x1xf32>
    %262 = tpu.reciprocal %261 {approx = true} : vector<24x1xf32> -> vector<24x1xf32>
    %263 = vector.broadcast %262 : vector<24x1xf32> to vector<24x24xf32>
    %264 = arith.mulf %259, %263 : vector<24x24xf32>
    %cst_110 = arith.constant dense<0.000000e+00> : vector<24x8xf32>
    %265 = tpu.matmul %264, %251, %cst_110 {dimension_numbers = #tpu.dot_dimension_numbers<[1], [0], [0], [1], [0, 0, 1, 1], [], []>} : vector<24x24xf32>, vector<24x8xf32>, vector<24x8xf32> -> vector<24x8xf32>
    %266 = vector.extract_strided_slice %207 {offsets = [16, 0], sizes = [8, 32], strides = [1, 1]} : vector<32x32xf32> to vector<8x32xf32>
    %cst_111 = arith.constant dense<0.000000e+00> : vector<24x32xf32>
    %267 = tpu.matmul %265, %266, %cst_111 {dimension_numbers = #tpu.dot_dimension_numbers<[1], [0], [0], [1], [0, 0, 1, 1], [], []>} : vector<24x8xf32>, vector<8x32xf32>, vector<24x32xf32> -> vector<24x32xf32>
    %268 = arith.addf %248, %267 : vector<24x32xf32>
    %269 = vector.extract_strided_slice %205 {offsets = [0, 24], sizes = [24, 8], strides = [1, 1]} : vector<24x96xf32> to vector<24x8xf32>
    %270 = vector.extract_strided_slice %205 {offsets = [0, 56], sizes = [24, 8], strides = [1, 1]} : vector<24x96xf32> to vector<24x8xf32>
    %271 = vector.extract_strided_slice %205 {offsets = [0, 88], sizes = [24, 8], strides = [1, 1]} : vector<24x96xf32> to vector<24x8xf32>
    %cst_112 = arith.constant dense<0.000000e+00> : vector<24x24xf32>
    %272 = tpu.matmul %269, %270, %cst_112 {dimension_numbers = #tpu.dot_dimension_numbers<[1], [1], [0], [0], [0, 0, 1, 0], [], []>} : vector<24x8xf32>, vector<24x8xf32>, vector<24x24xf32> -> vector<24x24xf32>
    %273 = vector.broadcast %11 : vector<1x24xf32> to vector<24x24xf32>
    %274 = arith.addf %272, %273 : vector<24x24xf32>
    %cst_113 = arith.constant dense<0xFF800000> : vector<24xf32>
    %275 = vector.multi_reduction <maximumf>, %274, %cst_113 [1] : vector<24x24xf32> to vector<24xf32>
    %276 = vector.shape_cast %275 : vector<24xf32> to vector<24x1xf32>
    %277 = vector.broadcast %276 : vector<24x1xf32> to vector<24x24xf32>
    %278 = arith.subf %274, %277 : vector<24x24xf32>
    %279 = math.exp %278 : vector<24x24xf32>
    %cst_114 = arith.constant dense<0.000000e+00> : vector<24xf32>
    %280 = vector.multi_reduction <add>, %279, %cst_114 [1] : vector<24x24xf32> to vector<24xf32>
    %281 = vector.shape_cast %280 : vector<24xf32> to vector<24x1xf32>
    %282 = tpu.reciprocal %281 {approx = true} : vector<24x1xf32> -> vector<24x1xf32>
    %283 = vector.broadcast %282 : vector<24x1xf32> to vector<24x24xf32>
    %284 = arith.mulf %279, %283 : vector<24x24xf32>
    %cst_115 = arith.constant dense<0.000000e+00> : vector<24x8xf32>
    %285 = tpu.matmul %284, %271, %cst_115 {dimension_numbers = #tpu.dot_dimension_numbers<[1], [0], [0], [1], [0, 0, 1, 1], [], []>} : vector<24x24xf32>, vector<24x8xf32>, vector<24x8xf32> -> vector<24x8xf32>
    %286 = vector.extract_strided_slice %207 {offsets = [24, 0], sizes = [8, 32], strides = [1, 1]} : vector<32x32xf32> to vector<8x32xf32>
    %cst_116 = arith.constant dense<0.000000e+00> : vector<24x32xf32>
    %287 = tpu.matmul %285, %286, %cst_116 {dimension_numbers = #tpu.dot_dimension_numbers<[1], [0], [0], [1], [0, 0, 1, 1], [], []>} : vector<24x8xf32>, vector<8x32xf32>, vector<24x32xf32> -> vector<24x32xf32>
    %288 = arith.addf %268, %287 : vector<24x32xf32>
    %289 = arith.addf %178, %288 : vector<24x32xf32>
    %c1_117 = arith.constant 1 : index
    %c0_118 = arith.constant 0 : index
    %c0_119 = arith.constant 0 : index
    %290 = vector.load %arg8[%c1_117, %c0_118, %c0_119] : memref<2x1x32xf32, #tpu.memory_space<vmem>>, vector<1x1x32xf32>
    %291 = vector.shape_cast %290 : vector<1x1x32xf32> to vector<1x32xf32>
    %292 = vector.broadcast %291 : vector<1x32xf32> to vector<24x32xf32>
    %293 = arith.addf %289, %292 : vector<24x32xf32>
    %c1_120 = arith.constant 1 : index
    %c0_121 = arith.constant 0 : index
    %c0_122 = arith.constant 0 : index
    %294 = vector.load %arg9[%c1_120, %c0_121, %c0_122] : memref<2x1x32xf32, #tpu.memory_space<vmem>>, vector<1x1x32xf32>
    %295 = vector.shape_cast %294 : vector<1x1x32xf32> to vector<1x32xf32>
    %c1_123 = arith.constant 1 : index
    %c0_124 = arith.constant 0 : index
    %c0_125 = arith.constant 0 : index
    %296 = vector.load %arg10[%c1_123, %c0_124, %c0_125] : memref<2x1x32xf32, #tpu.memory_space<vmem>>, vector<1x1x32xf32>
    %297 = vector.shape_cast %296 : vector<1x1x32xf32> to vector<1x32xf32>
    %cst_126 = arith.constant dense<0.000000e+00> : vector<24xf32>
    %298 = vector.multi_reduction <add>, %293, %cst_126 [1] : vector<24x32xf32> to vector<24xf32>
    %299 = vector.shape_cast %298 : vector<24xf32> to vector<24x1xf32>
    %cst_127 = arith.constant 3.200000e+01 : f32
    %300 = vector.broadcast %cst_127 : f32 to vector<24x1xf32>
    %301 = arith.divf %299, %300 : vector<24x1xf32>
    %302 = vector.broadcast %301 : vector<24x1xf32> to vector<24x32xf32>
    %303 = arith.subf %293, %302 : vector<24x32xf32>
    %304 = arith.mulf %303, %303 : vector<24x32xf32>
    %cst_128 = arith.constant dense<0.000000e+00> : vector<24xf32>
    %305 = vector.multi_reduction <add>, %304, %cst_128 [1] : vector<24x32xf32> to vector<24xf32>
    %306 = vector.shape_cast %305 : vector<24xf32> to vector<24x1xf32>
    %cst_129 = arith.constant 3.200000e+01 : f32
    %307 = vector.broadcast %cst_129 : f32 to vector<24x1xf32>
    %308 = arith.divf %306, %307 : vector<24x1xf32>
    %cst_130 = arith.constant 9.99999974E-6 : f32
    %309 = vector.broadcast %cst_130 : f32 to vector<24x1xf32>
    %310 = arith.addf %308, %309 : vector<24x1xf32>
    %311 = math.rsqrt %310 : vector<24x1xf32>
    %312 = vector.broadcast %311 : vector<24x1xf32> to vector<24x32xf32>
    %313 = arith.mulf %303, %312 : vector<24x32xf32>
    %314 = vector.broadcast %295 : vector<1x32xf32> to vector<24x32xf32>
    %315 = arith.mulf %313, %314 : vector<24x32xf32>
    %316 = vector.broadcast %297 : vector<1x32xf32> to vector<24x32xf32>
    %317 = arith.addf %315, %316 : vector<24x32xf32>
    %c1_131 = arith.constant 1 : index
    %c0_132 = arith.constant 0 : index
    %c0_133 = arith.constant 0 : index
    %318 = vector.load %arg11[%c1_131, %c0_132, %c0_133] : memref<2x32x128xf32, #tpu.memory_space<vmem>>, vector<1x32x128xf32>
    %319 = vector.shape_cast %318 : vector<1x32x128xf32> to vector<32x128xf32>
    %cst_134 = arith.constant dense<0.000000e+00> : vector<24x128xf32>
    %320 = tpu.matmul %317, %319, %cst_134 {dimension_numbers = #tpu.dot_dimension_numbers<[1], [0], [0], [1], [0, 0, 1, 1], [], []>} : vector<24x32xf32>, vector<32x128xf32>, vector<24x128xf32> -> vector<24x128xf32>
    %c1_135 = arith.constant 1 : index
    %c0_136 = arith.constant 0 : index
    %c0_137 = arith.constant 0 : index
    %321 = vector.load %arg12[%c1_135, %c0_136, %c0_137] : memref<2x1x128xf32, #tpu.memory_space<vmem>>, vector<1x1x128xf32>
    %322 = vector.shape_cast %321 : vector<1x1x128xf32> to vector<1x128xf32>
    %323 = vector.broadcast %322 : vector<1x128xf32> to vector<24x128xf32>
    %324 = arith.addf %320, %323 : vector<24x128xf32>
    %cst_138 = arith.constant 5.000000e-01 : f32
    %325 = vector.broadcast %cst_138 : f32 to vector<24x128xf32>
    %326 = arith.mulf %325, %324 : vector<24x128xf32>
    %cst_139 = arith.constant 4.471500e-02 : f32
    %327 = vector.broadcast %cst_139 : f32 to vector<24x128xf32>
    %328 = arith.mulf %327, %324 : vector<24x128xf32>
    %329 = arith.mulf %328, %324 : vector<24x128xf32>
    %330 = arith.mulf %329, %324 : vector<24x128xf32>
    %331 = arith.addf %324, %330 : vector<24x128xf32>
    %cst_140 = arith.constant 0.797884583 : f32
    %332 = vector.broadcast %cst_140 : f32 to vector<24x128xf32>
    %333 = arith.mulf %332, %331 : vector<24x128xf32>
    %334 = math.tanh %333 : vector<24x128xf32>
    %cst_141 = arith.constant 1.000000e+00 : f32
    %335 = vector.broadcast %cst_141 : f32 to vector<24x128xf32>
    %336 = arith.addf %335, %334 : vector<24x128xf32>
    %337 = arith.mulf %326, %336 : vector<24x128xf32>
    %c1_142 = arith.constant 1 : index
    %c0_143 = arith.constant 0 : index
    %c0_144 = arith.constant 0 : index
    %338 = vector.load %arg13[%c1_142, %c0_143, %c0_144] : memref<2x128x32xf32, #tpu.memory_space<vmem>>, vector<1x128x32xf32>
    %339 = vector.shape_cast %338 : vector<1x128x32xf32> to vector<128x32xf32>
    %cst_145 = arith.constant dense<0.000000e+00> : vector<24x32xf32>
    %340 = tpu.matmul %337, %339, %cst_145 {dimension_numbers = #tpu.dot_dimension_numbers<[1], [0], [0], [1], [0, 0, 1, 1], [], []>} : vector<24x128xf32>, vector<128x32xf32>, vector<24x32xf32> -> vector<24x32xf32>
    %341 = arith.addf %293, %340 : vector<24x32xf32>
    %c1_146 = arith.constant 1 : index
    %c0_147 = arith.constant 0 : index
    %c0_148 = arith.constant 0 : index
    %342 = vector.load %arg14[%c1_146, %c0_147, %c0_148] : memref<2x1x32xf32, #tpu.memory_space<vmem>>, vector<1x1x32xf32>
    %343 = vector.shape_cast %342 : vector<1x1x32xf32> to vector<1x32xf32>
    %344 = vector.broadcast %343 : vector<1x32xf32> to vector<24x32xf32>
    %345 = arith.addf %341, %344 : vector<24x32xf32>
    %346 = vector.extract_strided_slice %345 {offsets = [0, 0], sizes = [1, 32], strides = [1, 1]} : vector<24x32xf32> to vector<1x32xf32>
    %c0_149 = arith.constant 0 : index
    %c0_150 = arith.constant 0 : index
    %347 = vector.load %arg15[%c0_149, %c0_150] : memref<1x32xf32, #tpu.memory_space<vmem>>, vector<1x32xf32>
    %c0_151 = arith.constant 0 : index
    %c0_152 = arith.constant 0 : index
    %348 = vector.load %arg16[%c0_151, %c0_152] : memref<1x32xf32, #tpu.memory_space<vmem>>, vector<1x32xf32>
    %cst_153 = arith.constant dense<0.000000e+00> : vector<1xf32>
    %349 = vector.multi_reduction <add>, %346, %cst_153 [1] : vector<1x32xf32> to vector<1xf32>
    %350 = vector.shape_cast %349 : vector<1xf32> to vector<1x1xf32>
    %cst_154 = arith.constant 3.200000e+01 : f32
    %351 = vector.broadcast %cst_154 : f32 to vector<1x1xf32>
    %352 = arith.divf %350, %351 : vector<1x1xf32>
    %353 = vector.broadcast %352 : vector<1x1xf32> to vector<1x32xf32>
    %354 = arith.subf %346, %353 : vector<1x32xf32>
    %355 = arith.mulf %354, %354 : vector<1x32xf32>
    %cst_155 = arith.constant dense<0.000000e+00> : vector<1xf32>
    %356 = vector.multi_reduction <add>, %355, %cst_155 [1] : vector<1x32xf32> to vector<1xf32>
    %357 = vector.shape_cast %356 : vector<1xf32> to vector<1x1xf32>
    %cst_156 = arith.constant 3.200000e+01 : f32
    %358 = vector.broadcast %cst_156 : f32 to vector<1x1xf32>
    %359 = arith.divf %357, %358 : vector<1x1xf32>
    %cst_157 = arith.constant 9.99999974E-6 : f32
    %360 = vector.broadcast %cst_157 : f32 to vector<1x1xf32>
    %361 = arith.addf %359, %360 : vector<1x1xf32>
    %362 = math.rsqrt %361 : vector<1x1xf32>
    %363 = vector.broadcast %362 : vector<1x1xf32> to vector<1x32xf32>
    %364 = arith.mulf %354, %363 : vector<1x32xf32>
    %365 = arith.mulf %364, %347 : vector<1x32xf32>
    %366 = arith.addf %365, %348 : vector<1x32xf32>
    %c0_158 = arith.constant 0 : index
    %c0_159 = arith.constant 0 : index
    %367 = vector.load %arg17[%c0_158, %c0_159] : memref<32x10xf32, #tpu.memory_space<vmem>>, vector<32x10xf32>
    %cst_160 = arith.constant dense<0.000000e+00> : vector<1x10xf32>
    %368 = tpu.matmul %366, %367, %cst_160 {dimension_numbers = #tpu.dot_dimension_numbers<[1], [0], [0], [1], [0, 0, 1, 1], [], []>} : vector<1x32xf32>, vector<32x10xf32>, vector<1x10xf32> -> vector<1x10xf32>
    %c0_161 = arith.constant 0 : index
    %c0_162 = arith.constant 0 : index
    %369 = vector.load %arg18[%c0_161, %c0_162] : memref<1x10xf32, #tpu.memory_space<vmem>>, vector<1x10xf32>
    %370 = arith.addf %368, %369 : vector<1x10xf32>
    %c0_163 = arith.constant 0 : index
    %c0_164 = arith.constant 0 : index
    %c0_165 = arith.constant 0 : index
    %371 = vector.load %arg19[%c0_163, %c0_164, %c0_165] : memref<1x1x10xf32, #tpu.memory_space<vmem>>, vector<1x1x10xf32>
    %372 = vector.shape_cast %371 : vector<1x1x10xf32> to vector<1x10xf32>
    %373 = vector.shape_cast %370 : vector<1x10xf32> to vector<1x1x10xf32>
    tpu.vector_store %arg19[%c0_163, %c0_164, %c0_165], %373 {strides = array<i32>} : memref<1x1x10xf32, #tpu.memory_space<vmem>>, vector<1x1x10xf32>,
    return
  }
  func.func @transform_0(%arg0: i32) -> (i32, i32, i32) {
    %c0_i32 = arith.constant 0 : i32
    %c0_i32_0 = arith.constant 0 : i32
    %c0_i32_1 = arith.constant 0 : i32
    return %arg0, %c0_i32, %c0_i32_0 : i32, i32, i32
  }
  func.func @transform_1(%arg0: i32) -> (i32, i32) {
    %c0_i32 = arith.constant 0 : i32
    %c0_i32_0 = arith.constant 0 : i32
    %c0_i32_1 = arith.constant 0 : i32
    return %c0_i32, %c0_i32_0 : i32, i32
  }
  func.func @transform_2(%arg0: i32) -> (i32, i32) {
    %c0_i32 = arith.constant 0 : i32
    %c0_i32_0 = arith.constant 0 : i32
    %c0_i32_1 = arith.constant 0 : i32
    return %c0_i32, %c0_i32_0 : i32, i32
  }
  func.func @transform_3(%arg0: i32) -> (i32, i32, i32) {
    %c0_i32 = arith.constant 0 : i32
    %c0_i32_0 = arith.constant 0 : i32
    %c0_i32_1 = arith.constant 0 : i32
    %c0_i32_2 = arith.constant 0 : i32
    return %c0_i32, %c0_i32_0, %c0_i32_1 : i32, i32, i32
  }
  func.func @transform_4(%arg0: i32) -> (i32, i32, i32) {
    %c0_i32 = arith.constant 0 : i32
    %c0_i32_0 = arith.constant 0 : i32
    %c0_i32_1 = arith.constant 0 : i32
    %c0_i32_2 = arith.constant 0 : i32
    return %c0_i32, %c0_i32_0, %c0_i32_1 : i32, i32, i32
  }
  func.func @transform_5(%arg0: i32) -> (i32, i32, i32) {
    %c0_i32 = arith.constant 0 : i32
    %c0_i32_0 = arith.constant 0 : i32
    %c0_i32_1 = arith.constant 0 : i32
    %c0_i32_2 = arith.constant 0 : i32
    return %c0_i32, %c0_i32_0, %c0_i32_1 : i32, i32, i32
  }
  func.func @transform_6(%arg0: i32) -> (i32, i32, i32) {
    %c0_i32 = arith.constant 0 : i32
    %c0_i32_0 = arith.constant 0 : i32
    %c0_i32_1 = arith.constant 0 : i32
    %c0_i32_2 = arith.constant 0 : i32
    return %c0_i32, %c0_i32_0, %c0_i32_1 : i32, i32, i32
  }
  func.func @transform_7(%arg0: i32) -> (i32, i32, i32) {
    %c0_i32 = arith.constant 0 : i32
    %c0_i32_0 = arith.constant 0 : i32
    %c0_i32_1 = arith.constant 0 : i32
    %c0_i32_2 = arith.constant 0 : i32
    return %c0_i32, %c0_i32_0, %c0_i32_1 : i32, i32, i32
  }
  func.func @transform_8(%arg0: i32) -> (i32, i32, i32) {
    %c0_i32 = arith.constant 0 : i32
    %c0_i32_0 = arith.constant 0 : i32
    %c0_i32_1 = arith.constant 0 : i32
    %c0_i32_2 = arith.constant 0 : i32
    return %c0_i32, %c0_i32_0, %c0_i32_1 : i32, i32, i32
  }
  func.func @transform_9(%arg0: i32) -> (i32, i32, i32) {
    %c0_i32 = arith.constant 0 : i32
    %c0_i32_0 = arith.constant 0 : i32
    %c0_i32_1 = arith.constant 0 : i32
    %c0_i32_2 = arith.constant 0 : i32
    return %c0_i32, %c0_i32_0, %c0_i32_1 : i32, i32, i32
  }
  func.func @transform_10(%arg0: i32) -> (i32, i32, i32) {
    %c0_i32 = arith.constant 0 : i32
    %c0_i32_0 = arith.constant 0 : i32
    %c0_i32_1 = arith.constant 0 : i32
    %c0_i32_2 = arith.constant 0 : i32
    return %c0_i32, %c0_i32_0, %c0_i32_1 : i32, i32, i32
  }
  func.func @transform_11(%arg0: i32) -> (i32, i32, i32) {
    %c0_i32 = arith.constant 0 : i32
    %c0_i32_0 = arith.constant 0 : i32
    %c0_i32_1 = arith.constant 0 : i32
    %c0_i32_2 = arith.constant 0 : i32
    return %c0_i32, %c0_i32_0, %c0_i32_1 : i32, i32, i32
  }
  func.func @transform_12(%arg0: i32) -> (i32, i32, i32) {
    %c0_i32 = arith.constant 0 : i32
    %c0_i32_0 = arith.constant 0 : i32
    %c0_i32_1 = arith.constant 0 : i32
    %c0_i32_2 = arith.constant 0 : i32
    return %c0_i32, %c0_i32_0, %c0_i32_1 : i32, i32, i32
  }
  func.func @transform_13(%arg0: i32) -> (i32, i32, i32) {
    %c0_i32 = arith.constant 0 : i32
    %c0_i32_0 = arith.constant 0 : i32
    %c0_i32_1 = arith.constant 0 : i32
    %c0_i32_2 = arith.constant 0 : i32
    return %c0_i32, %c0_i32_0, %c0_i32_1 : i32, i32, i32
  }
  func.func @transform_14(%arg0: i32) -> (i32, i32) {
    %c0_i32 = arith.constant 0 : i32
    %c0_i32_0 = arith.constant 0 : i32
    %c0_i32_1 = arith.constant 0 : i32
    return %c0_i32, %c0_i32_0 : i32, i32
  }
  func.func @transform_15(%arg0: i32) -> (i32, i32) {
    %c0_i32 = arith.constant 0 : i32
    %c0_i32_0 = arith.constant 0 : i32
    %c0_i32_1 = arith.constant 0 : i32
    return %c0_i32, %c0_i32_0 : i32, i32
  }
  func.func @transform_16(%arg0: i32) -> (i32, i32) {
    %c0_i32 = arith.constant 0 : i32
    %c0_i32_0 = arith.constant 0 : i32
    %c0_i32_1 = arith.constant 0 : i32
    return %c0_i32, %c0_i32_0 : i32, i32
  }
  func.func @transform_17(%arg0: i32) -> (i32, i32) {
    %c0_i32 = arith.constant 0 : i32
    %c0_i32_0 = arith.constant 0 : i32
    %c0_i32_1 = arith.constant 0 : i32
    return %c0_i32, %c0_i32_0 : i32, i32
  }
  func.func @transform_18(%arg0: i32) -> (i32, i32, i32) {
    %c0_i32 = arith.constant 0 : i32
    %c0_i32_0 = arith.constant 0 : i32
    %c0_i32_1 = arith.constant 0 : i32
    return %arg0, %c0_i32, %c0_i32_0 : i32, i32, i32
  }
}

</mosaic_0001>

<llo_original>
// kernel: deep_vit_forward.1
$region0: #{deep_vit_forward.1}
  #allocation0 [shape = 'u32[]', space=smem, size = 0x4, offset = 0x4, fixed_abs, tag = 'smem constant byte address 0x4 - core index']
  #allocation1 [shape = 'u32[72,128]{1,0:T(1,128)}', space=vmem, size = 0x9000, scoped, tag = 'internal scratch']
  %s0 = inlined_call_operand.vmem [shape: f32[2,24,48], index: 0, kind: input, shape index: {}]
  %s1 = inlined_call_operand.vmem [shape: f32[24,32], index: 1, kind: input, shape index: {}]
  %s2 = inlined_call_operand.vmem [shape: f32[48,32], index: 2, kind: input, shape index: {}]
  %s3 = inlined_call_operand.vmem [shape: f32[2,1,32], index: 3, kind: input, shape index: {}]
  %s4 = inlined_call_operand.vmem [shape: f32[2,1,32], index: 4, kind: input, shape index: {}]
  %s5 = inlined_call_operand.vmem [shape: f32[2,32,96], index: 5, kind: input, shape index: {}]
  %s6 = inlined_call_operand.vmem [shape: f32[2,32,32], index: 6, kind: input, shape index: {}]
  %s7 = inlined_call_operand.vmem [shape: f32[2,1,32], index: 7, kind: input, shape index: {}]
  %s8 = inlined_call_operand.vmem [shape: f32[2,1,32], index: 8, kind: input, shape index: {}]
  %s9 = inlined_call_operand.vmem [shape: f32[2,1,32], index: 9, kind: input, shape index: {}]
  %s10 = inlined_call_operand.vmem [shape: f32[2,32,128], index: 10, kind: input, shape index: {}]
  %s11 = inlined_call_operand.vmem [shape: f32[2,1,128], index: 11, kind: input, shape index: {}]
  %s12 = inlined_call_operand.vmem [shape: f32[2,128,32], index: 12, kind: input, shape index: {}]
  %s13 = inlined_call_operand.vmem [shape: f32[2,1,32], index: 13, kind: input, shape index: {}]
  %s14 = inlined_call_operand.vmem [shape: f32[1,32], index: 14, kind: input, shape index: {}]
  %s15 = inlined_call_operand.vmem [shape: f32[1,32], index: 15, kind: input, shape index: {}]
  %s16 = inlined_call_operand.vmem [shape: f32[32,10], index: 16, kind: input, shape index: {}]
  %s17 = inlined_call_operand.vmem [shape: f32[1,10], index: 17, kind: input, shape index: {}]
  %s18 = inlined_call_operand.hbm [shape: f32[2,1,10], index: 18, kind: output, shape index: {}]
  %s19 = sld [smem:[#allocation0]]
  $region105: #{deep_vit_forward.1} parent=0
    _
  %s21 = ssub.s32 1, %s19
  %s22 = scalar_select 0, %s21, %s19
  $region1: #{deep_vit_forward.1} parent=0
    #allocation2 [shape = 'u8[1024]{0}', space=vmem, size = 0x400, scoped, tag = 'output window, operand 0']
    #allocation3 [shape = 's32[2]{0}', space=sflag, size = 0x8, scoped, tag = 'scoped memory for deep_vit_forward.1']
    %23 = vsyncpa [#allocation3], 0
    %s24 = scalar_lea.sflag [#allocation3], 1
    %25 = vsyncpa %s24, 0
    loop: start=0, step=1, limit=4
    $region2: #{deep_vit_forward.1} parent=1 // loop_pre_header
      _
    $region3: #{deep_vit_forward.1} parent=1 // loop_header
      %s27 = sphi 0, %s31
      %p28 = scmp.ge.s32.totalorder %s27, 4
      %s37 = sphi 0, %s39
      %s40 = sphi 0, %s37
      %s41 = sphi 0, %s40
      %s57 = sphi 0, %s41
      %s61 = sphi 0, %s61
      %s63 = sphi 0, %s61
      %s64 = sphi 0, %s63
      %s78 = sphi 0, %s64
      %s82 = sphi 0, %s82
      %s84 = sphi 0, %s82
      %s85 = sphi 0, %s84
      %s99 = sphi 0, %s85
      %s103 = sphi 0, %s103
      %s105 = sphi 0, %s103
      %s106 = sphi 0, %s105
      %s120 = sphi 0, %s106
      %s124 = sphi 0, %s124
      %s126 = sphi 0, %s124
      %s127 = sphi 0, %s126
      %s141 = sphi 0, %s127
      %s145 = sphi 0, %s145
      %s147 = sphi 0, %s145
      %s148 = sphi 0, %s147
      %s162 = sphi 0, %s148
      %s166 = sphi 0, %s166
      %s168 = sphi 0, %s166
      %s169 = sphi 0, %s168
      %s183 = sphi 0, %s169
      %s187 = sphi 0, %s187
      %s189 = sphi 0, %s187
      %s190 = sphi 0, %s189
      %s204 = sphi 0, %s190
      %s208 = sphi 0, %s208
      %s210 = sphi 0, %s208
      %s211 = sphi 0, %s210
      %s225 = sphi 0, %s211
      %s229 = sphi 0, %s229
      %s231 = sphi 0, %s229
      %s232 = sphi 0, %s231
      %s246 = sphi 0, %s232
      %s250 = sphi 0, %s250
      %s252 = sphi 0, %s250
      %s253 = sphi 0, %s252
      %s267 = sphi 0, %s253
      %s271 = sphi 0, %s271
      %s273 = sphi 0, %s271
      %s274 = sphi 0, %s273
      %s288 = sphi 0, %s274
      %s292 = sphi 0, %s292
      %s294 = sphi 0, %s292
      %s295 = sphi 0, %s294
      %s309 = sphi 0, %s295
      %s313 = sphi 0, %s313
      %s315 = sphi 0, %s313
      %s316 = sphi 0, %s315
      %s330 = sphi 0, %s316
      %s334 = sphi 0, %s334
      %s336 = sphi 0, %s334
      %s337 = sphi 0, %s336
      %s351 = sphi 0, %s337
      %s355 = sphi 0, %s355
      %s357 = sphi 0, %s355
      %s358 = sphi 0, %s357
      %s372 = sphi 0, %s358
      %s376 = sphi 0, %s376
      %s378 = sphi 0, %s376
      %s379 = sphi 0, %s378
      %s393 = sphi 0, %s379
      %s397 = sphi 0, %s397
      %s399 = sphi 0, %s397
      %s400 = sphi 0, %s399
      %s414 = sphi 0, %s400
      %s420 = sphi 0, %s422
      %s423 = sphi 0, %s420
      %s424 = sphi 0, %s423
      %s440 = sphi 0, %s424
    $region4: #{deep_vit_forward.1} parent=1 // loop_header_branch
      %30 = sbr.rel (%p28) target = $region8
    $region5: #{deep_vit_forward.1} parent=1 // loop_body
      %s32 = ssub.s32 %s27, 1
      %s33 = ssub.s32 %s27, 2
      %s34 = sadd.s32 %s27, 1
      %s35 = ssub.s32 %s27, %s34
      %p36 = scmp.eq.s32.totalorder %s35, 0
      %s38 = sadd.s32 %s37, 1
      %s39 = scalar_select %p36, %s37, %s38
      %p42 = pneg %p36
      %p43 = scmp.eq.s32.totalorder %s27, 1
      %p44 = por %p42, %p43
      %p45 = scmp.ne.s32.totalorder %s37, %s40
      %p46 = scmp.eq.s32.totalorder %s27, 0
      %p47 = por %p45, %p46
      %p48 = scmp.ne.s32.totalorder %s37, %s40
      %p49 = scmp.eq.s32.totalorder %s32, 1
      %p50 = por %p48, %p49
      %p51 = scmp.ne.s32.totalorder %s40, %s41
      %p52 = scmp.eq.s32.totalorder %s32, 0
      %p53 = por %p51, %p52
      %p54 = scmp.ne.s32.totalorder %s40, %s41
      %p55 = scmp.eq.s32.totalorder %s33, 1
      %p56 = por %p54, %p55
      %p58 = scmp.ne.s32.totalorder %s41, %s57
      %p59 = scmp.eq.s32.totalorder %s33, 0
      %p60 = por %p58, %p59
      %s62 = sadd.s32 %s61, 1
      %p65 = scmp.eq.s32.totalorder %s27, 1
      %p66 = scmp.ne.s32.totalorder %s61, %s63
      %p67 = scmp.eq.s32.totalorder %s27, 0
      %p68 = por %p66, %p67
      %p69 = scmp.ne.s32.totalorder %s61, %s63
      %p70 = scmp.eq.s32.totalorder %s32, 1
      %p71 = por %p69, %p70
      %p72 = scmp.ne.s32.totalorder %s63, %s64
      %p73 = scmp.eq.s32.totalorder %s32, 0
      %p74 = por %p72, %p73
      %p75 = scmp.ne.s32.totalorder %s63, %s64
      %p76 = scmp.eq.s32.totalorder %s33, 1
      %p77 = por %p75, %p76
      %p79 = scmp.ne.s32.totalorder %s64, %s78
      %p80 = scmp.eq.s32.totalorder %s33, 0
      %p81 = por %p79, %p80
      %s83 = sadd.s32 %s82, 1
      %p86 = scmp.eq.s32.totalorder %s27, 1
      %p87 = scmp.ne.s32.totalorder %s82, %s84
      %p88 = scmp.eq.s32.totalorder %s27, 0
      %p89 = por %p87, %p88
      %p90 = scmp.ne.s32.totalorder %s82, %s84
      %p91 = scmp.eq.s32.totalorder %s32, 1
      %p92 = por %p90, %p91
      %p93 = scmp.ne.s32.totalorder %s84, %s85
      %p94 = scmp.eq.s32.totalorder %s32, 0
      %p95 = por %p93, %p94
      %p96 = scmp.ne.s32.totalorder %s84, %s85
      %p97 = scmp.eq.s32.totalorder %s33, 1
      %p98 = por %p96, %p97
      %p100 = scmp.ne.s32.totalorder %s85, %s99
      %p101 = scmp.eq.s32.totalorder %s33, 0
      %p102 = por %p100, %p101
      %s104 = sadd.s32 %s103, 1
      %p107 = scmp.eq.s32.totalorder %s27, 1
      %p108 = scmp.ne.s32.totalorder %s103, %s105
      %p109 = scmp.eq.s32.totalorder %s27, 0
      %p110 = por %p108, %p109
      %p111 = scmp.ne.s32.totalorder %s103, %s105
      %p112 = scmp.eq.s32.totalorder %s32, 1
      %p113 = por %p111, %p112
      %p114 = scmp.ne.s32.totalorder %s105, %s106
      %p115 = scmp.eq.s32.totalorder %s32, 0
      %p116 = por %p114, %p115
      %p117 = scmp.ne.s32.totalorder %s105, %s106
      %p118 = scmp.eq.s32.totalorder %s33, 1
      %p119 = por %p117, %p118
      %p121 = scmp.ne.s32.totalorder %s106, %s120
      %p122 = scmp.eq.s32.totalorder %s33, 0
      %p123 = por %p121, %p122
      %s125 = sadd.s32 %s124, 1
      %p128 = scmp.eq.s32.totalorder %s27, 1
      %p129 = scmp.ne.s32.totalorder %s124, %s126
      %p130 = scmp.eq.s32.totalorder %s27, 0
      %p131 = por %p129, %p130
      %p132 = scmp.ne.s32.totalorder %s124, %s126
      %p133 = scmp.eq.s32.totalorder %s32, 1
      %p134 = por %p132, %p133
      %p135 = scmp.ne.s32.totalorder %s126, %s127
      %p136 = scmp.eq.s32.totalorder %s32, 0
      %p137 = por %p135, %p136
      %p138 = scmp.ne.s32.totalorder %s126, %s127
      %p139 = scmp.eq.s32.totalorder %s33, 1
      %p140 = por %p138, %p139
      %p142 = scmp.ne.s32.totalorder %s127, %s141
      %p143 = scmp.eq.s32.totalorder %s33, 0
      %p144 = por %p142, %p143
      %s146 = sadd.s32 %s145, 1
      %p149 = scmp.eq.s32.totalorder %s27, 1
      %p150 = scmp.ne.s32.totalorder %s145, %s147
      %p151 = scmp.eq.s32.totalorder %s27, 0
      %p152 = por %p150, %p151
      %p153 = scmp.ne.s32.totalorder %s145, %s147
      %p154 = scmp.eq.s32.totalorder %s32, 1
      %p155 = por %p153, %p154
      %p156 = scmp.ne.s32.totalorder %s147, %s148
      %p157 = scmp.eq.s32.totalorder %s32, 0
      %p158 = por %p156, %p157
      %p159 = scmp.ne.s32.totalorder %s147, %s148
      %p160 = scmp.eq.s32.totalorder %s33, 1
      %p161 = por %p159, %p160
      %p163 = scmp.ne.s32.totalorder %s148, %s162
      %p164 = scmp.eq.s32.totalorder %s33, 0
      %p165 = por %p163, %p164
      %s167 = sadd.s32 %s166, 1
      %p170 = scmp.eq.s32.totalorder %s27, 1
      %p171 = scmp.ne.s32.totalorder %s166, %s168
      %p172 = scmp.eq.s32.totalorder %s27, 0
      %p173 = por %p171, %p172
      %p174 = scmp.ne.s32.totalorder %s166, %s168
      %p175 = scmp.eq.s32.totalorder %s32, 1
      %p176 = por %p174, %p175
      %p177 = scmp.ne.s32.totalorder %s168, %s169
      %p178 = scmp.eq.s32.totalorder %s32, 0
      %p179 = por %p177, %p178
      %p180 = scmp.ne.s32.totalorder %s168, %s169
      %p181 = scmp.eq.s32.totalorder %s33, 1
      %p182 = por %p180, %p181
      %p184 = scmp.ne.s32.totalorder %s169, %s183
      %p185 = scmp.eq.s32.totalorder %s33, 0
      %p186 = por %p184, %p185
      %s188 = sadd.s32 %s187, 1
      %p191 = scmp.eq.s32.totalorder %s27, 1
      %p192 = scmp.ne.s32.totalorder %s187, %s189
      %p193 = scmp.eq.s32.totalorder %s27, 0
      %p194 = por %p192, %p193
      %p195 = scmp.ne.s32.totalorder %s187, %s189
      %p196 = scmp.eq.s32.totalorder %s32, 1
      %p197 = por %p195, %p196
      %p198 = scmp.ne.s32.totalorder %s189, %s190
      %p199 = scmp.eq.s32.totalorder %s32, 0
      %p200 = por %p198, %p199
      %p201 = scmp.ne.s32.totalorder %s189, %s190
      %p202 = scmp.eq.s32.totalorder %s33, 1
      %p203 = por %p201, %p202
      %p205 = scmp.ne.s32.totalorder %s190, %s204
      %p206 = scmp.eq.s32.totalorder %s33, 0
      %p207 = por %p205, %p206
      %s209 = sadd.s32 %s208, 1
      %p212 = scmp.eq.s32.totalorder %s27, 1
      %p213 = scmp.ne.s32.totalorder %s208, %s210
      %p214 = scmp.eq.s32.totalorder %s27, 0
      %p215 = por %p213, %p214
      %p216 = scmp.ne.s32.totalorder %s208, %s210
      %p217 = scmp.eq.s32.totalorder %s32, 1
      %p218 = por %p216, %p217
      %p219 = scmp.ne.s32.totalorder %s210, %s211
      %p220 = scmp.eq.s32.totalorder %s32, 0
      %p221 = por %p219, %p220
      %p222 = scmp.ne.s32.totalorder %s210, %s211
      %p223 = scmp.eq.s32.totalorder %s33, 1
      %p224 = por %p222, %p223
      %p226 = scmp.ne.s32.totalorder %s211, %s225
      %p227 = scmp.eq.s32.totalorder %s33, 0
      %p228 = por %p226, %p227
      %s230 = sadd.s32 %s229, 1
      %p233 = scmp.eq.s32.totalorder %s27, 1
      %p234 = scmp.ne.s32.totalorder %s229, %s231
      %p235 = scmp.eq.s32.totalorder %s27, 0
      %p236 = por %p234, %p235
      %p237 = scmp.ne.s32.totalorder %s229, %s231
      %p238 = scmp.eq.s32.totalorder %s32, 1
      %p239 = por %p237, %p238
      %p240 = scmp.ne.s32.totalorder %s231, %s232
      %p241 = scmp.eq.s32.totalorder %s32, 0
      %p242 = por %p240, %p241
      %p243 = scmp.ne.s32.totalorder %s231, %s232
      %p244 = scmp.eq.s32.totalorder %s33, 1
      %p245 = por %p243, %p244
      %p247 = scmp.ne.s32.totalorder %s232, %s246
      %p248 = scmp.eq.s32.totalorder %s33, 0
      %p249 = por %p247, %p248
      %s251 = sadd.s32 %s250, 1
      %p254 = scmp.eq.s32.totalorder %s27, 1
      %p255 = scmp.ne.s32.totalorder %s250, %s252
      %p256 = scmp.eq.s32.totalorder %s27, 0
      %p257 = por %p255, %p256
      %p258 = scmp.ne.s32.totalorder %s250, %s252
      %p259 = scmp.eq.s32.totalorder %s32, 1
      %p260 = por %p258, %p259
      %p261 = scmp.ne.s32.totalorder %s252, %s253
      %p262 = scmp.eq.s32.totalorder %s32, 0
      %p263 = por %p261, %p262
      %p264 = scmp.ne.s32.totalorder %s252, %s253
      %p265 = scmp.eq.s32.totalorder %s33, 1
      %p266 = por %p264, %p265
      %p268 = scmp.ne.s32.totalorder %s253, %s267
      %p269 = scmp.eq.s32.totalorder %s33, 0
      %p270 = por %p268, %p269
      %s272 = sadd.s32 %s271, 1
      %p275 = scmp.eq.s32.totalorder %s27, 1
      %p276 = scmp.ne.s32.totalorder %s271, %s273
      %p277 = scmp.eq.s32.totalorder %s27, 0
      %p278 = por %p276, %p277
      %p279 = scmp.ne.s32.totalorder %s271, %s273
      %p280 = scmp.eq.s32.totalorder %s32, 1
      %p281 = por %p279, %p280
      %p282 = scmp.ne.s32.totalorder %s273, %s274
      %p283 = scmp.eq.s32.totalorder %s32, 0
      %p284 = por %p282, %p283
      %p285 = scmp.ne.s32.totalorder %s273, %s274
      %p286 = scmp.eq.s32.totalorder %s33, 1
      %p287 = por %p285, %p286
      %p289 = scmp.ne.s32.totalorder %s274, %s288
      %p290 = scmp.eq.s32.totalorder %s33, 0
      %p291 = por %p289, %p290
      %s293 = sadd.s32 %s292, 1
      %p296 = scmp.eq.s32.totalorder %s27, 1
      %p297 = scmp.ne.s32.totalorder %s292, %s294
      %p298 = scmp.eq.s32.totalorder %s27, 0
      %p299 = por %p297, %p298
      %p300 = scmp.ne.s32.totalorder %s292, %s294
      %p301 = scmp.eq.s32.totalorder %s32, 1
      %p302 = por %p300, %p301
      %p303 = scmp.ne.s32.totalorder %s294, %s295
      %p304 = scmp.eq.s32.totalorder %s32, 0
      %p305 = por %p303, %p304
      %p306 = scmp.ne.s32.totalorder %s294, %s295
      %p307 = scmp.eq.s32.totalorder %s33, 1
      %p308 = por %p306, %p307
      %p310 = scmp.ne.s32.totalorder %s295, %s309
      %p311 = scmp.eq.s32.totalorder %s33, 0
      %p312 = por %p310, %p311
      %s314 = sadd.s32 %s313, 1
      %p317 = scmp.eq.s32.totalorder %s27, 1
      %p318 = scmp.ne.s32.totalorder %s313, %s315
      %p319 = scmp.eq.s32.totalorder %s27, 0
      %p320 = por %p318, %p319
      %p321 = scmp.ne.s32.totalorder %s313, %s315
      %p322 = scmp.eq.s32.totalorder %s32, 1
      %p323 = por %p321, %p322
      %p324 = scmp.ne.s32.totalorder %s315, %s316
      %p325 = scmp.eq.s32.totalorder %s32, 0
      %p326 = por %p324, %p325
      %p327 = scmp.ne.s32.totalorder %s315, %s316
      %p328 = scmp.eq.s32.totalorder %s33, 1
      %p329 = por %p327, %p328
      %p331 = scmp.ne.s32.totalorder %s316, %s330
      %p332 = scmp.eq.s32.totalorder %s33, 0
      %p333 = por %p331, %p332
      %s335 = sadd.s32 %s334, 1
      %p338 = scmp.eq.s32.totalorder %s27, 1
      %p339 = scmp.ne.s32.totalorder %s334, %s336
      %p340 = scmp.eq.s32.totalorder %s27, 0
      %p341 = por %p339, %p340
      %p342 = scmp.ne.s32.totalorder %s334, %s336
      %p343 = scmp.eq.s32.totalorder %s32, 1
      %p344 = por %p342, %p343
      %p345 = scmp.ne.s32.totalorder %s336, %s337
      %p346 = scmp.eq.s32.totalorder %s32, 0
      %p347 = por %p345, %p346
      %p348 = scmp.ne.s32.totalorder %s336, %s337
      %p349 = scmp.eq.s32.totalorder %s33, 1
      %p350 = por %p348, %p349
      %p352 = scmp.ne.s32.totalorder %s337, %s351
      %p353 = scmp.eq.s32.totalorder %s33, 0
      %p354 = por %p352, %p353
      %s356 = sadd.s32 %s355, 1
      %p359 = scmp.eq.s32.totalorder %s27, 1
      %p360 = scmp.ne.s32.totalorder %s355, %s357
      %p361 = scmp.eq.s32.totalorder %s27, 0
      %p362 = por %p360, %p361
      %p363 = scmp.ne.s32.totalorder %s355, %s357
      %p364 = scmp.eq.s32.totalorder %s32, 1
      %p365 = por %p363, %p364
      %p366 = scmp.ne.s32.totalorder %s357, %s358
      %p367 = scmp.eq.s32.totalorder %s32, 0
      %p368 = por %p366, %p367
      %p369 = scmp.ne.s32.totalorder %s357, %s358
      %p370 = scmp.eq.s32.totalorder %s33, 1
      %p371 = por %p369, %p370
      %p373 = scmp.ne.s32.totalorder %s358, %s372
      %p374 = scmp.eq.s32.totalorder %s33, 0
      %p375 = por %p373, %p374
      %s377 = sadd.s32 %s376, 1
      %p380 = scmp.eq.s32.totalorder %s27, 1
      %p381 = scmp.ne.s32.totalorder %s376, %s378
      %p382 = scmp.eq.s32.totalorder %s27, 0
      %p383 = por %p381, %p382
      %p384 = scmp.ne.s32.totalorder %s376, %s378
      %p385 = scmp.eq.s32.totalorder %s32, 1
      %p386 = por %p384, %p385
      %p387 = scmp.ne.s32.totalorder %s378, %s379
      %p388 = scmp.eq.s32.totalorder %s32, 0
      %p389 = por %p387, %p388
      %p390 = scmp.ne.s32.totalorder %s378, %s379
      %p391 = scmp.eq.s32.totalorder %s33, 1
      %p392 = por %p390, %p391
      %p394 = scmp.ne.s32.totalorder %s379, %s393
      %p395 = scmp.eq.s32.totalorder %s33, 0
      %p396 = por %p394, %p395
      %s398 = sadd.s32 %s397, 1
      %p401 = scmp.eq.s32.totalorder %s27, 1
      %p402 = scmp.ne.s32.totalorder %s397, %s399
      %p403 = scmp.eq.s32.totalorder %s27, 0
      %p404 = por %p402, %p403
      %p405 = scmp.ne.s32.totalorder %s397, %s399
      %p406 = scmp.eq.s32.totalorder %s32, 1
      %p407 = por %p405, %p406
      %p408 = scmp.ne.s32.totalorder %s399, %s400
      %p409 = scmp.eq.s32.totalorder %s32, 0
      %p410 = por %p408, %p409
      %p411 = scmp.ne.s32.totalorder %s399, %s400
      %p412 = scmp.eq.s32.totalorder %s33, 1
      %p413 = por %p411, %p412
      %p415 = scmp.ne.s32.totalorder %s400, %s414
      %p416 = scmp.eq.s32.totalorder %s33, 0
      %p417 = por %p415, %p416
      %s418 = ssub.s32 %s27, %s34
      %p419 = scmp.eq.s32.totalorder %s418, 0
      %s421 = sadd.s32 %s420, 1
      %s422 = scalar_select %p419, %s420, %s421
      %p425 = pneg %p419
      %p426 = scmp.eq.s32.totalorder %s27, 1
      %p427 = por %p425, %p426
      %p428 = scmp.ne.s32.totalorder %s420, %s423
      %p429 = scmp.eq.s32.totalorder %s27, 0
      %p430 = por %p428, %p429
      %p431 = scmp.ne.s32.totalorder %s420, %s423
      %p432 = scmp.eq.s32.totalorder %s32, 1
      %p433 = por %p431, %p432
      %p434 = scmp.ne.s32.totalorder %s423, %s424
      %p435 = scmp.eq.s32.totalorder %s32, 0
      %p436 = por %p434, %p435
      %p437 = scmp.ne.s32.totalorder %s423, %s424
      %p438 = scmp.eq.s32.totalorder %s33, 1
      %p439 = por %p437, %p438
      %p441 = scmp.ne.s32.totalorder %s424, %s440
      %p442 = scmp.eq.s32.totalorder %s33, 0
      %p443 = por %p441, %p442
      %p444 = scmp.le.s32.totalorder 1, %s27
      %p445 = scmp.lt.s32.totalorder %s27, 3
      %p446 = pnand %p444, %p445
      %p447 = pneg %p446
      // Predicated region
      $region9: #{deep_vit_forward.1} parent=5 // pred_check
        _
      $region10: #{deep_vit_forward.1} parent=5 // pred_check_branch
        %449 = sbr.rel (%p446) target = $region12
      $region11: #{deep_vit_forward.1} parent=5 // pred_region
        %s450 = ssub.s32 %s27, 1
        // Predicated region
        $region13: #{deep_vit_forward.1} parent=11 // pred_check
          %p451 = pneg %p74
        $region14: #{deep_vit_forward.1} parent=11 // pred_check_branch
          %453 = sbr.rel (%p451) target = $region16
        $region15: #{deep_vit_forward.1} parent=11 // pred_region
          _
        $region16: #{deep_vit_forward.1} parent=11 // pred_fallthru
          _
        // Predicated region
        $region17: #{deep_vit_forward.1} parent=11 // pred_check
          %p454 = pneg %p95
        $region18: #{deep_vit_forward.1} parent=11 // pred_check_branch
          %456 = sbr.rel (%p454) target = $region20
        $region19: #{deep_vit_forward.1} parent=11 // pred_region
          _
        $region20: #{deep_vit_forward.1} parent=11 // pred_fallthru
          _
        // Predicated region
        $region21: #{deep_vit_forward.1} parent=11 // pred_check
          %p457 = pneg %p116
        $region22: #{deep_vit_forward.1} parent=11 // pred_check_branch
          %459 = sbr.rel (%p457) target = $region24
        $region23: #{deep_vit_forward.1} parent=11 // pred_region
          _
        $region24: #{deep_vit_forward.1} parent=11 // pred_fallthru
          _
        // Predicated region
        $region25: #{deep_vit_forward.1} parent=11 // pred_check
          %p460 = pneg %p137
        $region26: #{deep_vit_forward.1} parent=11 // pred_check_branch
          %462 = sbr.rel (%p460) target = $region28
        $region27: #{deep_vit_forward.1} parent=11 // pred_region
          _
        $region28: #{deep_vit_forward.1} parent=11 // pred_fallthru
          _
        // Predicated region
        $region29: #{deep_vit_forward.1} parent=11 // pred_check
          %p463 = pneg %p158
        $region30: #{deep_vit_forward.1} parent=11 // pred_check_branch
          %465 = sbr.rel (%p463) target = $region32
        $region31: #{deep_vit_forward.1} parent=11 // pred_region
          _
        $region32: #{deep_vit_forward.1} parent=11 // pred_fallthru
          _
        // Predicated region
        $region33: #{deep_vit_forward.1} parent=11 // pred_check
          %p466 = pneg %p179
        $region34: #{deep_vit_forward.1} parent=11 // pred_check_branch
          %468 = sbr.rel (%p466) target = $region36
        $region35: #{deep_vit_forward.1} parent=11 // pred_region
          _
        $region36: #{deep_vit_forward.1} parent=11 // pred_fallthru
          _
        // Predicated region
        $region37: #{deep_vit_forward.1} parent=11 // pred_check
          %p469 = pneg %p200
        $region38: #{deep_vit_forward.1} parent=11 // pred_check_branch
          %471 = sbr.rel (%p469) target = $region40
        $region39: #{deep_vit_forward.1} parent=11 // pred_region
          _
        $region40: #{deep_vit_forward.1} parent=11 // pred_fallthru
          _
        // Predicated region
        $region41: #{deep_vit_forward.1} parent=11 // pred_check
          %p472 = pneg %p221
        $region42: #{deep_vit_forward.1} parent=11 // pred_check_branch
          %474 = sbr.rel (%p472) target = $region44
        $region43: #{deep_vit_forward.1} parent=11 // pred_region
          _
        $region44: #{deep_vit_forward.1} parent=11 // pred_fallthru
          _
        // Predicated region
        $region45: #{deep_vit_forward.1} parent=11 // pred_check
          %p475 = pneg %p242
        $region46: #{deep_vit_forward.1} parent=11 // pred_check_branch
          %477 = sbr.rel (%p475) target = $region48
        $region47: #{deep_vit_forward.1} parent=11 // pred_region
          _
        $region48: #{deep_vit_forward.1} parent=11 // pred_fallthru
          _
        // Predicated region
        $region49: #{deep_vit_forward.1} parent=11 // pred_check
          %p478 = pneg %p263
        $region50: #{deep_vit_forward.1} parent=11 // pred_check_branch
          %480 = sbr.rel (%p478) target = $region52
        $region51: #{deep_vit_forward.1} parent=11 // pred_region
          _
        $region52: #{deep_vit_forward.1} parent=11 // pred_fallthru
          _
        // Predicated region
        $region53: #{deep_vit_forward.1} parent=11 // pred_check
          %p481 = pneg %p284
        $region54: #{deep_vit_forward.1} parent=11 // pred_check_branch
          %483 = sbr.rel (%p481) target = $region56
        $region55: #{deep_vit_forward.1} parent=11 // pred_region
          _
        $region56: #{deep_vit_forward.1} parent=11 // pred_fallthru
          _
        // Predicated region
        $region57: #{deep_vit_forward.1} parent=11 // pred_check
          %p484 = pneg %p305
        $region58: #{deep_vit_forward.1} parent=11 // pred_check_branch
          %486 = sbr.rel (%p484) target = $region60
        $region59: #{deep_vit_forward.1} parent=11 // pred_region
          _
        $region60: #{deep_vit_forward.1} parent=11 // pred_fallthru
          _
        // Predicated region
        $region61: #{deep_vit_forward.1} parent=11 // pred_check
          %p487 = pneg %p326
        $region62: #{deep_vit_forward.1} parent=11 // pred_check_branch
          %489 = sbr.rel (%p487) target = $region64
        $region63: #{deep_vit_forward.1} parent=11 // pred_region
          _
        $region64: #{deep_vit_forward.1} parent=11 // pred_fallthru
          _
        // Predicated region
        $region65: #{deep_vit_forward.1} parent=11 // pred_check
          %p490 = pneg %p347
        $region66: #{deep_vit_forward.1} parent=11 // pred_check_branch
          %492 = sbr.rel (%p490) target = $region68
        $region67: #{deep_vit_forward.1} parent=11 // pred_region
          _
        $region68: #{deep_vit_forward.1} parent=11 // pred_fallthru
          _
        // Predicated region
        $region69: #{deep_vit_forward.1} parent=11 // pred_check
          %p493 = pneg %p368
        $region70: #{deep_vit_forward.1} parent=11 // pred_check_branch
          %495 = sbr.rel (%p493) target = $region72
        $region71: #{deep_vit_forward.1} parent=11 // pred_region
          _
        $region72: #{deep_vit_forward.1} parent=11 // pred_fallthru
          _
        // Predicated region
        $region73: #{deep_vit_forward.1} parent=11 // pred_check
          %p496 = pneg %p389
        $region74: #{deep_vit_forward.1} parent=11 // pred_check_branch
          %498 = sbr.rel (%p496) target = $region76
        $region75: #{deep_vit_forward.1} parent=11 // pred_region
          _
        $region76: #{deep_vit_forward.1} parent=11 // pred_fallthru
          _
        // Predicated region
        $region77: #{deep_vit_forward.1} parent=11 // pred_check
          %p499 = pneg %p410
        $region78: #{deep_vit_forward.1} parent=11 // pred_check_branch
          %501 = sbr.rel (%p499) target = $region80
        $region79: #{deep_vit_forward.1} parent=11 // pred_region
          _
        $region80: #{deep_vit_forward.1} parent=11 // pred_fallthru
          _
      $region12: #{deep_vit_forward.1} parent=5 // pred_fallthru
        _
      %p502 = scmp.lt.s32.totalorder %s27, 2
      // Predicated region
      $region81: #{deep_vit_forward.1} parent=5 // pred_check
        %p503 = pneg %p502
      $region82: #{deep_vit_forward.1} parent=5 // pred_check_branch
        %505 = sbr.rel (%p503) target = $region84
      $region83: #{deep_vit_forward.1} parent=5 // pred_region
        // Predicated region
        $region85: #{deep_vit_forward.1} parent=83 // pred_check
          %p506 = pneg %p47
        $region86: #{deep_vit_forward.1} parent=83 // pred_check_branch
          %508 = sbr.rel (%p506) target = $region88
        $region87: #{deep_vit_forward.1} parent=83 // pred_region
          %p509 = scmp.lt.s32.totalorder %s27, 1
          %s510 = scalar_select %p509, %s27, 1
          %s511 = smul.addr %s510, 3
          %s512 = smul.addr %s511, 8
          %s513 = scalar_lea.vmem %s0, %s512
        $region88: #{deep_vit_forward.1} parent=83 // pred_fallthru
          _
      $region84: #{deep_vit_forward.1} parent=5 // pred_fallthru
        _
      %p514 = scmp.le.s32.totalorder 1, %s27
      %p515 = scmp.lt.s32.totalorder %s27, 3
      %p516 = pnand %p514, %p515
      %p517 = pneg %p516
      // Predicated region
      $region89: #{deep_vit_forward.1} parent=5 // pred_check
        _
      $region90: #{deep_vit_forward.1} parent=5 // pred_check_branch
        %519 = sbr.rel (%p516) target = $region92
      $region91: #{deep_vit_forward.1} parent=5 // pred_region
        %s520 = ssub.s32 %s27, 1
        %p521 = scmp.lt.s32.totalorder %s32, 1
        %s522 = scalar_select %p521, %s32, 1
        %s523 = smul.addr %s522, 3
        %s524 = smul.addr %s523, 8
        %s525 = scalar_lea.vmem %s0, %s524
        %p526 = pneg %p53
        %p527 = pneg %p50
        %p528 = pneg %p74
        %p529 = pneg %p71
        %p530 = pneg %p95
        %p531 = pneg %p92
        %p532 = pneg %p116
        %p533 = pneg %p113
        %p534 = pneg %p137
        %p535 = pneg %p134
        %p536 = pneg %p158
        %p537 = pneg %p155
        %p538 = pneg %p179
        %p539 = pneg %p176
        %p540 = pneg %p200
        %p541 = pneg %p197
        %p542 = pneg %p221
        %p543 = pneg %p218
        %p544 = pneg %p242
        %p545 = pneg %p239
        %p546 = pneg %p263
        %p547 = pneg %p260
        %p548 = pneg %p284
        %p549 = pneg %p281
        %p550 = pneg %p305
        %p551 = pneg %p302
        %p552 = pneg %p326
        %p553 = pneg %p323
        %p554 = pneg %p347
        %p555 = pneg %p344
        %p556 = pneg %p368
        %p557 = pneg %p365
        %p558 = pneg %p389
        %p559 = pneg %p386
        %p560 = pneg %p410
        %p561 = pneg %p407
        %p562 = pneg %p436
        %p563 = pneg %p433
        %s564 = sand.u32 %s423, 1
        %s565 = scalar_lea.sflag [#allocation3], %s564
        %s566 = sand.u32 %s423, 1
        %s567 = scalar_lea.vmem [#allocation2], %s566
        %p568 = scmp.lt.s32.totalorder %s32, 1
        %s569 = scalar_select %p568, %s32, 1
        %s570 = smul.addr %s569, 3
        %s571 = smul.addr %s570, 8
        %s572 = scalar_lea.vmem %s0, %s571
        %v573 = vld [vmem:[%s572] sm:$0xff]
        %v574 = vld [vmem:[%s572 + $0x8] sm:$0xff]
        %v575 = vld [vmem:[%s572 + $0x10] sm:$0xff]
        %v576 = vld [vmem:[%s2] sm:$0xff]
        %v577 = vld [vmem:[%s2 + $0x8] sm:$0xff]
        %v578 = vld [vmem:[%s2 + $0x10] sm:$0xff]
        %v579 = vld [vmem:[%s2 + $0x18] sm:$0xff]
        %v580 = vld [vmem:[%s2 + $0x20] sm:$0xff]
        %v581 = vld [vmem:[%s2 + $0x28] sm:$0xff]
        %v582 = vld [vmem:[%s1] sm:$0xff]
        %v583 = vld [vmem:[%s1 + $0x8] sm:$0xff]
        %v584 = vld [vmem:[%s1 + $0x10] sm:$0xff]
        %vm585 = vcmask 392192
        %v587 = vsel %vm585, %v573, 0
        %v590 = vsel %vm585, %v574, 0
        %v593 = vsel %vm585, %v575, 0
        %595 = vmatpush.msra.mxu0 0.0
        %596 = vmatpush.msra.mxu0 0.0
        %597 = vmatpush.msra.mxu0 0.0
        %598 = vmatpush.msra.mxu0 0.0
        %599 = vmatpush.msra.mxu0 0.0
        %600 = vmatpush.msra.mxu0 0.0
        %601 = vmatpush.msra.mxu0 0.0
        %602 = vmatpush.msra.mxu0 0.0
        %603 = vmatpush.msra.mxu0 0.0
        %604 = vmatpush.msra.mxu0 0.0
        %605 = vmatpush.msra.mxu0 %v581
        %606 = vmatpush.msra.mxu0 %v580
        %607 = vmatpush.msra.mxu0 %v579
        %608 = vmatpush.msra.mxu0 %v578
        %609 = vmatpush.msra.mxu0 %v577
        %610 = vmatpush.msra.mxu0 %v576
        %611 = vmatmul.f32.gmra.mxu0 %v587
        %v612 = vpop.f32.mrf.mxu0
        %v613 = vadd.f32 %v582, %v612
        %614 = vmatmul.f32.gmra.mxu0 %v590
        %v615 = vpop.f32.mrf.mxu0
        %v616 = vadd.f32 %v583, %v615
        %617 = vmatmul.f32.gmra.mxu0 %v593
        %v618 = vpop.f32.mrf.mxu0
        %v619 = vadd.f32 %v584, %v618
        %620 = vdwg.mxu0
        %v621 = vlaneseq
        %v622 = vand.u32 %v621, 127
        %vm623 = vcmp.lt.s32.totalorder %v622, 17
        %v624 = vsel %vm623, 0.0, -1e+30
        %v625 = vld [vmem:[%s3] sm:$0x1]
        %v626 = vld [vmem:[%s4] sm:$0x1]
        %vm627 = vcmask 261120
        %v628 = vsel %vm627, %v613, 0.0
        %629 = vadd.xlane.f32.xlu0 %v628
        %v630 = vpop.xlane.xlu0 %629
        %v631 = vsel %vm627, %v616, 0.0
        %632 = vadd.xlane.f32.xlu0 %v631
        %v633 = vpop.xlane.xlu0 %632
        %v634 = vsel %vm627, %v619, 0.0
        %635 = vadd.xlane.f32.xlu0 %v634
        %v636 = vpop.xlane.xlu0 %635
        %v637 = vrcp.pop 32.0
        %v638 = vmul.f32 32.0, %v637
        %v639 = vsub.f32 1.0, %v638
        %v640 = vmul.f32 %v637, %v639
        %v641 = vadd.f32 %v637, %v640
        %vm642 = vweird.f32 %v637
        %v643 = vsel %vm642, %v637, %v641
        %v644 = vmul.f32 %v630, %v643
        %v645 = vmul.f32 %v633, %v643
        %v646 = vmul.f32 %v636, %v643
        %v647 = vsub.f32 %v613, %v644
        %v648 = vsub.f32 %v616, %v645
        %v649 = vsub.f32 %v619, %v646
        %v650 = vmul.f32 %v647, %v647
        %v651 = vmul.f32 %v648, %v648
        %v652 = vmul.f32 %v649, %v649
        %v653 = vsel %vm627, %v650, 0.0
        %654 = vadd.xlane.f32.xlu0 %v653
        %v655 = vpop.xlane.xlu0 %654
        %v656 = vsel %vm627, %v651, 0.0
        %657 = vadd.xlane.f32.xlu0 %v656
        %v658 = vpop.xlane.xlu0 %657
        %v659 = vsel %vm627, %v652, 0.0
        %660 = vadd.xlane.f32.xlu0 %v659
        %v661 = vpop.xlane.xlu0 %660
        %v662 = vmul.f32 %v655, %v643
        %v663 = vmul.f32 %v658, %v643
        %v664 = vmul.f32 %v661, %v643
        %v665 = vadd.f32 %v662, 1e-05
        %v666 = vadd.f32 %v663, 1e-05
        %v667 = vadd.f32 %v664, 1e-05
        %v668 = vrsqrt.pop %v665
        %v669 = vmul.f32 %v668, %v665
        %v670 = vmul.f32 %v669, %v668
        %v671 = vmul.f32 0.5, %v670
        %v672 = vsub.f32 1.5, %v671
        %v673 = vmul.f32 %v668, %v672
        %vm674 = vweird.f32 %v665
        %vm675 = vweird.f32 %v668
        %vm676 = vmor %vm674, %vm675
        %v677 = vsel %vm676, %v668, %v673
        %v678 = vrsqrt.pop %v666
        %v679 = vmul.f32 %v678, %v666
        %v680 = vmul.f32 %v679, %v678
        %v681 = vmul.f32 0.5, %v680
        %v682 = vsub.f32 1.5, %v681
        %v683 = vmul.f32 %v678, %v682
        %vm684 = vweird.f32 %v666
        %vm685 = vweird.f32 %v678
        %vm686 = vmor %vm684, %vm685
        %v687 = vsel %vm686, %v678, %v683
        %v688 = vrsqrt.pop %v667
        %v689 = vmul.f32 %v688, %v667
        %v690 = vmul.f32 %v689, %v688
        %v691 = vmul.f32 0.5, %v690
        %v692 = vsub.f32 1.5, %v691
        %v693 = vmul.f32 %v688, %v692
        %vm694 = vweird.f32 %v667
        %vm695 = vweird.f32 %v688
        %vm696 = vmor %vm694, %vm695
        %v697 = vsel %vm696, %v688, %v693
        %v698 = vmul.f32 %v647, %v677
        %v699 = vmul.f32 %v648, %v687
        %v700 = vmul.f32 %v649, %v697
        %v702 = vperm.slane %v625, 0
        %v704 = vmul.f32 %v698, %v702
        %v705 = vmul.f32 %v699, %v702
        %v706 = vmul.f32 %v700, %v702
        %v708 = vperm.slane %v626, 0
        %v710 = vadd.f32 %v704, %v708
        %v711 = vadd.f32 %v705, %v708
        %v712 = vadd.f32 %v706, %v708
        %v713 = vld [vmem:[%s5] sm:$0xff]
        %v714 = vld [vmem:[%s5 + $0x8] sm:$0xff]
        %v715 = vld [vmem:[%s5 + $0x10] sm:$0xff]
        %v716 = vld [vmem:[%s5 + $0x18] sm:$0xff]
        %v718 = vsel %vm627, %v710, 0
        %v721 = vsel %vm627, %v711, 0
        %v724 = vsel %vm627, %v712, 0
        %726 = vmatpush.msra.mxu0 0.0
        %727 = vmatpush.msra.mxu0 0.0
        %728 = vmatpush.msra.mxu0 0.0
        %729 = vmatpush.msra.mxu0 0.0
        %730 = vmatpush.msra.mxu0 0.0
        %731 = vmatpush.msra.mxu0 0.0
        %732 = vmatpush.msra.mxu0 0.0
        %733 = vmatpush.msra.mxu0 0.0
        %734 = vmatpush.msra.mxu0 0.0
        %735 = vmatpush.msra.mxu0 0.0
        %736 = vmatpush.msra.mxu0 0.0
        %737 = vmatpush.msra.mxu0 0.0
        %738 = vmatpush.msra.mxu0 %v716
        %739 = vmatpush.msra.mxu0 %v715
        %740 = vmatpush.msra.mxu0 %v714
        %741 = vmatpush.msra.mxu0 %v713
        %742 = vmatmul.f32.gmra.mxu0 %v718
        %v743 = vpop.f32.mrf.mxu0
        %v744 = vadd.f32 0.0, %v743
        %745 = vmatmul.f32.gmra.mxu0 %v721
        %v746 = vpop.f32.mrf.mxu0
        %v747 = vadd.f32 0.0, %v746
        %748 = vmatmul.f32.gmra.mxu0 %v724
        %v749 = vpop.f32.mrf.mxu0
        %v750 = vadd.f32 0.0, %v749
        %751 = vdwg.mxu0
        %v752 = vld [vmem:[%s6] sm:$0xff]
        %v753 = vld [vmem:[%s6 + $0x8] sm:$0xff]
        %v754 = vld [vmem:[%s6 + $0x10] sm:$0xff]
        %v755 = vld [vmem:[%s6 + $0x18] sm:$0xff]
        %759 = vrot.lane.b32.xlu0 %v744, 96
        %v760 = vpop.permute.xlu0 %759
        %761 = vrot.lane.b32.xlu0 %v747, 96
        %v762 = vpop.permute.xlu0 %761
        %763 = vrot.lane.b32.xlu0 %v750, 96
        %v764 = vpop.permute.xlu0 %763
        %vm765 = vcmask 64512
        %v766 = vsel %vm765, %v744, 0
        %v768 = vsel %vm765, %v747, 0
        %v770 = vsel %vm765, %v750, 0
        %v772 = vsel %vm765, %v760, 0
        %v774 = vsel %vm765, %v762, 0
        %v776 = vsel %vm765, %v764, 0
        %778 = vmatpush.xpose.msra.mxu0 0.0
        %779 = vmatpush.xpose.msra.mxu0 0.0
        %780 = vmatpush.xpose.msra.mxu0 0.0
        %781 = vmatpush.xpose.msra.mxu0 0.0
        %782 = vmatpush.xpose.msra.mxu0 0.0
        %783 = vmatpush.xpose.msra.mxu0 0.0
        %784 = vmatpush.xpose.msra.mxu0 0.0
        %785 = vmatpush.xpose.msra.mxu0 0.0
        %786 = vmatpush.xpose.msra.mxu0 0.0
        %787 = vmatpush.xpose.msra.mxu0 0.0
        %788 = vmatpush.xpose.msra.mxu0 0.0
        %789 = vmatpush.xpose.msra.mxu0 0.0
        %790 = vmatpush.xpose.msra.mxu0 0.0
        %791 = vmatpush.xpose.msra.mxu0 %v776
        %792 = vmatpush.xpose.msra.mxu0 %v774
        %793 = vmatpush.xpose.msra.mxu0 %v772
        %794 = vmatmul.f32.gmra.mxu0 %v766
        %v795 = vpop.f32.mrf.mxu0
        %v796 = vadd.f32 %v624, %v795
        %797 = vmatmul.f32.gmra.mxu0 %v768
        %v798 = vpop.f32.mrf.mxu0
        %v799 = vadd.f32 %v624, %v798
        %800 = vmatmul.f32.gmra.mxu0 %v770
        %v801 = vpop.f32.mrf.mxu0
        %v802 = vadd.f32 %v624, %v801
        %803 = vdwg.mxu0
        %vm804 = vcmask 195584
        %v805 = vsel %vm804, %v796, -inf
        %806 = vmax.xlane.f32.xlu0 %v805
        %v807 = vpop.xlane.xlu0 %806
        %v808 = vsel %vm804, %v799, -inf
        %809 = vmax.xlane.f32.xlu0 %v808
        %v810 = vpop.xlane.xlu0 %809
        %v811 = vsel %vm804, %v802, -inf
        %812 = vmax.xlane.f32.xlu0 %v811
        %v813 = vpop.xlane.xlu0 %812
        %v814 = vsub.f32 %v796, %v807
        %v815 = vsub.f32 %v799, %v810
        %v816 = vsub.f32 %v802, %v813
        %v817 = vmul.f32 %v814, 1.442695
        %v818 = vpow.pop %v817
        %v819 = vmul.f32 %v815, 1.442695
        %v820 = vpow.pop %v819
        %v821 = vmul.f32 %v816, 1.442695
        %v822 = vpow.pop %v821
        %v823 = vsel %vm804, %v818, 0.0
        %824 = vadd.xlane.f32.xlu0 %v823
        %v825 = vpop.xlane.xlu0 %824
        %v826 = vsel %vm804, %v820, 0.0
        %827 = vadd.xlane.f32.xlu0 %v826
        %v828 = vpop.xlane.xlu0 %827
        %v829 = vsel %vm804, %v822, 0.0
        %830 = vadd.xlane.f32.xlu0 %v829
        %v831 = vpop.xlane.xlu0 %830
        %v832 = vrcp.pop %v825
        %v833 = vrcp.pop %v828
        %v834 = vrcp.pop %v831
        %v835 = vmul.f32 %v818, %v832
        %v836 = vmul.f32 %v820, %v833
        %v837 = vmul.f32 %v822, %v834
        %838 = vrot.lane.b32.xlu0 %v744, 64
        %v839 = vpop.permute.xlu0 %838
        %840 = vrot.lane.b32.xlu0 %v747, 64
        %v841 = vpop.permute.xlu0 %840
        %842 = vrot.lane.b32.xlu0 %v750, 64
        %v843 = vpop.permute.xlu0 %842
        %v848 = vsel %vm804, %v835, 0
        %v851 = vsel %vm804, %v836, 0
        %v854 = vsel %vm804, %v837, 0
        %856 = vmatpush.msra.mxu0 0.0
        %857 = vmatpush.msra.mxu0 0.0
        %858 = vmatpush.msra.mxu0 0.0
        %859 = vmatpush.msra.mxu0 0.0
        %860 = vmatpush.msra.mxu0 0.0
        %861 = vmatpush.msra.mxu0 0.0
        %862 = vmatpush.msra.mxu0 0.0
        %863 = vmatpush.msra.mxu0 0.0
        %864 = vmatpush.msra.mxu0 0.0
        %865 = vmatpush.msra.mxu0 0.0
        %866 = vmatpush.msra.mxu0 0.0
        %867 = vmatpush.msra.mxu0 0.0
        %868 = vmatpush.msra.mxu0 0.0
        %869 = vmatpush.msra.mxu0 %v843
        %870 = vmatpush.msra.mxu0 %v841
        %871 = vmatpush.msra.mxu0 %v839
        %872 = vmatmul.f32.gmra.mxu0 %v848
        %v873 = vpop.f32.mrf.mxu0
        %v874 = vadd.f32 0.0, %v873
        %875 = vmatmul.f32.gmra.mxu0 %v851
        %v876 = vpop.f32.mrf.mxu0
        %v877 = vadd.f32 0.0, %v876
        %878 = vmatmul.f32.gmra.mxu0 %v854
        %v879 = vpop.f32.mrf.mxu0
        %v880 = vadd.f32 0.0, %v879
        %881 = vdwg.mxu0
        %882 = vrot.lane.b32.xlu0 %v744, 120
        %v883 = vpop.permute.xlu0 %882
        %884 = vrot.lane.b32.xlu0 %v747, 120
        %v885 = vpop.permute.xlu0 %884
        %886 = vrot.lane.b32.xlu0 %v750, 120
        %v887 = vpop.permute.xlu0 %886
        %888 = vrot.lane.b32.xlu0 %v744, 88
        %v889 = vpop.permute.xlu0 %888
        %890 = vrot.lane.b32.xlu0 %v747, 88
        %v891 = vpop.permute.xlu0 %890
        %892 = vrot.lane.b32.xlu0 %v750, 88
        %v893 = vpop.permute.xlu0 %892
        %v894 = vsel %vm765, %v883, 0
        %v896 = vsel %vm765, %v885, 0
        %v898 = vsel %vm765, %v887, 0
        %v900 = vsel %vm765, %v889, 0
        %v902 = vsel %vm765, %v891, 0
        %v904 = vsel %vm765, %v893, 0
        %906 = vmatpush.xpose.msra.mxu0 0.0
        %907 = vmatpush.xpose.msra.mxu0 0.0
        %908 = vmatpush.xpose.msra.mxu0 0.0
        %909 = vmatpush.xpose.msra.mxu0 0.0
        %910 = vmatpush.xpose.msra.mxu0 0.0
        %911 = vmatpush.xpose.msra.mxu0 0.0
        %912 = vmatpush.xpose.msra.mxu0 0.0
        %913 = vmatpush.xpose.msra.mxu0 0.0
        %914 = vmatpush.xpose.msra.mxu0 0.0
        %915 = vmatpush.xpose.msra.mxu0 0.0
        %916 = vmatpush.xpose.msra.mxu0 0.0
        %917 = vmatpush.xpose.msra.mxu0 0.0
        %918 = vmatpush.xpose.msra.mxu0 0.0
        %919 = vmatpush.xpose.msra.mxu0 %v904
        %920 = vmatpush.xpose.msra.mxu0 %v902
        %921 = vmatpush.xpose.msra.mxu0 %v900
        %922 = vmatmul.f32.gmra.mxu0 %v894
        %v923 = vpop.f32.mrf.mxu0
        %v924 = vadd.f32 %v624, %v923
        %925 = vmatmul.f32.gmra.mxu0 %v896
        %v926 = vpop.f32.mrf.mxu0
        %v927 = vadd.f32 %v624, %v926
        %928 = vmatmul.f32.gmra.mxu0 %v898
        %v929 = vpop.f32.mrf.mxu0
        %v930 = vadd.f32 %v624, %v929
        %931 = vdwg.mxu0
        %v932 = vsel %vm804, %v924, -inf
        %933 = vmax.xlane.f32.xlu0 %v932
        %v934 = vpop.xlane.xlu0 %933
        %v935 = vsel %vm804, %v927, -inf
        %936 = vmax.xlane.f32.xlu0 %v935
        %v937 = vpop.xlane.xlu0 %936
        %v938 = vsel %vm804, %v930, -inf
        %939 = vmax.xlane.f32.xlu0 %v938
        %v940 = vpop.xlane.xlu0 %939
        %v941 = vsub.f32 %v924, %v934
        %v942 = vsub.f32 %v927, %v937
        %v943 = vsub.f32 %v930, %v940
        %v944 = vmul.f32 %v941, 1.442695
        %v945 = vpow.pop %v944
        %v946 = vmul.f32 %v942, 1.442695
        %v947 = vpow.pop %v946
        %v948 = vmul.f32 %v943, 1.442695
        %v949 = vpow.pop %v948
        %v950 = vsel %vm804, %v945, 0.0
        %951 = vadd.xlane.f32.xlu0 %v950
        %v952 = vpop.xlane.xlu0 %951
        %v953 = vsel %vm804, %v947, 0.0
        %954 = vadd.xlane.f32.xlu0 %v953
        %v955 = vpop.xlane.xlu0 %954
        %v956 = vsel %vm804, %v949, 0.0
        %957 = vadd.xlane.f32.xlu0 %v956
        %v958 = vpop.xlane.xlu0 %957
        %v959 = vrcp.pop %v952
        %v960 = vrcp.pop %v955
        %v961 = vrcp.pop %v958
        %v962 = vmul.f32 %v945, %v959
        %v963 = vmul.f32 %v947, %v960
        %v964 = vmul.f32 %v949, %v961
        %965 = vrot.lane.b32.xlu0 %v744, 56
        %v966 = vpop.permute.xlu0 %965
        %967 = vrot.lane.b32.xlu0 %v747, 56
        %v968 = vpop.permute.xlu0 %967
        %969 = vrot.lane.b32.xlu0 %v750, 56
        %v970 = vpop.permute.xlu0 %969
        %v975 = vsel %vm804, %v962, 0
        %v978 = vsel %vm804, %v963, 0
        %v981 = vsel %vm804, %v964, 0
        %983 = vmatpush.msra.mxu0 0.0
        %984 = vmatpush.msra.mxu0 0.0
        %985 = vmatpush.msra.mxu0 0.0
        %986 = vmatpush.msra.mxu0 0.0
        %987 = vmatpush.msra.mxu0 0.0
        %988 = vmatpush.msra.mxu0 0.0
        %989 = vmatpush.msra.mxu0 0.0
        %990 = vmatpush.msra.mxu0 0.0
        %991 = vmatpush.msra.mxu0 0.0
        %992 = vmatpush.msra.mxu0 0.0
        %993 = vmatpush.msra.mxu0 0.0
        %994 = vmatpush.msra.mxu0 0.0
        %995 = vmatpush.msra.mxu0 0.0
        %996 = vmatpush.msra.mxu0 %v970
        %997 = vmatpush.msra.mxu0 %v968
        %998 = vmatpush.msra.mxu0 %v966
        %999 = vmatmul.f32.gmra.mxu0 %v975
        %v1000 = vpop.f32.mrf.mxu0
        %v1001 = vadd.f32 0.0, %v1000
        %1002 = vmatmul.f32.gmra.mxu0 %v978
        %v1003 = vpop.f32.mrf.mxu0
        %v1004 = vadd.f32 0.0, %v1003
        %1005 = vmatmul.f32.gmra.mxu0 %v981
        %v1006 = vpop.f32.mrf.mxu0
        %v1007 = vadd.f32 0.0, %v1006
        %1008 = vdwg.mxu0
        %v1010 = vsel %vm765, %v1001, 0
        %v1013 = vsel %vm765, %v1004, 0
        %v1016 = vsel %vm765, %v1007, 0
        %1018 = vmatpush.msra.mxu0 0.0
        %1019 = vmatpush.msra.mxu0 0.0
        %1020 = vmatpush.msra.mxu0 0.0
        %1021 = vmatpush.msra.mxu0 0.0
        %1022 = vmatpush.msra.mxu0 0.0
        %1023 = vmatpush.msra.mxu0 0.0
        %1024 = vmatpush.msra.mxu0 0.0
        %1025 = vmatpush.msra.mxu0 0.0
        %1026 = vmatpush.msra.mxu0 0.0
        %1027 = vmatpush.msra.mxu0 0.0
        %1028 = vmatpush.msra.mxu0 0.0
        %1029 = vmatpush.msra.mxu0 0.0
        %1030 = vmatpush.msra.mxu0 0.0
        %1031 = vmatpush.msra.mxu0 0.0
        %1032 = vmatpush.msra.mxu0 0.0
        %1033 = vmatpush.msra.mxu0 %v753
        %1034 = vmatmul.f32.gmra.mxu0 %v1010
        %v1035 = vpop.f32.mrf.mxu0
        %v1036 = vadd.f32 0.0, %v1035
        %1037 = vmatmul.f32.gmra.mxu0 %v1013
        %v1038 = vpop.f32.mrf.mxu0
        %v1039 = vadd.f32 0.0, %v1038
        %1040 = vmatmul.f32.gmra.mxu0 %v1016
        %v1041 = vpop.f32.mrf.mxu0
        %v1042 = vadd.f32 0.0, %v1041
        %1043 = vdwg.mxu0
        %v1045 = vsel %vm765, %v874, 0
        %v1048 = vsel %vm765, %v877, 0
        %v1051 = vsel %vm765, %v880, 0
        %1053 = vmatpush.msra.mxu0 0.0
        %1054 = vmatpush.msra.mxu0 0.0
        %1055 = vmatpush.msra.mxu0 0.0
        %1056 = vmatpush.msra.mxu0 0.0
        %1057 = vmatpush.msra.mxu0 0.0
        %1058 = vmatpush.msra.mxu0 0.0
        %1059 = vmatpush.msra.mxu0 0.0
        %1060 = vmatpush.msra.mxu0 0.0
        %1061 = vmatpush.msra.mxu0 0.0
        %1062 = vmatpush.msra.mxu0 0.0
        %1063 = vmatpush.msra.mxu0 0.0
        %1064 = vmatpush.msra.mxu0 0.0
        %1065 = vmatpush.msra.mxu0 0.0
        %1066 = vmatpush.msra.mxu0 0.0
        %1067 = vmatpush.msra.mxu0 0.0
        %1068 = vmatpush.msra.mxu0 %v752
        %1069 = vmatmul.f32.gmra.mxu0 %v1045
        %v1070 = vpop.f32.mrf.mxu0
        %v1071 = vadd.f32 %v1036, %v1070
        %1072 = vmatmul.f32.gmra.mxu0 %v1048
        %v1073 = vpop.f32.mrf.mxu0
        %v1074 = vadd.f32 %v1039, %v1073
        %1075 = vmatmul.f32.gmra.mxu0 %v1051
        %v1076 = vpop.f32.mrf.mxu0
        %v1077 = vadd.f32 %v1042, %v1076
        %1078 = vdwg.mxu0
        %1079 = vrot.lane.b32.xlu0 %v744, 112
        %v1080 = vpop.permute.xlu0 %1079
        %1081 = vrot.lane.b32.xlu0 %v747, 112
        %v1082 = vpop.permute.xlu0 %1081
        %1083 = vrot.lane.b32.xlu0 %v750, 112
        %v1084 = vpop.permute.xlu0 %1083
        %1085 = vrot.lane.b32.xlu0 %v744, 80
        %v1086 = vpop.permute.xlu0 %1085
        %1087 = vrot.lane.b32.xlu0 %v747, 80
        %v1088 = vpop.permute.xlu0 %1087
        %1089 = vrot.lane.b32.xlu0 %v750, 80
        %v1090 = vpop.permute.xlu0 %1089
        %v1091 = vsel %vm765, %v1080, 0
        %v1093 = vsel %vm765, %v1082, 0
        %v1095 = vsel %vm765, %v1084, 0
        %v1097 = vsel %vm765, %v1086, 0
        %v1099 = vsel %vm765, %v1088, 0
        %v1101 = vsel %vm765, %v1090, 0
        %1103 = vmatpush.xpose.msra.mxu0 0.0
        %1104 = vmatpush.xpose.msra.mxu0 0.0
        %1105 = vmatpush.xpose.msra.mxu0 0.0
        %1106 = vmatpush.xpose.msra.mxu0 0.0
        %1107 = vmatpush.xpose.msra.mxu0 0.0
        %1108 = vmatpush.xpose.msra.mxu0 0.0
        %1109 = vmatpush.xpose.msra.mxu0 0.0
        %1110 = vmatpush.xpose.msra.mxu0 0.0
        %1111 = vmatpush.xpose.msra.mxu0 0.0
        %1112 = vmatpush.xpose.msra.mxu0 0.0
        %1113 = vmatpush.xpose.msra.mxu0 0.0
        %1114 = vmatpush.xpose.msra.mxu0 0.0
        %1115 = vmatpush.xpose.msra.mxu0 0.0
        %1116 = vmatpush.xpose.msra.mxu0 %v1101
        %1117 = vmatpush.xpose.msra.mxu0 %v1099
        %1118 = vmatpush.xpose.msra.mxu0 %v1097
        %1119 = vmatmul.f32.gmra.mxu0 %v1091
        %v1120 = vpop.f32.mrf.mxu0
        %v1121 = vadd.f32 %v624, %v1120
        %1122 = vmatmul.f32.gmra.mxu0 %v1093
        %v1123 = vpop.f32.mrf.mxu0
        %v1124 = vadd.f32 %v624, %v1123
        %1125 = vmatmul.f32.gmra.mxu0 %v1095
        %v1126 = vpop.f32.mrf.mxu0
        %v1127 = vadd.f32 %v624, %v1126
        %1128 = vdwg.mxu0
        %v1129 = vsel %vm804, %v1121, -inf
        %1130 = vmax.xlane.f32.xlu0 %v1129
        %v1131 = vpop.xlane.xlu0 %1130
        %v1132 = vsel %vm804, %v1124, -inf
        %1133 = vmax.xlane.f32.xlu0 %v1132
        %v1134 = vpop.xlane.xlu0 %1133
        %v1135 = vsel %vm804, %v1127, -inf
        %1136 = vmax.xlane.f32.xlu0 %v1135
        %v1137 = vpop.xlane.xlu0 %1136
        %v1138 = vsub.f32 %v1121, %v1131
        %v1139 = vsub.f32 %v1124, %v1134
        %v1140 = vsub.f32 %v1127, %v1137
        %v1141 = vmul.f32 %v1138, 1.442695
        %v1142 = vpow.pop %v1141
        %v1143 = vmul.f32 %v1139, 1.442695
        %v1144 = vpow.pop %v1143
        %v1145 = vmul.f32 %v1140, 1.442695
        %v1146 = vpow.pop %v1145
        %v1147 = vsel %vm804, %v1142, 0.0
        %1148 = vadd.xlane.f32.xlu0 %v1147
        %v1149 = vpop.xlane.xlu0 %1148
        %v1150 = vsel %vm804, %v1144, 0.0
        %1151 = vadd.xlane.f32.xlu0 %v1150
        %v1152 = vpop.xlane.xlu0 %1151
        %v1153 = vsel %vm804, %v1146, 0.0
        %1154 = vadd.xlane.f32.xlu0 %v1153
        %v1155 = vpop.xlane.xlu0 %1154
        %v1156 = vrcp.pop %v1149
        %v1157 = vrcp.pop %v1152
        %v1158 = vrcp.pop %v1155
        %v1159 = vmul.f32 %v1142, %v1156
        %v1160 = vmul.f32 %v1144, %v1157
        %v1161 = vmul.f32 %v1146, %v1158
        %1162 = vrot.lane.b32.xlu0 %v744, 48
        %v1163 = vpop.permute.xlu0 %1162
        %1164 = vrot.lane.b32.xlu0 %v747, 48
        %v1165 = vpop.permute.xlu0 %1164
        %1166 = vrot.lane.b32.xlu0 %v750, 48
        %v1167 = vpop.permute.xlu0 %1166
        %v1172 = vsel %vm804, %v1159, 0
        %v1175 = vsel %vm804, %v1160, 0
        %v1178 = vsel %vm804, %v1161, 0
        %1180 = vmatpush.msra.mxu0 0.0
        %1181 = vmatpush.msra.mxu0 0.0
        %1182 = vmatpush.msra.mxu0 0.0
        %1183 = vmatpush.msra.mxu0 0.0
        %1184 = vmatpush.msra.mxu0 0.0
        %1185 = vmatpush.msra.mxu0 0.0
        %1186 = vmatpush.msra.mxu0 0.0
        %1187 = vmatpush.msra.mxu0 0.0
        %1188 = vmatpush.msra.mxu0 0.0
        %1189 = vmatpush.msra.mxu0 0.0
        %1190 = vmatpush.msra.mxu0 0.0
        %1191 = vmatpush.msra.mxu0 0.0
        %1192 = vmatpush.msra.mxu0 0.0
        %1193 = vmatpush.msra.mxu0 %v1167
        %1194 = vmatpush.msra.mxu0 %v1165
        %1195 = vmatpush.msra.mxu0 %v1163
        %1196 = vmatmul.f32.gmra.mxu0 %v1172
        %v1197 = vpop.f32.mrf.mxu0
        %v1198 = vadd.f32 0.0, %v1197
        %1199 = vmatmul.f32.gmra.mxu0 %v1175
        %v1200 = vpop.f32.mrf.mxu0
        %v1201 = vadd.f32 0.0, %v1200
        %1202 = vmatmul.f32.gmra.mxu0 %v1178
        %v1203 = vpop.f32.mrf.mxu0
        %v1204 = vadd.f32 0.0, %v1203
        %1205 = vdwg.mxu0
        %v1207 = vsel %vm765, %v1198, 0
        %v1210 = vsel %vm765, %v1201, 0
        %v1213 = vsel %vm765, %v1204, 0
        %1215 = vmatpush.msra.mxu0 0.0
        %1216 = vmatpush.msra.mxu0 0.0
        %1217 = vmatpush.msra.mxu0 0.0
        %1218 = vmatpush.msra.mxu0 0.0
        %1219 = vmatpush.msra.mxu0 0.0
        %1220 = vmatpush.msra.mxu0 0.0
        %1221 = vmatpush.msra.mxu0 0.0
        %1222 = vmatpush.msra.mxu0 0.0
        %1223 = vmatpush.msra.mxu0 0.0
        %1224 = vmatpush.msra.mxu0 0.0
        %1225 = vmatpush.msra.mxu0 0.0
        %1226 = vmatpush.msra.mxu0 0.0
        %1227 = vmatpush.msra.mxu0 0.0
        %1228 = vmatpush.msra.mxu0 0.0
        %1229 = vmatpush.msra.mxu0 0.0
        %1230 = vmatpush.msra.mxu0 %v754
        %1231 = vmatmul.f32.gmra.mxu0 %v1207
        %v1232 = vpop.f32.mrf.mxu0
        %v1233 = vadd.f32 0.0, %v1232
        %1234 = vmatmul.f32.gmra.mxu0 %v1210
        %v1235 = vpop.f32.mrf.mxu0
        %v1236 = vadd.f32 0.0, %v1235
        %1237 = vmatmul.f32.gmra.mxu0 %v1213
        %v1238 = vpop.f32.mrf.mxu0
        %v1239 = vadd.f32 0.0, %v1238
        %1240 = vdwg.mxu0
        %v1241 = vadd.f32 %v1071, %v1233
        %v1242 = vadd.f32 %v1074, %v1236
        %v1243 = vadd.f32 %v1077, %v1239
        %1244 = vrot.lane.b32.xlu0 %v744, 104
        %v1245 = vpop.permute.xlu0 %1244
        %1246 = vrot.lane.b32.xlu0 %v747, 104
        %v1247 = vpop.permute.xlu0 %1246
        %1248 = vrot.lane.b32.xlu0 %v750, 104
        %v1249 = vpop.permute.xlu0 %1248
        %1250 = vrot.lane.b32.xlu0 %v744, 72
        %v1251 = vpop.permute.xlu0 %1250
        %1252 = vrot.lane.b32.xlu0 %v747, 72
        %v1253 = vpop.permute.xlu0 %1252
        %1254 = vrot.lane.b32.xlu0 %v750, 72
        %v1255 = vpop.permute.xlu0 %1254
        %v1256 = vsel %vm765, %v1245, 0
        %v1258 = vsel %vm765, %v1247, 0
        %v1260 = vsel %vm765, %v1249, 0
        %v1262 = vsel %vm765, %v1251, 0
        %v1264 = vsel %vm765, %v1253, 0
        %v1266 = vsel %vm765, %v1255, 0
        %1268 = vmatpush.xpose.msra.mxu0 0.0
        %1269 = vmatpush.xpose.msra.mxu0 0.0
        %1270 = vmatpush.xpose.msra.mxu0 0.0
        %1271 = vmatpush.xpose.msra.mxu0 0.0
        %1272 = vmatpush.xpose.msra.mxu0 0.0
        %1273 = vmatpush.xpose.msra.mxu0 0.0
        %1274 = vmatpush.xpose.msra.mxu0 0.0
        %1275 = vmatpush.xpose.msra.mxu0 0.0
        %1276 = vmatpush.xpose.msra.mxu0 0.0
        %1277 = vmatpush.xpose.msra.mxu0 0.0
        %1278 = vmatpush.xpose.msra.mxu0 0.0
        %1279 = vmatpush.xpose.msra.mxu0 0.0
        %1280 = vmatpush.xpose.msra.mxu0 0.0
        %1281 = vmatpush.xpose.msra.mxu0 %v1266
        %1282 = vmatpush.xpose.msra.mxu0 %v1264
        %1283 = vmatpush.xpose.msra.mxu0 %v1262
        %1284 = vmatmul.f32.gmra.mxu0 %v1256
        %v1285 = vpop.f32.mrf.mxu0
        %v1286 = vadd.f32 %v624, %v1285
        %1287 = vmatmul.f32.gmra.mxu0 %v1258
        %v1288 = vpop.f32.mrf.mxu0
        %v1289 = vadd.f32 %v624, %v1288
        %1290 = vmatmul.f32.gmra.mxu0 %v1260
        %v1291 = vpop.f32.mrf.mxu0
        %v1292 = vadd.f32 %v624, %v1291
        %1293 = vdwg.mxu0
        %v1294 = vsel %vm804, %v1286, -inf
        %1295 = vmax.xlane.f32.xlu0 %v1294
        %v1296 = vpop.xlane.xlu0 %1295
        %v1297 = vsel %vm804, %v1289, -inf
        %1298 = vmax.xlane.f32.xlu0 %v1297
        %v1299 = vpop.xlane.xlu0 %1298
        %v1300 = vsel %vm804, %v1292, -inf
        %1301 = vmax.xlane.f32.xlu0 %v1300
        %v1302 = vpop.xlane.xlu0 %1301
        %v1303 = vsub.f32 %v1286, %v1296
        %v1304 = vsub.f32 %v1289, %v1299
        %v1305 = vsub.f32 %v1292, %v1302
        %v1306 = vmul.f32 %v1303, 1.442695
        %v1307 = vpow.pop %v1306
        %v1308 = vmul.f32 %v1304, 1.442695
        %v1309 = vpow.pop %v1308
        %v1310 = vmul.f32 %v1305, 1.442695
        %v1311 = vpow.pop %v1310
        %v1312 = vsel %vm804, %v1307, 0.0
        %1313 = vadd.xlane.f32.xlu0 %v1312
        %v1314 = vpop.xlane.xlu0 %1313
        %v1315 = vsel %vm804, %v1309, 0.0
        %1316 = vadd.xlane.f32.xlu0 %v1315
        %v1317 = vpop.xlane.xlu0 %1316
        %v1318 = vsel %vm804, %v1311, 0.0
        %1319 = vadd.xlane.f32.xlu0 %v1318
        %v1320 = vpop.xlane.xlu0 %1319
        %v1321 = vrcp.pop %v1314
        %v1322 = vrcp.pop %v1317
        %v1323 = vrcp.pop %v1320
        %v1324 = vmul.f32 %v1307, %v1321
        %v1325 = vmul.f32 %v1309, %v1322
        %v1326 = vmul.f32 %v1311, %v1323
        %1327 = vrot.lane.b32.xlu0 %v744, 40
        %v1328 = vpop.permute.xlu0 %1327
        %1329 = vrot.lane.b32.xlu0 %v747, 40
        %v1330 = vpop.permute.xlu0 %1329
        %1331 = vrot.lane.b32.xlu0 %v750, 40
        %v1332 = vpop.permute.xlu0 %1331
        %v1337 = vsel %vm804, %v1324, 0
        %v1340 = vsel %vm804, %v1325, 0
        %v1343 = vsel %vm804, %v1326, 0
        %1345 = vmatpush.msra.mxu0 0.0
        %1346 = vmatpush.msra.mxu0 0.0
        %1347 = vmatpush.msra.mxu0 0.0
        %1348 = vmatpush.msra.mxu0 0.0
        %1349 = vmatpush.msra.mxu0 0.0
        %1350 = vmatpush.msra.mxu0 0.0
        %1351 = vmatpush.msra.mxu0 0.0
        %1352 = vmatpush.msra.mxu0 0.0
        %1353 = vmatpush.msra.mxu0 0.0
        %1354 = vmatpush.msra.mxu0 0.0
        %1355 = vmatpush.msra.mxu0 0.0
        %1356 = vmatpush.msra.mxu0 0.0
        %1357 = vmatpush.msra.mxu0 0.0
        %1358 = vmatpush.msra.mxu0 %v1332
        %1359 = vmatpush.msra.mxu0 %v1330
        %1360 = vmatpush.msra.mxu0 %v1328
        %1361 = vmatmul.f32.gmra.mxu0 %v1337
        %v1362 = vpop.f32.mrf.mxu0
        %v1363 = vadd.f32 0.0, %v1362
        %1364 = vmatmul.f32.gmra.mxu0 %v1340
        %v1365 = vpop.f32.mrf.mxu0
        %v1366 = vadd.f32 0.0, %v1365
        %1367 = vmatmul.f32.gmra.mxu0 %v1343
        %v1368 = vpop.f32.mrf.mxu0
        %v1369 = vadd.f32 0.0, %v1368
        %1370 = vdwg.mxu0
        %v1372 = vsel %vm765, %v1363, 0
        %v1375 = vsel %vm765, %v1366, 0
        %v1378 = vsel %vm765, %v1369, 0
        %1380 = vmatpush.msra.mxu0 0.0
        %1381 = vmatpush.msra.mxu0 0.0
        %1382 = vmatpush.msra.mxu0 0.0
        %1383 = vmatpush.msra.mxu0 0.0
        %1384 = vmatpush.msra.mxu0 0.0
        %1385 = vmatpush.msra.mxu0 0.0
        %1386 = vmatpush.msra.mxu0 0.0
        %1387 = vmatpush.msra.mxu0 0.0
        %1388 = vmatpush.msra.mxu0 0.0
        %1389 = vmatpush.msra.mxu0 0.0
        %1390 = vmatpush.msra.mxu0 0.0
        %1391 = vmatpush.msra.mxu0 0.0
        %1392 = vmatpush.msra.mxu0 0.0
        %1393 = vmatpush.msra.mxu0 0.0
        %1394 = vmatpush.msra.mxu0 0.0
        %1395 = vmatpush.msra.mxu0 %v755
        %1396 = vmatmul.f32.gmra.mxu0 %v1372
        %v1397 = vpop.f32.mrf.mxu0
        %v1398 = vadd.f32 0.0, %v1397
        %1399 = vmatmul.f32.gmra.mxu0 %v1375
        %v1400 = vpop.f32.mrf.mxu0
        %v1401 = vadd.f32 0.0, %v1400
        %1402 = vmatmul.f32.gmra.mxu0 %v1378
        %v1403 = vpop.f32.mrf.mxu0
        %v1404 = vadd.f32 0.0, %v1403
        %1405 = vdwg.mxu0
        %v1406 = vadd.f32 %v1241, %v1398
        %v1407 = vadd.f32 %v1242, %v1401
        %v1408 = vadd.f32 %v1243, %v1404
        %v1409 = vadd.f32 %v613, %v1406
        %v1410 = vadd.f32 %v616, %v1407
        %v1411 = vadd.f32 %v619, %v1408
        %v1412 = vld [vmem:[%s7] sm:$0x1]
        %v1414 = vperm.slane %v1412, 0
        %v1416 = vadd.f32 %v1409, %v1414
        %v1417 = vadd.f32 %v1410, %v1414
        %v1418 = vadd.f32 %v1411, %v1414
        %v1419 = vld [vmem:[%s8] sm:$0x1]
        %v1420 = vld [vmem:[%s9] sm:$0x1]
        %v1421 = vsel %vm627, %v1416, 0.0
        %1422 = vadd.xlane.f32.xlu0 %v1421
        %v1423 = vpop.xlane.xlu0 %1422
        %v1424 = vsel %vm627, %v1417, 0.0
        %1425 = vadd.xlane.f32.xlu0 %v1424
        %v1426 = vpop.xlane.xlu0 %1425
        %v1427 = vsel %vm627, %v1418, 0.0
        %1428 = vadd.xlane.f32.xlu0 %v1427
        %v1429 = vpop.xlane.xlu0 %1428
        %v1430 = vmul.f32 %v1423, %v643
        %v1431 = vmul.f32 %v1426, %v643
        %v1432 = vmul.f32 %v1429, %v643
        %v1433 = vsub.f32 %v1416, %v1430
        %v1434 = vsub.f32 %v1417, %v1431
        %v1435 = vsub.f32 %v1418, %v1432
        %v1436 = vmul.f32 %v1433, %v1433
        %v1437 = vmul.f32 %v1434, %v1434
        %v1438 = vmul.f32 %v1435, %v1435
        %v1439 = vsel %vm627, %v1436, 0.0
        %1440 = vadd.xlane.f32.xlu0 %v1439
        %v1441 = vpop.xlane.xlu0 %1440
        %v1442 = vsel %vm627, %v1437, 0.0
        %1443 = vadd.xlane.f32.xlu0 %v1442
        %v1444 = vpop.xlane.xlu0 %1443
        %v1445 = vsel %vm627, %v1438, 0.0
        %1446 = vadd.xlane.f32.xlu0 %v1445
        %v1447 = vpop.xlane.xlu0 %1446
        %v1448 = vmul.f32 %v1441, %v643
        %v1449 = vmul.f32 %v1444, %v643
        %v1450 = vmul.f32 %v1447, %v643
        %v1451 = vadd.f32 %v1448, 1e-05
        %v1452 = vadd.f32 %v1449, 1e-05
        %v1453 = vadd.f32 %v1450, 1e-05
        %v1454 = vrsqrt.pop %v1451
        %v1455 = vmul.f32 %v1454, %v1451
        %v1456 = vmul.f32 %v1455, %v1454
        %v1457 = vmul.f32 0.5, %v1456
        %v1458 = vsub.f32 1.5, %v1457
        %v1459 = vmul.f32 %v1454, %v1458
        %vm1460 = vweird.f32 %v1451
        %vm1461 = vweird.f32 %v1454
        %vm1462 = vmor %vm1460, %vm1461
        %v1463 = vsel %vm1462, %v1454, %v1459
        %v1464 = vrsqrt.pop %v1452
        %v1465 = vmul.f32 %v1464, %v1452
        %v1466 = vmul.f32 %v1465, %v1464
        %v1467 = vmul.f32 0.5, %v1466
        %v1468 = vsub.f32 1.5, %v1467
        %v1469 = vmul.f32 %v1464, %v1468
        %vm1470 = vweird.f32 %v1452
        %vm1471 = vweird.f32 %v1464
        %vm1472 = vmor %vm1470, %vm1471
        %v1473 = vsel %vm1472, %v1464, %v1469
        %v1474 = vrsqrt.pop %v1453
        %v1475 = vmul.f32 %v1474, %v1453
        %v1476 = vmul.f32 %v1475, %v1474
        %v1477 = vmul.f32 0.5, %v1476
        %v1478 = vsub.f32 1.5, %v1477
        %v1479 = vmul.f32 %v1474, %v1478
        %vm1480 = vweird.f32 %v1453
        %vm1481 = vweird.f32 %v1474
        %vm1482 = vmor %vm1480, %vm1481
        %v1483 = vsel %vm1482, %v1474, %v1479
        %v1484 = vmul.f32 %v1433, %v1463
        %v1485 = vmul.f32 %v1434, %v1473
        %v1486 = vmul.f32 %v1435, %v1483
        %v1488 = vperm.slane %v1419, 0
        %v1490 = vmul.f32 %v1484, %v1488
        %v1491 = vmul.f32 %v1485, %v1488
        %v1492 = vmul.f32 %v1486, %v1488
        %v1494 = vperm.slane %v1420, 0
        %v1496 = vadd.f32 %v1490, %v1494
        %v1497 = vadd.f32 %v1491, %v1494
        %v1498 = vadd.f32 %v1492, %v1494
        %v1499 = vld [vmem:[%s10] sm:$0xff]
        %v1500 = vld [vmem:[%s10 + $0x8] sm:$0xff]
        %v1501 = vld [vmem:[%s10 + $0x10] sm:$0xff]
        %v1502 = vld [vmem:[%s10 + $0x18] sm:$0xff]
        %v1503 = vld [vmem:[%s11] sm:$0x1]
        %v1505 = vperm.slane %v1503, 0
        %v1508 = vsel %vm627, %v1496, 0
        %v1511 = vsel %vm627, %v1497, 0
        %v1514 = vsel %vm627, %v1498, 0
        %1516 = vmatpush.msra.mxu0 0.0
        %1517 = vmatpush.msra.mxu0 0.0
        %1518 = vmatpush.msra.mxu0 0.0
        %1519 = vmatpush.msra.mxu0 0.0
        %1520 = vmatpush.msra.mxu0 0.0
        %1521 = vmatpush.msra.mxu0 0.0
        %1522 = vmatpush.msra.mxu0 0.0
        %1523 = vmatpush.msra.mxu0 0.0
        %1524 = vmatpush.msra.mxu0 0.0
        %1525 = vmatpush.msra.mxu0 0.0
        %1526 = vmatpush.msra.mxu0 0.0
        %1527 = vmatpush.msra.mxu0 0.0
        %1528 = vmatpush.msra.mxu0 %v1502
        %1529 = vmatpush.msra.mxu0 %v1501
        %1530 = vmatpush.msra.mxu0 %v1500
        %1531 = vmatpush.msra.mxu0 %v1499
        %1532 = vmatmul.f32.gmra.mxu0 %v1508
        %v1533 = vpop.f32.mrf.mxu0
        %v1534 = vadd.f32 %v1505, %v1533
        %1535 = vmatmul.f32.gmra.mxu0 %v1511
        %v1536 = vpop.f32.mrf.mxu0
        %v1537 = vadd.f32 %v1505, %v1536
        %1538 = vmatmul.f32.gmra.mxu0 %v1514
        %v1539 = vpop.f32.mrf.mxu0
        %v1540 = vadd.f32 %v1505, %v1539
        %1541 = vdwg.mxu0
        %v1542 = vmul.f32 %v1534, 0.5
        %v1543 = vmul.f32 %v1537, 0.5
        %v1544 = vmul.f32 %v1540, 0.5
        %v1545 = vmul.f32 %v1534, 0.044715
        %v1546 = vmul.f32 %v1537, 0.044715
        %v1547 = vmul.f32 %v1540, 0.044715
        %v1548 = vmul.f32 %v1545, %v1534
        %v1549 = vmul.f32 %v1546, %v1537
        %v1550 = vmul.f32 %v1547, %v1540
        %v1551 = vmul.f32 %v1548, %v1534
        %v1552 = vmul.f32 %v1549, %v1537
        %v1553 = vmul.f32 %v1550, %v1540
        %v1554 = vadd.f32 %v1534, %v1551
        %v1555 = vadd.f32 %v1537, %v1552
        %v1556 = vadd.f32 %v1540, %v1553
        %v1557 = vmul.f32 %v1554, 0.7978846
        %v1558 = vmul.f32 %v1555, 0.7978846
        %v1559 = vmul.f32 %v1556, 0.7978846
        %v1560 = vtanh.pop %v1557
        %v1561 = vtanh.pop %v1558
        %v1562 = vtanh.pop %v1559
        %v1563 = vadd.f32 %v1560, 1.0
        %v1564 = vadd.f32 %v1561, 1.0
        %v1565 = vadd.f32 %v1562, 1.0
        %v1566 = vmul.f32 %v1542, %v1563
        %v1567 = vmul.f32 %v1543, %v1564
        %v1568 = vmul.f32 %v1544, %v1565
        %v1569 = vld [vmem:[%s12] sm:$0xff]
        %v1570 = vld [vmem:[%s12 + $0x8] sm:$0xff]
        %v1571 = vld [vmem:[%s12 + $0x10] sm:$0xff]
        %v1572 = vld [vmem:[%s12 + $0x18] sm:$0xff]
        %v1573 = vld [vmem:[%s12 + $0x20] sm:$0xff]
        %v1574 = vld [vmem:[%s12 + $0x28] sm:$0xff]
        %v1575 = vld [vmem:[%s12 + $0x30] sm:$0xff]
        %v1576 = vld [vmem:[%s12 + $0x38] sm:$0xff]
        %v1577 = vld [vmem:[%s12 + $0x40] sm:$0xff]
        %v1578 = vld [vmem:[%s12 + $0x48] sm:$0xff]
        %v1579 = vld [vmem:[%s12 + $0x50] sm:$0xff]
        %v1580 = vld [vmem:[%s12 + $0x58] sm:$0xff]
        %v1581 = vld [vmem:[%s12 + $0x60] sm:$0xff]
        %v1582 = vld [vmem:[%s12 + $0x68] sm:$0xff]
        %v1583 = vld [vmem:[%s12 + $0x70] sm:$0xff]
        %v1584 = vld [vmem:[%s12 + $0x78] sm:$0xff]
        %1585 = vmatpush.msra.mxu0 %v1584
        %1586 = vmatpush.msra.mxu0 %v1583
        %1587 = vmatpush.msra.mxu0 %v1582
        %1588 = vmatpush.msra.mxu0 %v1581
        %1589 = vmatpush.msra.mxu0 %v1580
        %1590 = vmatpush.msra.mxu0 %v1579
        %1591 = vmatpush.msra.mxu0 %v1578
        %1592 = vmatpush.msra.mxu0 %v1577
        %1593 = vmatpush.msra.mxu0 %v1576
        %1594 = vmatpush.msra.mxu0 %v1575
        %1595 = vmatpush.msra.mxu0 %v1574
        %1596 = vmatpush.msra.mxu0 %v1573
        %1597 = vmatpush.msra.mxu0 %v1572
        %1598 = vmatpush.msra.mxu0 %v1571
        %1599 = vmatpush.msra.mxu0 %v1570
        %1600 = vmatpush.msra.mxu0 %v1569
        %1601 = vmatmul.f32.gmra.mxu0 %v1566
        %v1602 = vpop.f32.mrf.mxu0
        %v1603 = vadd.f32 0.0, %v1602
        %1604 = vmatmul.f32.gmra.mxu0 %v1567
        %v1605 = vpop.f32.mrf.mxu0
        %v1606 = vadd.f32 0.0, %v1605
        %1607 = vmatmul.f32.gmra.mxu0 %v1568
        %v1608 = vpop.f32.mrf.mxu0
        %v1609 = vadd.f32 0.0, %v1608
        %1610 = vdwg.mxu0
        %v1611 = vadd.f32 %v1416, %v1603
        %v1612 = vadd.f32 %v1417, %v1606
        %v1613 = vadd.f32 %v1418, %v1609
        %v1614 = vld [vmem:[%s13] sm:$0x1]
        %v1616 = vperm.slane %v1614, 0
        %v1618 = vadd.f32 %v1611, %v1616
        %v1619 = vadd.f32 %v1612, %v1616
        %v1620 = vadd.f32 %v1613, %v1616
        %s1621 = scalar_lea.vmem %s3, 1
        %v1622 = vld [vmem:[%s1621] sm:$0x1]
        %s1623 = scalar_lea.vmem %s4, 1
        %v1624 = vld [vmem:[%s1623] sm:$0x1]
        %v1625 = vsel %vm627, %v1618, 0.0
        %1626 = vadd.xlane.f32.xlu0 %v1625
        %v1627 = vpop.xlane.xlu0 %1626
        %v1628 = vsel %vm627, %v1619, 0.0
        %1629 = vadd.xlane.f32.xlu0 %v1628
        %v1630 = vpop.xlane.xlu0 %1629
        %v1631 = vsel %vm627, %v1620, 0.0
        %1632 = vadd.xlane.f32.xlu0 %v1631
        %v1633 = vpop.xlane.xlu0 %1632
        %v1634 = vmul.f32 %v1627, %v643
        %v1635 = vmul.f32 %v1630, %v643
        %v1636 = vmul.f32 %v1633, %v643
        %v1637 = vsub.f32 %v1618, %v1634
        %v1638 = vsub.f32 %v1619, %v1635
        %v1639 = vsub.f32 %v1620, %v1636
        %v1640 = vmul.f32 %v1637, %v1637
        %v1641 = vmul.f32 %v1638, %v1638
        %v1642 = vmul.f32 %v1639, %v1639
        %v1643 = vsel %vm627, %v1640, 0.0
        %1644 = vadd.xlane.f32.xlu0 %v1643
        %v1645 = vpop.xlane.xlu0 %1644
        %v1646 = vsel %vm627, %v1641, 0.0
        %1647 = vadd.xlane.f32.xlu0 %v1646
        %v1648 = vpop.xlane.xlu0 %1647
        %v1649 = vsel %vm627, %v1642, 0.0
        %1650 = vadd.xlane.f32.xlu0 %v1649
        %v1651 = vpop.xlane.xlu0 %1650
        %v1652 = vmul.f32 %v1645, %v643
        %v1653 = vmul.f32 %v1648, %v643
        %v1654 = vmul.f32 %v1651, %v643
        %v1655 = vadd.f32 %v1652, 1e-05
        %v1656 = vadd.f32 %v1653, 1e-05
        %v1657 = vadd.f32 %v1654, 1e-05
        %v1658 = vrsqrt.pop %v1655
        %v1659 = vmul.f32 %v1658, %v1655
        %v1660 = vmul.f32 %v1659, %v1658
        %v1661 = vmul.f32 0.5, %v1660
        %v1662 = vsub.f32 1.5, %v1661
        %v1663 = vmul.f32 %v1658, %v1662
        %vm1664 = vweird.f32 %v1655
        %vm1665 = vweird.f32 %v1658
        %vm1666 = vmor %vm1664, %vm1665
        %v1667 = vsel %vm1666, %v1658, %v1663
        %v1668 = vrsqrt.pop %v1656
        %v1669 = vmul.f32 %v1668, %v1656
        %v1670 = vmul.f32 %v1669, %v1668
        %v1671 = vmul.f32 0.5, %v1670
        %v1672 = vsub.f32 1.5, %v1671
        %v1673 = vmul.f32 %v1668, %v1672
        %vm1674 = vweird.f32 %v1656
        %vm1675 = vweird.f32 %v1668
        %vm1676 = vmor %vm1674, %vm1675
        %v1677 = vsel %vm1676, %v1668, %v1673
        %v1678 = vrsqrt.pop %v1657
        %v1679 = vmul.f32 %v1678, %v1657
        %v1680 = vmul.f32 %v1679, %v1678
        %v1681 = vmul.f32 0.5, %v1680
        %v1682 = vsub.f32 1.5, %v1681
        %v1683 = vmul.f32 %v1678, %v1682
        %vm1684 = vweird.f32 %v1657
        %vm1685 = vweird.f32 %v1678
        %vm1686 = vmor %vm1684, %vm1685
        %v1687 = vsel %vm1686, %v1678, %v1683
        %v1688 = vmul.f32 %v1637, %v1667
        %v1689 = vmul.f32 %v1638, %v1677
        %v1690 = vmul.f32 %v1639, %v1687
        %v1692 = vperm.slane %v1622, 0
        %v1694 = vmul.f32 %v1688, %v1692
        %v1695 = vmul.f32 %v1689, %v1692
        %v1696 = vmul.f32 %v1690, %v1692
        %v1698 = vperm.slane %v1624, 0
        %v1700 = vadd.f32 %v1694, %v1698
        %v1701 = vadd.f32 %v1695, %v1698
        %v1702 = vadd.f32 %v1696, %v1698
        %s1703 = scalar_lea.vmem %s5, 32
        %v1704 = vld [vmem:[%s1703] sm:$0xff]
        %v1705 = vld [vmem:[%s1703 + $0x8] sm:$0xff]
        %v1706 = vld [vmem:[%s1703 + $0x10] sm:$0xff]
        %v1707 = vld [vmem:[%s1703 + $0x18] sm:$0xff]
        %v1709 = vsel %vm627, %v1700, 0
        %v1712 = vsel %vm627, %v1701, 0
        %v1715 = vsel %vm627, %v1702, 0
        %1717 = vmatpush.msra.mxu0 0.0
        %1718 = vmatpush.msra.mxu0 0.0
        %1719 = vmatpush.msra.mxu0 0.0
        %1720 = vmatpush.msra.mxu0 0.0
        %1721 = vmatpush.msra.mxu0 0.0
        %1722 = vmatpush.msra.mxu0 0.0
        %1723 = vmatpush.msra.mxu0 0.0
        %1724 = vmatpush.msra.mxu0 0.0
        %1725 = vmatpush.msra.mxu0 0.0
        %1726 = vmatpush.msra.mxu0 0.0
        %1727 = vmatpush.msra.mxu0 0.0
        %1728 = vmatpush.msra.mxu0 0.0
        %1729 = vmatpush.msra.mxu0 %v1707
        %1730 = vmatpush.msra.mxu0 %v1706
        %1731 = vmatpush.msra.mxu0 %v1705
        %1732 = vmatpush.msra.mxu0 %v1704
        %1733 = vmatmul.f32.gmra.mxu0 %v1709
        %v1734 = vpop.f32.mrf.mxu0
        %v1735 = vadd.f32 0.0, %v1734
        %1736 = vmatmul.f32.gmra.mxu0 %v1712
        %v1737 = vpop.f32.mrf.mxu0
        %v1738 = vadd.f32 0.0, %v1737
        %1739 = vmatmul.f32.gmra.mxu0 %v1715
        %v1740 = vpop.f32.mrf.mxu0
        %v1741 = vadd.f32 0.0, %v1740
        %1742 = vdwg.mxu0
        %s1743 = scalar_lea.vmem %s6, 32
        %v1744 = vld [vmem:[%s1743] sm:$0xff]
        %v1745 = vld [vmem:[%s1743 + $0x8] sm:$0xff]
        %v1746 = vld [vmem:[%s1743 + $0x10] sm:$0xff]
        %v1747 = vld [vmem:[%s1743 + $0x18] sm:$0xff]
        %1751 = vrot.lane.b32.xlu0 %v1735, 96
        %v1752 = vpop.permute.xlu0 %1751
        %1753 = vrot.lane.b32.xlu0 %v1738, 96
        %v1754 = vpop.permute.xlu0 %1753
        %1755 = vrot.lane.b32.xlu0 %v1741, 96
        %v1756 = vpop.permute.xlu0 %1755
        %v1757 = vsel %vm765, %v1735, 0
        %v1759 = vsel %vm765, %v1738, 0
        %v1761 = vsel %vm765, %v1741, 0
        %v1763 = vsel %vm765, %v1752, 0
        %v1765 = vsel %vm765, %v1754, 0
        %v1767 = vsel %vm765, %v1756, 0
        %1769 = vmatpush.xpose.msra.mxu0 0.0
        %1770 = vmatpush.xpose.msra.mxu0 0.0
        %1771 = vmatpush.xpose.msra.mxu0 0.0
        %1772 = vmatpush.xpose.msra.mxu0 0.0
        %1773 = vmatpush.xpose.msra.mxu0 0.0
        %1774 = vmatpush.xpose.msra.mxu0 0.0
        %1775 = vmatpush.xpose.msra.mxu0 0.0
        %1776 = vmatpush.xpose.msra.mxu0 0.0
        %1777 = vmatpush.xpose.msra.mxu0 0.0
        %1778 = vmatpush.xpose.msra.mxu0 0.0
        %1779 = vmatpush.xpose.msra.mxu0 0.0
        %1780 = vmatpush.xpose.msra.mxu0 0.0
        %1781 = vmatpush.xpose.msra.mxu0 0.0
        %1782 = vmatpush.xpose.msra.mxu0 %v1767
        %1783 = vmatpush.xpose.msra.mxu0 %v1765
        %1784 = vmatpush.xpose.msra.mxu0 %v1763
        %1785 = vmatmul.f32.gmra.mxu0 %v1757
        %v1786 = vpop.f32.mrf.mxu0
        %v1787 = vadd.f32 %v624, %v1786
        %1788 = vmatmul.f32.gmra.mxu0 %v1759
        %v1789 = vpop.f32.mrf.mxu0
        %v1790 = vadd.f32 %v624, %v1789
        %1791 = vmatmul.f32.gmra.mxu0 %v1761
        %v1792 = vpop.f32.mrf.mxu0
        %v1793 = vadd.f32 %v624, %v1792
        %1794 = vdwg.mxu0
        %v1795 = vsel %vm804, %v1787, -inf
        %1796 = vmax.xlane.f32.xlu0 %v1795
        %v1797 = vpop.xlane.xlu0 %1796
        %v1798 = vsel %vm804, %v1790, -inf
        %1799 = vmax.xlane.f32.xlu0 %v1798
        %v1800 = vpop.xlane.xlu0 %1799
        %v1801 = vsel %vm804, %v1793, -inf
        %1802 = vmax.xlane.f32.xlu0 %v1801
        %v1803 = vpop.xlane.xlu0 %1802
        %v1804 = vsub.f32 %v1787, %v1797
        %v1805 = vsub.f32 %v1790, %v1800
        %v1806 = vsub.f32 %v1793, %v1803
        %v1807 = vmul.f32 %v1804, 1.442695
        %v1808 = vpow.pop %v1807
        %v1809 = vmul.f32 %v1805, 1.442695
        %v1810 = vpow.pop %v1809
        %v1811 = vmul.f32 %v1806, 1.442695
        %v1812 = vpow.pop %v1811
        %v1813 = vsel %vm804, %v1808, 0.0
        %1814 = vadd.xlane.f32.xlu0 %v1813
        %v1815 = vpop.xlane.xlu0 %1814
        %v1816 = vsel %vm804, %v1810, 0.0
        %1817 = vadd.xlane.f32.xlu0 %v1816
        %v1818 = vpop.xlane.xlu0 %1817
        %v1819 = vsel %vm804, %v1812, 0.0
        %1820 = vadd.xlane.f32.xlu0 %v1819
        %v1821 = vpop.xlane.xlu0 %1820
        %v1822 = vrcp.pop %v1815
        %v1823 = vrcp.pop %v1818
        %v1824 = vrcp.pop %v1821
        %v1825 = vmul.f32 %v1808, %v1822
        %v1826 = vmul.f32 %v1810, %v1823
        %v1827 = vmul.f32 %v1812, %v1824
        %1828 = vrot.lane.b32.xlu0 %v1735, 64
        %v1829 = vpop.permute.xlu0 %1828
        %1830 = vrot.lane.b32.xlu0 %v1738, 64
        %v1831 = vpop.permute.xlu0 %1830
        %1832 = vrot.lane.b32.xlu0 %v1741, 64
        %v1833 = vpop.permute.xlu0 %1832
        %v1838 = vsel %vm804, %v1825, 0
        %v1841 = vsel %vm804, %v1826, 0
        %v1844 = vsel %vm804, %v1827, 0
        %1846 = vmatpush.msra.mxu0 0.0
        %1847 = vmatpush.msra.mxu0 0.0
        %1848 = vmatpush.msra.mxu0 0.0
        %1849 = vmatpush.msra.mxu0 0.0
        %1850 = vmatpush.msra.mxu0 0.0
        %1851 = vmatpush.msra.mxu0 0.0
        %1852 = vmatpush.msra.mxu0 0.0
        %1853 = vmatpush.msra.mxu0 0.0
        %1854 = vmatpush.msra.mxu0 0.0
        %1855 = vmatpush.msra.mxu0 0.0
        %1856 = vmatpush.msra.mxu0 0.0
        %1857 = vmatpush.msra.mxu0 0.0
        %1858 = vmatpush.msra.mxu0 0.0
        %1859 = vmatpush.msra.mxu0 %v1833
        %1860 = vmatpush.msra.mxu0 %v1831
        %1861 = vmatpush.msra.mxu0 %v1829
        %1862 = vmatmul.f32.gmra.mxu0 %v1838
        %v1863 = vpop.f32.mrf.mxu0
        %v1864 = vadd.f32 0.0, %v1863
        %1865 = vmatmul.f32.gmra.mxu0 %v1841
        %v1866 = vpop.f32.mrf.mxu0
        %v1867 = vadd.f32 0.0, %v1866
        %1868 = vmatmul.f32.gmra.mxu0 %v1844
        %v1869 = vpop.f32.mrf.mxu0
        %v1870 = vadd.f32 0.0, %v1869
        %1871 = vdwg.mxu0
        %1872 = vrot.lane.b32.xlu0 %v1735, 120
        %v1873 = vpop.permute.xlu0 %1872
        %1874 = vrot.lane.b32.xlu0 %v1738, 120
        %v1875 = vpop.permute.xlu0 %1874
        %1876 = vrot.lane.b32.xlu0 %v1741, 120
        %v1877 = vpop.permute.xlu0 %1876
        %1878 = vrot.lane.b32.xlu0 %v1735, 88
        %v1879 = vpop.permute.xlu0 %1878
        %1880 = vrot.lane.b32.xlu0 %v1738, 88
        %v1881 = vpop.permute.xlu0 %1880
        %1882 = vrot.lane.b32.xlu0 %v1741, 88
        %v1883 = vpop.permute.xlu0 %1882
        %v1884 = vsel %vm765, %v1873, 0
        %v1886 = vsel %vm765, %v1875, 0
        %v1888 = vsel %vm765, %v1877, 0
        %v1890 = vsel %vm765, %v1879, 0
        %v1892 = vsel %vm765, %v1881, 0
        %v1894 = vsel %vm765, %v1883, 0
        %1896 = vmatpush.xpose.msra.mxu0 0.0
        %1897 = vmatpush.xpose.msra.mxu0 0.0
        %1898 = vmatpush.xpose.msra.mxu0 0.0
        %1899 = vmatpush.xpose.msra.mxu0 0.0
        %1900 = vmatpush.xpose.msra.mxu0 0.0
        %1901 = vmatpush.xpose.msra.mxu0 0.0
        %1902 = vmatpush.xpose.msra.mxu0 0.0
        %1903 = vmatpush.xpose.msra.mxu0 0.0
        %1904 = vmatpush.xpose.msra.mxu0 0.0
        %1905 = vmatpush.xpose.msra.mxu0 0.0
        %1906 = vmatpush.xpose.msra.mxu0 0.0
        %1907 = vmatpush.xpose.msra.mxu0 0.0
        %1908 = vmatpush.xpose.msra.mxu0 0.0
        %1909 = vmatpush.xpose.msra.mxu0 %v1894
        %1910 = vmatpush.xpose.msra.mxu0 %v1892
        %1911 = vmatpush.xpose.msra.mxu0 %v1890
        %1912 = vmatmul.f32.gmra.mxu0 %v1884
        %v1913 = vpop.f32.mrf.mxu0
        %v1914 = vadd.f32 %v624, %v1913
        %1915 = vmatmul.f32.gmra.mxu0 %v1886
        %v1916 = vpop.f32.mrf.mxu0
        %v1917 = vadd.f32 %v624, %v1916
        %1918 = vmatmul.f32.gmra.mxu0 %v1888
        %v1919 = vpop.f32.mrf.mxu0
        %v1920 = vadd.f32 %v624, %v1919
        %1921 = vdwg.mxu0
        %v1922 = vsel %vm804, %v1914, -inf
        %1923 = vmax.xlane.f32.xlu0 %v1922
        %v1924 = vpop.xlane.xlu0 %1923
        %v1925 = vsel %vm804, %v1917, -inf
        %1926 = vmax.xlane.f32.xlu0 %v1925
        %v1927 = vpop.xlane.xlu0 %1926
        %v1928 = vsel %vm804, %v1920, -inf
        %1929 = vmax.xlane.f32.xlu0 %v1928
        %v1930 = vpop.xlane.xlu0 %1929
        %v1931 = vsub.f32 %v1914, %v1924
        %v1932 = vsub.f32 %v1917, %v1927
        %v1933 = vsub.f32 %v1920, %v1930
        %v1934 = vmul.f32 %v1931, 1.442695
        %v1935 = vpow.pop %v1934
        %v1936 = vmul.f32 %v1932, 1.442695
        %v1937 = vpow.pop %v1936
        %v1938 = vmul.f32 %v1933, 1.442695
        %v1939 = vpow.pop %v1938
        %v1940 = vsel %vm804, %v1935, 0.0
        %1941 = vadd.xlane.f32.xlu0 %v1940
        %v1942 = vpop.xlane.xlu0 %1941
        %v1943 = vsel %vm804, %v1937, 0.0
        %1944 = vadd.xlane.f32.xlu0 %v1943
        %v1945 = vpop.xlane.xlu0 %1944
        %v1946 = vsel %vm804, %v1939, 0.0
        %1947 = vadd.xlane.f32.xlu0 %v1946
        %v1948 = vpop.xlane.xlu0 %1947
        %v1949 = vrcp.pop %v1942
        %v1950 = vrcp.pop %v1945
        %v1951 = vrcp.pop %v1948
        %v1952 = vmul.f32 %v1935, %v1949
        %v1953 = vmul.f32 %v1937, %v1950
        %v1954 = vmul.f32 %v1939, %v1951
        %1955 = vrot.lane.b32.xlu0 %v1735, 56
        %v1956 = vpop.permute.xlu0 %1955
        %1957 = vrot.lane.b32.xlu0 %v1738, 56
        %v1958 = vpop.permute.xlu0 %1957
        %1959 = vrot.lane.b32.xlu0 %v1741, 56
        %v1960 = vpop.permute.xlu0 %1959
        %v1965 = vsel %vm804, %v1952, 0
        %v1968 = vsel %vm804, %v1953, 0
        %v1971 = vsel %vm804, %v1954, 0
        %1973 = vmatpush.msra.mxu0 0.0
        %1974 = vmatpush.msra.mxu0 0.0
        %1975 = vmatpush.msra.mxu0 0.0
        %1976 = vmatpush.msra.mxu0 0.0
        %1977 = vmatpush.msra.mxu0 0.0
        %1978 = vmatpush.msra.mxu0 0.0
        %1979 = vmatpush.msra.mxu0 0.0
        %1980 = vmatpush.msra.mxu0 0.0
        %1981 = vmatpush.msra.mxu0 0.0
        %1982 = vmatpush.msra.mxu0 0.0
        %1983 = vmatpush.msra.mxu0 0.0
        %1984 = vmatpush.msra.mxu0 0.0
        %1985 = vmatpush.msra.mxu0 0.0
        %1986 = vmatpush.msra.mxu0 %v1960
        %1987 = vmatpush.msra.mxu0 %v1958
        %1988 = vmatpush.msra.mxu0 %v1956
        %1989 = vmatmul.f32.gmra.mxu0 %v1965
        %v1990 = vpop.f32.mrf.mxu0
        %v1991 = vadd.f32 0.0, %v1990
        %1992 = vmatmul.f32.gmra.mxu0 %v1968
        %v1993 = vpop.f32.mrf.mxu0
        %v1994 = vadd.f32 0.0, %v1993
        %1995 = vmatmul.f32.gmra.mxu0 %v1971
        %v1996 = vpop.f32.mrf.mxu0
        %v1997 = vadd.f32 0.0, %v1996
        %1998 = vdwg.mxu0
        %v2000 = vsel %vm765, %v1991, 0
        %v2003 = vsel %vm765, %v1994, 0
        %v2006 = vsel %vm765, %v1997, 0
        %2008 = vmatpush.msra.mxu0 0.0
        %2009 = vmatpush.msra.mxu0 0.0
        %2010 = vmatpush.msra.mxu0 0.0
        %2011 = vmatpush.msra.mxu0 0.0
        %2012 = vmatpush.msra.mxu0 0.0
        %2013 = vmatpush.msra.mxu0 0.0
        %2014 = vmatpush.msra.mxu0 0.0
        %2015 = vmatpush.msra.mxu0 0.0
        %2016 = vmatpush.msra.mxu0 0.0
        %2017 = vmatpush.msra.mxu0 0.0
        %2018 = vmatpush.msra.mxu0 0.0
        %2019 = vmatpush.msra.mxu0 0.0
        %2020 = vmatpush.msra.mxu0 0.0
        %2021 = vmatpush.msra.mxu0 0.0
        %2022 = vmatpush.msra.mxu0 0.0
        %2023 = vmatpush.msra.mxu0 %v1745
        %2024 = vmatmul.f32.gmra.mxu0 %v2000
        %v2025 = vpop.f32.mrf.mxu0
        %v2026 = vadd.f32 0.0, %v2025
        %2027 = vmatmul.f32.gmra.mxu0 %v2003
        %v2028 = vpop.f32.mrf.mxu0
        %v2029 = vadd.f32 0.0, %v2028
        %2030 = vmatmul.f32.gmra.mxu0 %v2006
        %v2031 = vpop.f32.mrf.mxu0
        %v2032 = vadd.f32 0.0, %v2031
        %2033 = vdwg.mxu0
        %v2035 = vsel %vm765, %v1864, 0
        %v2038 = vsel %vm765, %v1867, 0
        %v2041 = vsel %vm765, %v1870, 0
        %2043 = vmatpush.msra.mxu0 0.0
        %2044 = vmatpush.msra.mxu0 0.0
        %2045 = vmatpush.msra.mxu0 0.0
        %2046 = vmatpush.msra.mxu0 0.0
        %2047 = vmatpush.msra.mxu0 0.0
        %2048 = vmatpush.msra.mxu0 0.0
        %2049 = vmatpush.msra.mxu0 0.0
        %2050 = vmatpush.msra.mxu0 0.0
        %2051 = vmatpush.msra.mxu0 0.0
        %2052 = vmatpush.msra.mxu0 0.0
        %2053 = vmatpush.msra.mxu0 0.0
        %2054 = vmatpush.msra.mxu0 0.0
        %2055 = vmatpush.msra.mxu0 0.0
        %2056 = vmatpush.msra.mxu0 0.0
        %2057 = vmatpush.msra.mxu0 0.0
        %2058 = vmatpush.msra.mxu0 %v1744
        %2059 = vmatmul.f32.gmra.mxu0 %v2035
        %v2060 = vpop.f32.mrf.mxu0
        %v2061 = vadd.f32 %v2026, %v2060
        %2062 = vmatmul.f32.gmra.mxu0 %v2038
        %v2063 = vpop.f32.mrf.mxu0
        %v2064 = vadd.f32 %v2029, %v2063
        %2065 = vmatmul.f32.gmra.mxu0 %v2041
        %v2066 = vpop.f32.mrf.mxu0
        %v2067 = vadd.f32 %v2032, %v2066
        %2068 = vdwg.mxu0
        %2069 = vrot.lane.b32.xlu0 %v1735, 112
        %v2070 = vpop.permute.xlu0 %2069
        %2071 = vrot.lane.b32.xlu0 %v1738, 112
        %v2072 = vpop.permute.xlu0 %2071
        %2073 = vrot.lane.b32.xlu0 %v1741, 112
        %v2074 = vpop.permute.xlu0 %2073
        %2075 = vrot.lane.b32.xlu0 %v1735, 80
        %v2076 = vpop.permute.xlu0 %2075
        %2077 = vrot.lane.b32.xlu0 %v1738, 80
        %v2078 = vpop.permute.xlu0 %2077
        %2079 = vrot.lane.b32.xlu0 %v1741, 80
        %v2080 = vpop.permute.xlu0 %2079
        %v2081 = vsel %vm765, %v2070, 0
        %v2083 = vsel %vm765, %v2072, 0
        %v2085 = vsel %vm765, %v2074, 0
        %v2087 = vsel %vm765, %v2076, 0
        %v2089 = vsel %vm765, %v2078, 0
        %v2091 = vsel %vm765, %v2080, 0
        %2093 = vmatpush.xpose.msra.mxu0 0.0
        %2094 = vmatpush.xpose.msra.mxu0 0.0
        %2095 = vmatpush.xpose.msra.mxu0 0.0
        %2096 = vmatpush.xpose.msra.mxu0 0.0
        %2097 = vmatpush.xpose.msra.mxu0 0.0
        %2098 = vmatpush.xpose.msra.mxu0 0.0
        %2099 = vmatpush.xpose.msra.mxu0 0.0
        %2100 = vmatpush.xpose.msra.mxu0 0.0
        %2101 = vmatpush.xpose.msra.mxu0 0.0
        %2102 = vmatpush.xpose.msra.mxu0 0.0
        %2103 = vmatpush.xpose.msra.mxu0 0.0
        %2104 = vmatpush.xpose.msra.mxu0 0.0
        %2105 = vmatpush.xpose.msra.mxu0 0.0
        %2106 = vmatpush.xpose.msra.mxu0 %v2091
        %2107 = vmatpush.xpose.msra.mxu0 %v2089
        %2108 = vmatpush.xpose.msra.mxu0 %v2087
        %2109 = vmatmul.f32.gmra.mxu0 %v2081
        %v2110 = vpop.f32.mrf.mxu0
        %v2111 = vadd.f32 %v624, %v2110
        %2112 = vmatmul.f32.gmra.mxu0 %v2083
        %v2113 = vpop.f32.mrf.mxu0
        %v2114 = vadd.f32 %v624, %v2113
        %2115 = vmatmul.f32.gmra.mxu0 %v2085
        %v2116 = vpop.f32.mrf.mxu0
        %v2117 = vadd.f32 %v624, %v2116
        %2118 = vdwg.mxu0
        %v2119 = vsel %vm804, %v2111, -inf
        %2120 = vmax.xlane.f32.xlu0 %v2119
        %v2121 = vpop.xlane.xlu0 %2120
        %v2122 = vsel %vm804, %v2114, -inf
        %2123 = vmax.xlane.f32.xlu0 %v2122
        %v2124 = vpop.xlane.xlu0 %2123
        %v2125 = vsel %vm804, %v2117, -inf
        %2126 = vmax.xlane.f32.xlu0 %v2125
        %v2127 = vpop.xlane.xlu0 %2126
        %v2128 = vsub.f32 %v2111, %v2121
        %v2129 = vsub.f32 %v2114, %v2124
        %v2130 = vsub.f32 %v2117, %v2127
        %v2131 = vmul.f32 %v2128, 1.442695
        %v2132 = vpow.pop %v2131
        %v2133 = vmul.f32 %v2129, 1.442695
        %v2134 = vpow.pop %v2133
        %v2135 = vmul.f32 %v2130, 1.442695
        %v2136 = vpow.pop %v2135
        %v2137 = vsel %vm804, %v2132, 0.0
        %2138 = vadd.xlane.f32.xlu0 %v2137
        %v2139 = vpop.xlane.xlu0 %2138
        %v2140 = vsel %vm804, %v2134, 0.0
        %2141 = vadd.xlane.f32.xlu0 %v2140
        %v2142 = vpop.xlane.xlu0 %2141
        %v2143 = vsel %vm804, %v2136, 0.0
        %2144 = vadd.xlane.f32.xlu0 %v2143
        %v2145 = vpop.xlane.xlu0 %2144
        %v2146 = vrcp.pop %v2139
        %v2147 = vrcp.pop %v2142
        %v2148 = vrcp.pop %v2145
        %v2149 = vmul.f32 %v2132, %v2146
        %v2150 = vmul.f32 %v2134, %v2147
        %v2151 = vmul.f32 %v2136, %v2148
        %2152 = vrot.lane.b32.xlu0 %v1735, 48
        %v2153 = vpop.permute.xlu0 %2152
        %2154 = vrot.lane.b32.xlu0 %v1738, 48
        %v2155 = vpop.permute.xlu0 %2154
        %2156 = vrot.lane.b32.xlu0 %v1741, 48
        %v2157 = vpop.permute.xlu0 %2156
        %v2162 = vsel %vm804, %v2149, 0
        %v2165 = vsel %vm804, %v2150, 0
        %v2168 = vsel %vm804, %v2151, 0
        %2170 = vmatpush.msra.mxu0 0.0
        %2171 = vmatpush.msra.mxu0 0.0
        %2172 = vmatpush.msra.mxu0 0.0
        %2173 = vmatpush.msra.mxu0 0.0
        %2174 = vmatpush.msra.mxu0 0.0
        %2175 = vmatpush.msra.mxu0 0.0
        %2176 = vmatpush.msra.mxu0 0.0
        %2177 = vmatpush.msra.mxu0 0.0
        %2178 = vmatpush.msra.mxu0 0.0
        %2179 = vmatpush.msra.mxu0 0.0
        %2180 = vmatpush.msra.mxu0 0.0
        %2181 = vmatpush.msra.mxu0 0.0
        %2182 = vmatpush.msra.mxu0 0.0
        %2183 = vmatpush.msra.mxu0 %v2157
        %2184 = vmatpush.msra.mxu0 %v2155
        %2185 = vmatpush.msra.mxu0 %v2153
        %2186 = vmatmul.f32.gmra.mxu0 %v2162
        %v2187 = vpop.f32.mrf.mxu0
        %v2188 = vadd.f32 0.0, %v2187
        %2189 = vmatmul.f32.gmra.mxu0 %v2165
        %v2190 = vpop.f32.mrf.mxu0
        %v2191 = vadd.f32 0.0, %v2190
        %2192 = vmatmul.f32.gmra.mxu0 %v2168
        %v2193 = vpop.f32.mrf.mxu0
        %v2194 = vadd.f32 0.0, %v2193
        %2195 = vdwg.mxu0
        %v2197 = vsel %vm765, %v2188, 0
        %v2200 = vsel %vm765, %v2191, 0
        %v2203 = vsel %vm765, %v2194, 0
        %2205 = vmatpush.msra.mxu0 0.0
        %2206 = vmatpush.msra.mxu0 0.0
        %2207 = vmatpush.msra.mxu0 0.0
        %2208 = vmatpush.msra.mxu0 0.0
        %2209 = vmatpush.msra.mxu0 0.0
        %2210 = vmatpush.msra.mxu0 0.0
        %2211 = vmatpush.msra.mxu0 0.0
        %2212 = vmatpush.msra.mxu0 0.0
        %2213 = vmatpush.msra.mxu0 0.0
        %2214 = vmatpush.msra.mxu0 0.0
        %2215 = vmatpush.msra.mxu0 0.0
        %2216 = vmatpush.msra.mxu0 0.0
        %2217 = vmatpush.msra.mxu0 0.0
        %2218 = vmatpush.msra.mxu0 0.0
        %2219 = vmatpush.msra.mxu0 0.0
        %2220 = vmatpush.msra.mxu0 %v1746
        %2221 = vmatmul.f32.gmra.mxu0 %v2197
        %v2222 = vpop.f32.mrf.mxu0
        %v2223 = vadd.f32 0.0, %v2222
        %2224 = vmatmul.f32.gmra.mxu0 %v2200
        %v2225 = vpop.f32.mrf.mxu0
        %v2226 = vadd.f32 0.0, %v2225
        %2227 = vmatmul.f32.gmra.mxu0 %v2203
        %v2228 = vpop.f32.mrf.mxu0
        %v2229 = vadd.f32 0.0, %v2228
        %2230 = vdwg.mxu0
        %v2231 = vadd.f32 %v2061, %v2223
        %v2232 = vadd.f32 %v2064, %v2226
        %v2233 = vadd.f32 %v2067, %v2229
        %2234 = vrot.lane.b32.xlu0 %v1735, 104
        %v2235 = vpop.permute.xlu0 %2234
        %2236 = vrot.lane.b32.xlu0 %v1738, 104
        %v2237 = vpop.permute.xlu0 %2236
        %2238 = vrot.lane.b32.xlu0 %v1741, 104
        %v2239 = vpop.permute.xlu0 %2238
        %2240 = vrot.lane.b32.xlu0 %v1735, 72
        %v2241 = vpop.permute.xlu0 %2240
        %2242 = vrot.lane.b32.xlu0 %v1738, 72
        %v2243 = vpop.permute.xlu0 %2242
        %2244 = vrot.lane.b32.xlu0 %v1741, 72
        %v2245 = vpop.permute.xlu0 %2244
        %v2246 = vsel %vm765, %v2235, 0
        %v2248 = vsel %vm765, %v2237, 0
        %v2250 = vsel %vm765, %v2239, 0
        %v2252 = vsel %vm765, %v2241, 0
        %v2254 = vsel %vm765, %v2243, 0
        %v2256 = vsel %vm765, %v2245, 0
        %2258 = vmatpush.xpose.msra.mxu0 0.0
        %2259 = vmatpush.xpose.msra.mxu0 0.0
        %2260 = vmatpush.xpose.msra.mxu0 0.0
        %2261 = vmatpush.xpose.msra.mxu0 0.0
        %2262 = vmatpush.xpose.msra.mxu0 0.0
        %2263 = vmatpush.xpose.msra.mxu0 0.0
        %2264 = vmatpush.xpose.msra.mxu0 0.0
        %2265 = vmatpush.xpose.msra.mxu0 0.0
        %2266 = vmatpush.xpose.msra.mxu0 0.0
        %2267 = vmatpush.xpose.msra.mxu0 0.0
        %2268 = vmatpush.xpose.msra.mxu0 0.0
        %2269 = vmatpush.xpose.msra.mxu0 0.0
        %2270 = vmatpush.xpose.msra.mxu0 0.0
        %2271 = vmatpush.xpose.msra.mxu0 %v2256
        %2272 = vmatpush.xpose.msra.mxu0 %v2254
        %2273 = vmatpush.xpose.msra.mxu0 %v2252
        %2274 = vmatmul.f32.gmra.mxu0 %v2246
        %v2275 = vpop.f32.mrf.mxu0
        %v2276 = vadd.f32 %v624, %v2275
        %2277 = vmatmul.f32.gmra.mxu0 %v2248
        %v2278 = vpop.f32.mrf.mxu0
        %v2279 = vadd.f32 %v624, %v2278
        %2280 = vmatmul.f32.gmra.mxu0 %v2250
        %v2281 = vpop.f32.mrf.mxu0
        %v2282 = vadd.f32 %v624, %v2281
        %2283 = vdwg.mxu0
        %v2284 = vsel %vm804, %v2276, -inf
        %2285 = vmax.xlane.f32.xlu0 %v2284
        %v2286 = vpop.xlane.xlu0 %2285
        %v2287 = vsel %vm804, %v2279, -inf
        %2288 = vmax.xlane.f32.xlu0 %v2287
        %v2289 = vpop.xlane.xlu0 %2288
        %v2290 = vsel %vm804, %v2282, -inf
        %2291 = vmax.xlane.f32.xlu0 %v2290
        %v2292 = vpop.xlane.xlu0 %2291
        %v2293 = vsub.f32 %v2276, %v2286
        %v2294 = vsub.f32 %v2279, %v2289
        %v2295 = vsub.f32 %v2282, %v2292
        %v2296 = vmul.f32 %v2293, 1.442695
        %v2297 = vpow.pop %v2296
        %v2298 = vmul.f32 %v2294, 1.442695
        %v2299 = vpow.pop %v2298
        %v2300 = vmul.f32 %v2295, 1.442695
        %v2301 = vpow.pop %v2300
        %v2302 = vsel %vm804, %v2297, 0.0
        %2303 = vadd.xlane.f32.xlu0 %v2302
        %v2304 = vpop.xlane.xlu0 %2303
        %v2305 = vsel %vm804, %v2299, 0.0
        %2306 = vadd.xlane.f32.xlu0 %v2305
        %v2307 = vpop.xlane.xlu0 %2306
        %v2308 = vsel %vm804, %v2301, 0.0
        %2309 = vadd.xlane.f32.xlu0 %v2308
        %v2310 = vpop.xlane.xlu0 %2309
        %v2311 = vrcp.pop %v2304
        %v2312 = vrcp.pop %v2307
        %v2313 = vrcp.pop %v2310
        %v2314 = vmul.f32 %v2297, %v2311
        %v2315 = vmul.f32 %v2299, %v2312
        %v2316 = vmul.f32 %v2301, %v2313
        %2317 = vrot.lane.b32.xlu0 %v1735, 40
        %v2318 = vpop.permute.xlu0 %2317
        %2319 = vrot.lane.b32.xlu0 %v1738, 40
        %v2320 = vpop.permute.xlu0 %2319
        %2321 = vrot.lane.b32.xlu0 %v1741, 40
        %v2322 = vpop.permute.xlu0 %2321
        %v2327 = vsel %vm804, %v2314, 0
        %v2330 = vsel %vm804, %v2315, 0
        %v2333 = vsel %vm804, %v2316, 0
        %2335 = vmatpush.msra.mxu0 0.0
        %2336 = vmatpush.msra.mxu0 0.0
        %2337 = vmatpush.msra.mxu0 0.0
        %2338 = vmatpush.msra.mxu0 0.0
        %2339 = vmatpush.msra.mxu0 0.0
        %2340 = vmatpush.msra.mxu0 0.0
        %2341 = vmatpush.msra.mxu0 0.0
        %2342 = vmatpush.msra.mxu0 0.0
        %2343 = vmatpush.msra.mxu0 0.0
        %2344 = vmatpush.msra.mxu0 0.0
        %2345 = vmatpush.msra.mxu0 0.0
        %2346 = vmatpush.msra.mxu0 0.0
        %2347 = vmatpush.msra.mxu0 0.0
        %2348 = vmatpush.msra.mxu0 %v2322
        %2349 = vmatpush.msra.mxu0 %v2320
        %2350 = vmatpush.msra.mxu0 %v2318
        %2351 = vmatmul.f32.gmra.mxu0 %v2327
        %v2352 = vpop.f32.mrf.mxu0
        %v2353 = vadd.f32 0.0, %v2352
        %2354 = vmatmul.f32.gmra.mxu0 %v2330
        %v2355 = vpop.f32.mrf.mxu0
        %v2356 = vadd.f32 0.0, %v2355
        %2357 = vmatmul.f32.gmra.mxu0 %v2333
        %v2358 = vpop.f32.mrf.mxu0
        %v2359 = vadd.f32 0.0, %v2358
        %2360 = vdwg.mxu0
        %v2362 = vsel %vm765, %v2353, 0
        %v2365 = vsel %vm765, %v2356, 0
        %v2368 = vsel %vm765, %v2359, 0
        %2370 = vmatpush.msra.mxu0 0.0
        %2371 = vmatpush.msra.mxu0 0.0
        %2372 = vmatpush.msra.mxu0 0.0
        %2373 = vmatpush.msra.mxu0 0.0
        %2374 = vmatpush.msra.mxu0 0.0
        %2375 = vmatpush.msra.mxu0 0.0
        %2376 = vmatpush.msra.mxu0 0.0
        %2377 = vmatpush.msra.mxu0 0.0
        %2378 = vmatpush.msra.mxu0 0.0
        %2379 = vmatpush.msra.mxu0 0.0
        %2380 = vmatpush.msra.mxu0 0.0
        %2381 = vmatpush.msra.mxu0 0.0
        %2382 = vmatpush.msra.mxu0 0.0
        %2383 = vmatpush.msra.mxu0 0.0
        %2384 = vmatpush.msra.mxu0 0.0
        %2385 = vmatpush.msra.mxu0 %v1747
        %2386 = vmatmul.f32.gmra.mxu0 %v2362
        %v2387 = vpop.f32.mrf.mxu0
        %v2388 = vadd.f32 0.0, %v2387
        %2389 = vmatmul.f32.gmra.mxu0 %v2365
        %v2390 = vpop.f32.mrf.mxu0
        %v2391 = vadd.f32 0.0, %v2390
        %2392 = vmatmul.f32.gmra.mxu0 %v2368
        %v2393 = vpop.f32.mrf.mxu0
        %v2394 = vadd.f32 0.0, %v2393
        %2395 = vdwg.mxu0
        %v2396 = vadd.f32 %v2231, %v2388
        %v2397 = vadd.f32 %v2232, %v2391
        %v2398 = vadd.f32 %v2233, %v2394
        %v2399 = vadd.f32 %v1618, %v2396
        %v2400 = vadd.f32 %v1619, %v2397
        %v2401 = vadd.f32 %v1620, %v2398
        %s2402 = scalar_lea.vmem %s7, 1
        %v2403 = vld [vmem:[%s2402] sm:$0x1]
        %v2405 = vperm.slane %v2403, 0
        %v2407 = vadd.f32 %v2399, %v2405
        %v2408 = vadd.f32 %v2400, %v2405
        %v2409 = vadd.f32 %v2401, %v2405
        %s2410 = scalar_lea.vmem %s8, 1
        %v2411 = vld [vmem:[%s2410] sm:$0x1]
        %s2412 = scalar_lea.vmem %s9, 1
        %v2413 = vld [vmem:[%s2412] sm:$0x1]
        %v2414 = vsel %vm627, %v2407, 0.0
        %2415 = vadd.xlane.f32.xlu0 %v2414
        %v2416 = vpop.xlane.xlu0 %2415
        %v2417 = vsel %vm627, %v2408, 0.0
        %2418 = vadd.xlane.f32.xlu0 %v2417
        %v2419 = vpop.xlane.xlu0 %2418
        %v2420 = vsel %vm627, %v2409, 0.0
        %2421 = vadd.xlane.f32.xlu0 %v2420
        %v2422 = vpop.xlane.xlu0 %2421
        %v2423 = vmul.f32 %v2416, %v643
        %v2424 = vmul.f32 %v2419, %v643
        %v2425 = vmul.f32 %v2422, %v643
        %v2426 = vsub.f32 %v2407, %v2423
        %v2427 = vsub.f32 %v2408, %v2424
        %v2428 = vsub.f32 %v2409, %v2425
        %v2429 = vmul.f32 %v2426, %v2426
        %v2430 = vmul.f32 %v2427, %v2427
        %v2431 = vmul.f32 %v2428, %v2428
        %v2432 = vsel %vm627, %v2429, 0.0
        %2433 = vadd.xlane.f32.xlu0 %v2432
        %v2434 = vpop.xlane.xlu0 %2433
        %v2435 = vsel %vm627, %v2430, 0.0
        %2436 = vadd.xlane.f32.xlu0 %v2435
        %v2437 = vpop.xlane.xlu0 %2436
        %v2438 = vsel %vm627, %v2431, 0.0
        %2439 = vadd.xlane.f32.xlu0 %v2438
        %v2440 = vpop.xlane.xlu0 %2439
        %v2441 = vmul.f32 %v2434, %v643
        %v2442 = vmul.f32 %v2437, %v643
        %v2443 = vmul.f32 %v2440, %v643
        %v2444 = vadd.f32 %v2441, 1e-05
        %v2445 = vadd.f32 %v2442, 1e-05
        %v2446 = vadd.f32 %v2443, 1e-05
        %v2447 = vrsqrt.pop %v2444
        %v2448 = vmul.f32 %v2447, %v2444
        %v2449 = vmul.f32 %v2448, %v2447
        %v2450 = vmul.f32 0.5, %v2449
        %v2451 = vsub.f32 1.5, %v2450
        %v2452 = vmul.f32 %v2447, %v2451
        %vm2453 = vweird.f32 %v2444
        %vm2454 = vweird.f32 %v2447
        %vm2455 = vmor %vm2453, %vm2454
        %v2456 = vsel %vm2455, %v2447, %v2452
        %v2457 = vrsqrt.pop %v2445
        %v2458 = vmul.f32 %v2457, %v2445
        %v2459 = vmul.f32 %v2458, %v2457
        %v2460 = vmul.f32 0.5, %v2459
        %v2461 = vsub.f32 1.5, %v2460
        %v2462 = vmul.f32 %v2457, %v2461
        %vm2463 = vweird.f32 %v2445
        %vm2464 = vweird.f32 %v2457
        %vm2465 = vmor %vm2463, %vm2464
        %v2466 = vsel %vm2465, %v2457, %v2462
        %v2467 = vrsqrt.pop %v2446
        %v2468 = vmul.f32 %v2467, %v2446
        %v2469 = vmul.f32 %v2468, %v2467
        %v2470 = vmul.f32 0.5, %v2469
        %v2471 = vsub.f32 1.5, %v2470
        %v2472 = vmul.f32 %v2467, %v2471
        %vm2473 = vweird.f32 %v2446
        %vm2474 = vweird.f32 %v2467
        %vm2475 = vmor %vm2473, %vm2474
        %v2476 = vsel %vm2475, %v2467, %v2472
        %v2477 = vmul.f32 %v2426, %v2456
        %v2478 = vmul.f32 %v2427, %v2466
        %v2479 = vmul.f32 %v2428, %v2476
        %v2481 = vperm.slane %v2411, 0
        %v2483 = vmul.f32 %v2477, %v2481
        %v2484 = vmul.f32 %v2478, %v2481
        %v2485 = vmul.f32 %v2479, %v2481
        %v2487 = vperm.slane %v2413, 0
        %v2489 = vadd.f32 %v2483, %v2487
        %v2490 = vadd.f32 %v2484, %v2487
        %v2491 = vadd.f32 %v2485, %v2487
        %s2492 = scalar_lea.vmem %s10, 32
        %v2493 = vld [vmem:[%s2492] sm:$0xff]
        %v2494 = vld [vmem:[%s2492 + $0x8] sm:$0xff]
        %v2495 = vld [vmem:[%s2492 + $0x10] sm:$0xff]
        %v2496 = vld [vmem:[%s2492 + $0x18] sm:$0xff]
        %s2497 = scalar_lea.vmem %s11, 1
        %v2498 = vld [vmem:[%s2497] sm:$0x1]
        %v2500 = vperm.slane %v2498, 0
        %v2503 = vsel %vm627, %v2489, 0
        %v2506 = vsel %vm627, %v2490, 0
        %v2509 = vsel %vm627, %v2491, 0
        %2511 = vmatpush.msra.mxu0 0.0
        %2512 = vmatpush.msra.mxu0 0.0
        %2513 = vmatpush.msra.mxu0 0.0
        %2514 = vmatpush.msra.mxu0 0.0
        %2515 = vmatpush.msra.mxu0 0.0
        %2516 = vmatpush.msra.mxu0 0.0
        %2517 = vmatpush.msra.mxu0 0.0
        %2518 = vmatpush.msra.mxu0 0.0
        %2519 = vmatpush.msra.mxu0 0.0
        %2520 = vmatpush.msra.mxu0 0.0
        %2521 = vmatpush.msra.mxu0 0.0
        %2522 = vmatpush.msra.mxu0 0.0
        %2523 = vmatpush.msra.mxu0 %v2496
        %2524 = vmatpush.msra.mxu0 %v2495
        %2525 = vmatpush.msra.mxu0 %v2494
        %2526 = vmatpush.msra.mxu0 %v2493
        %2527 = vmatmul.f32.gmra.mxu0 %v2503
        %v2528 = vpop.f32.mrf.mxu0
        %v2529 = vadd.f32 %v2500, %v2528
        %2530 = vmatmul.f32.gmra.mxu0 %v2506
        %v2531 = vpop.f32.mrf.mxu0
        %v2532 = vadd.f32 %v2500, %v2531
        %2533 = vmatmul.f32.gmra.mxu0 %v2509
        %v2534 = vpop.f32.mrf.mxu0
        %v2535 = vadd.f32 %v2500, %v2534
        %2536 = vdwg.mxu0
        %v2537 = vmul.f32 %v2529, 0.5
        %v2538 = vmul.f32 %v2532, 0.5
        %v2539 = vmul.f32 %v2535, 0.5
        %v2540 = vmul.f32 %v2529, 0.044715
        %v2541 = vmul.f32 %v2532, 0.044715
        %v2542 = vmul.f32 %v2535, 0.044715
        %v2543 = vmul.f32 %v2540, %v2529
        %v2544 = vmul.f32 %v2541, %v2532
        %v2545 = vmul.f32 %v2542, %v2535
        %v2546 = vmul.f32 %v2543, %v2529
        %v2547 = vmul.f32 %v2544, %v2532
        %v2548 = vmul.f32 %v2545, %v2535
        %v2549 = vadd.f32 %v2529, %v2546
        %v2550 = vadd.f32 %v2532, %v2547
        %v2551 = vadd.f32 %v2535, %v2548
        %v2552 = vmul.f32 %v2549, 0.7978846
        %v2553 = vmul.f32 %v2550, 0.7978846
        %v2554 = vmul.f32 %v2551, 0.7978846
        %v2555 = vtanh.pop %v2552
        %v2556 = vtanh.pop %v2553
        %v2557 = vtanh.pop %v2554
        %v2558 = vadd.f32 %v2555, 1.0
        %v2559 = vadd.f32 %v2556, 1.0
        %v2560 = vadd.f32 %v2557, 1.0
        %v2561 = vmul.f32 %v2537, %v2558
        %v2562 = vmul.f32 %v2538, %v2559
        %v2563 = vmul.f32 %v2539, %v2560
        %s2564 = scalar_lea.vmem %s12, 128
        %v2565 = vld [vmem:[%s2564] sm:$0xff]
        %v2566 = vld [vmem:[%s2564 + $0x8] sm:$0xff]
        %v2567 = vld [vmem:[%s2564 + $0x10] sm:$0xff]
        %v2568 = vld [vmem:[%s2564 + $0x18] sm:$0xff]
        %v2569 = vld [vmem:[%s2564 + $0x20] sm:$0xff]
        %v2570 = vld [vmem:[%s2564 + $0x28] sm:$0xff]
        %v2571 = vld [vmem:[%s2564 + $0x30] sm:$0xff]
        %v2572 = vld [vmem:[%s2564 + $0x38] sm:$0xff]
        %v2573 = vld [vmem:[%s2564 + $0x40] sm:$0xff]
        %v2574 = vld [vmem:[%s2564 + $0x48] sm:$0xff]
        %v2575 = vld [vmem:[%s2564 + $0x50] sm:$0xff]
        %v2576 = vld [vmem:[%s2564 + $0x58] sm:$0xff]
        %v2577 = vld [vmem:[%s2564 + $0x60] sm:$0xff]
        %v2578 = vld [vmem:[%s2564 + $0x68] sm:$0xff]
        %v2579 = vld [vmem:[%s2564 + $0x70] sm:$0xff]
        %v2580 = vld [vmem:[%s2564 + $0x78] sm:$0xff]
        %2581 = vmatpush.msra.mxu0 %v2580
        %2582 = vmatpush.msra.mxu0 %v2579
        %2583 = vmatpush.msra.mxu0 %v2578
        %2584 = vmatpush.msra.mxu0 %v2577
        %2585 = vmatpush.msra.mxu0 %v2576
        %2586 = vmatpush.msra.mxu0 %v2575
        %2587 = vmatpush.msra.mxu0 %v2574
        %2588 = vmatpush.msra.mxu0 %v2573
        %2589 = vmatpush.msra.mxu0 %v2572
        %2590 = vmatpush.msra.mxu0 %v2571
        %2591 = vmatpush.msra.mxu0 %v2570
        %2592 = vmatpush.msra.mxu0 %v2569
        %2593 = vmatpush.msra.mxu0 %v2568
        %2594 = vmatpush.msra.mxu0 %v2567
        %2595 = vmatpush.msra.mxu0 %v2566
        %2596 = vmatpush.msra.mxu0 %v2565
        %2597 = vmatmul.f32.gmra.mxu0 %v2561
        %v2598 = vpop.f32.mrf.mxu0
        %v2599 = vadd.f32 0.0, %v2598
        %2600 = vmatmul.f32.gmra.mxu0 %v2562
        %v2601 = vpop.f32.mrf.mxu0
        %2602 = vmatmul.f32.gmra.mxu0 %v2563
        %v2603 = vpop.f32.mrf.mxu0
        %2604 = vdwg.mxu0
        %v2605 = vadd.f32 %v2407, %v2599
        %s2606 = scalar_lea.vmem %s13, 1
        %v2607 = vld [vmem:[%s2606] sm:$0x1]
        %v2609 = vperm.slane %v2607, 0
        %v2611 = vadd.f32 %v2605, %v2609
        %v2612 = vld [vmem:[%s14] sm:$0x1]
        %v2613 = vld [vmem:[%s15] sm:$0x1]
        %vm2614 = vcmask 253952
        %v2615 = vsel %vm2614, %v2611, 0.0
        %2616 = vadd.xlane.f32.xlu0 %v2615
        %v2617 = vpop.xlane.xlu0 %2616
        %v2618 = vmul.f32 %v2617, %v643
        %v2619 = vsub.f32 %v2611, %v2618
        %v2620 = vmul.f32 %v2619, %v2619
        %v2621 = vsel %vm2614, %v2620, 0.0
        %2622 = vadd.xlane.f32.xlu0 %v2621
        %v2623 = vpop.xlane.xlu0 %2622
        %v2624 = vmul.f32 %v2623, %v643
        %v2625 = vadd.f32 %v2624, 1e-05
        %v2626 = vrsqrt.pop %v2625
        %v2627 = vmul.f32 %v2626, %v2625
        %v2628 = vmul.f32 %v2627, %v2626
        %v2629 = vmul.f32 0.5, %v2628
        %v2630 = vsub.f32 1.5, %v2629
        %v2631 = vmul.f32 %v2626, %v2630
        %vm2632 = vweird.f32 %v2625
        %vm2633 = vweird.f32 %v2626
        %vm2634 = vmor %vm2632, %vm2633
        %v2635 = vsel %vm2634, %v2626, %v2631
        %v2636 = vmul.f32 %v2619, %v2635
        %v2637 = vmul.f32 %v2636, %v2612
        %v2638 = vadd.f32 %v2637, %v2613
        %v2639 = vld [vmem:[%s16] sm:$0xff]
        %v2640 = vld [vmem:[%s16 + $0x8] sm:$0xff]
        %v2641 = vld [vmem:[%s16 + $0x10] sm:$0xff]
        %v2642 = vld [vmem:[%s16 + $0x18] sm:$0xff]
        %v2643 = vld [vmem:[%s17] sm:$0x1]
        %v2645 = vsel %vm627, %v2638, 0
        %2647 = vmatpush.msra.mxu0 0.0
        %2648 = vmatpush.msra.mxu0 0.0
        %2649 = vmatpush.msra.mxu0 0.0
        %2650 = vmatpush.msra.mxu0 0.0
        %2651 = vmatpush.msra.mxu0 0.0
        %2652 = vmatpush.msra.mxu0 0.0
        %2653 = vmatpush.msra.mxu0 0.0
        %2654 = vmatpush.msra.mxu0 0.0
        %2655 = vmatpush.msra.mxu0 0.0
        %2656 = vmatpush.msra.mxu0 0.0
        %2657 = vmatpush.msra.mxu0 0.0
        %2658 = vmatpush.msra.mxu0 0.0
        %2659 = vmatpush.msra.mxu0 %v2642
        %2660 = vmatpush.msra.mxu0 %v2641
        %2661 = vmatpush.msra.mxu0 %v2640
        %2662 = vmatpush.msra.mxu0 %v2639
        %2663 = vmatmul.f32.gmra.mxu0 %v2645
        %v2664 = vpop.f32.mrf.mxu0
        %v2665 = vadd.f32 %v2643, %v2664
        %2666 = vdwg.mxu0
        %vm2667 = vcmask 73728
        %2668 = vst.msk [vmem:[%s567] sm:$0x1] %vm2667, %v2665
        %s2669 = sand.u32 %s423, 1
        %s2670 = scalar_lea.sflag [#allocation3], %s2669
        %s2671 = sand.u32 %s423, 1
        %s2672 = scalar_lea.vmem [#allocation2], %s2671
        // Predicated region
        $region93: #{deep_vit_forward.1} parent=91 // pred_check
          %p2673 = pneg %p433
        $region94: #{deep_vit_forward.1} parent=91 // pred_check_branch
          %2675 = sbr.rel (%p2673) target = $region96
        $region95: #{deep_vit_forward.1} parent=91 // pred_region
          %2677 = vsyncadd %s2670, 0
          %s2678 = scalar_lea.hbm %s18, %s32
          %s2680 = sshll.u32 %s2672, 4
          %s2681 = int_to_ptr.vmem [resolvable:$true] %s2680
          %s2682 = sshll.u32 %s2678, 4
          %s2683 = int_to_ptr.hbm [resolvable:$true] %s2682
          %2685 = dma.vmem_to_hbm [thread:$0]  %s2681, 16, %s2683, %s2670
        $region96: #{deep_vit_forward.1} parent=91 // pred_fallthru
          _
      $region92: #{deep_vit_forward.1} parent=5 // pred_fallthru
        _
      %p2686 = scmp.le.s32.totalorder 2, %s27
      // Predicated region
      $region97: #{deep_vit_forward.1} parent=5 // pred_check
        %p2687 = pneg %p2686
      $region98: #{deep_vit_forward.1} parent=5 // pred_check_branch
        %2689 = sbr.rel (%p2687) target = $region100
      $region99: #{deep_vit_forward.1} parent=5 // pred_region
        %s2690 = ssub.s32 %s27, 2
        // Predicated region
        $region101: #{deep_vit_forward.1} parent=99 // pred_check
          %p2691 = pneg %p439
        $region102: #{deep_vit_forward.1} parent=99 // pred_check_branch
          %2693 = sbr.rel (%p2691) target = $region104
        $region103: #{deep_vit_forward.1} parent=99 // pred_region
          %s2694 = sand.u32 %s424, 1
          %s2695 = scalar_lea.sflag [#allocation3], %s2694
          %s2696 = sand.u32 %s424, 1
          %s2697 = scalar_lea.vmem [#allocation2], %s2696
          %2699 = dma.done %s2695, 16
        $region104: #{deep_vit_forward.1} parent=99 // pred_fallthru
          _
      $region100: #{deep_vit_forward.1} parent=5 // pred_fallthru
        _
    $region6: #{deep_vit_forward.1} parent=1 // loop_footer
      %s31 = sadd.s32 1, %s27
    $region7: #{deep_vit_forward.1} parent=1 // loop_footer_branch
      %26 = sbr.rel target = $region3
    $region8: #{deep_vit_forward.1} parent=1 // loop_exit
      _
    %2700 = vsyncpa [#allocation3], 1
    %s2701 = scalar_lea.sflag [#allocation3], 1
    %2702 = vsyncpa %s2701, 1

</llo_original>
